<compile_context>
chip_gen: v6e
topology: v6e:2x2x1
jax: 0.10.0
libtpu: 0.0.40
codegen_flags: <defaults>
</compile_context>

<pallas_src>
import functools

import jax
import jax.numpy as jnp
from jax.experimental import pallas as pl
from jax.experimental.pallas import tpu as pltpu


# ----------------------------- fused Pallas kernel -------------------------- #

def fused_gcn_jk_kernel(a_ref, xw0_ref, ws_ref, bs_ref, p_ref,
                        w1_ref, b1_ref, w2_ref, b2_ref, o_ref):
    num_layers = bs_ref.shape[0]
    g = p_ref.shape[0]
    hidden = xw0_ref.shape[1]

    a = a_ref[...]                                     # [N, N] bf16, VMEM resident
    p = p_ref[...]                                     # [G, N] bf16 mean-pool matrix

    # accumulator for pooled-JK @ W1 (replaces the [N, L*H] concat scratch)
    hh_acc = jnp.zeros((g, hidden), jnp.float32)

    h_bf16 = None
    for l in range(num_layers):                        # static unroll over layers
        if l == 0:
            xw = xw0_ref[...]                          # X @ W0 precomputed (rank-1), bf16
        else:
            xw = jnp.dot(h_bf16, ws_ref[l - 1],
                         preferred_element_type=jnp.float32).astype(jnp.bfloat16)
        # symmetric-normalized aggregation with self loops: A_hat @ (X @ W)
        ax = jnp.dot(a, xw, preferred_element_type=jnp.float32)
        h = jnp.maximum(ax + bs_ref[l], 0.0)           # + bias, ReLU (f32)
        h_bf16 = h.astype(jnp.bfloat16)
        # JumpingKnowledge('cat') + global_mean_pool + lin1, folded per layer:
        #   pooled_cat @ W1 == sum_l (P @ h_l) @ W1[l]
        pooled_l = jnp.dot(p, h_bf16, preferred_element_type=jnp.float32)     # [G, H]
        hh_acc = hh_acc + jnp.dot(pooled_l.astype(jnp.bfloat16), w1_ref[l],
                                  preferred_element_type=jnp.float32)

    # lin1 bias + ReLU
    hh = jnp.maximum(hh_acc + b1_ref[...], 0.0)
    # TODO(synk): F.dropout(p=0.5) treated as inference-mode identity (stochastic
    #             training-mode dropout is not reproduced here).
    logits = jnp.dot(hh.astype(jnp.bfloat16), w2_ref[...],
                     preferred_element_type=jnp.float32) + b2_ref[...]
    # numerically-stable log_softmax along last dim
    m = jnp.max(logits, axis=-1, keepdims=True)
    z = logits - m
    o_ref[...] = z - jnp.log(jnp.sum(jnp.exp(z), axis=-1, keepdims=True))


def fused_forward(a_bf16, xw0, ws, bs, pool_mat, w1, b1, w2, b2):
    n, hidden = xw0.shape
    num_layers = bs.shape[0]
    g = pool_mat.shape[0]
    n_cls = w2.shape[1]

    flops = (num_layers * 2 * n * n * hidden                 # A_hat @ XW per layer
             + (num_layers - 1) * 2 * n * hidden * hidden    # X @ W for layers 2..L
             + num_layers * 2 * g * n * hidden               # per-layer pooling
             + num_layers * 2 * g * hidden * hidden          # per-layer lin1 partial
             + 2 * g * hidden * n_cls)                       # lin2
    operands = (a_bf16, xw0, ws, bs, pool_mat, w1, b1, w2, b2)
    bytes_accessed = sum(int(op.size) * op.dtype.itemsize for op in operands)
    bytes_accessed += g * n_cls * 4                          # output

    # explicit VMEM budget (double-buffered operands + working headroom),
    # clamped to v7x's 64 MiB physical ceiling so the same code lowers everywhere.
    vmem_budget = int(min(64 << 20, max(32 << 20, 2 * bytes_accessed + (8 << 20))))

    return pl.pallas_call(
        fused_gcn_jk_kernel,
        out_shape=jax.ShapeDtypeStruct((g, n_cls), jnp.float32),
        in_specs=[
            pl.BlockSpec((n, n), lambda: (0, 0)),                               # A_hat (bf16)
            pl.BlockSpec((n, hidden), lambda: (0, 0)),                          # X @ W0 (bf16)
            pl.BlockSpec((num_layers - 1, hidden, hidden), lambda: (0, 0, 0)),  # stacked W (bf16)
            pl.BlockSpec((num_layers, 1, hidden), lambda: (0, 0, 0)),           # stacked b (f32)
            pl.BlockSpec((g, n), lambda: (0, 0)),                               # pool matrix (bf16)
            pl.BlockSpec((num_layers, hidden, hidden), lambda: (0, 0, 0)),      # W1 as [L,H,H] (bf16)
            pl.BlockSpec((1, hidden), lambda: (0, 0)),                          # b1 (f32)
            pl.BlockSpec((hidden, n_cls), lambda: (0, 0)),                      # W2 (bf16)
            pl.BlockSpec((1, n_cls), lambda: (0, 0)),                           # b2 (f32)
        ],
        out_specs=pl.BlockSpec((g, n_cls), lambda: (0, 0)),
        compiler_params=pltpu.CompilerParams(vmem_limit_bytes=vmem_budget),
        cost_estimate=pl.CostEstimate(
            flops=flops, transcendentals=g * (n_cls + 1), bytes_accessed=bytes_accessed),
    )(*operands)


# ----------------------------- glue (plain JAX) ----------------------------- #

def build_normalized_adjacency(edge_index, num_nodes):
    """A_hat = D^-1/2 (A + I) D^-1/2 with A[dst, src] summed over duplicate edges.

    Self loops are added only for nodes that lack one (add_remaining_self_loops style).
    # TODO(synk): PyG gcn_norm's fill_value handling for repeated pre-existing
    # self-loop edges on multigraphs may differ slightly.
    """
    src, dst = edge_index[0], edge_index[1]
    a = jnp.zeros((num_nodes, num_nodes), jnp.float32).at[dst, src].add(1.0)
    diag = jnp.diagonal(a)
    a = a + jnp.diag(jnp.where(diag > 0.0, 0.0, 1.0))
    deg = jnp.sum(a, axis=1)
    d_inv_sqrt = jnp.where(deg > 0, 1.0 / jnp.sqrt(deg), 0.0)
    return d_inv_sqrt[:, None] * a * d_inv_sqrt[None, :]


def build_mean_pool_matrix(batch, num_graphs, num_nodes):
    """P[g, i] = 1/|graph g| if batch[i] == g else 0, so P @ X == global_mean_pool."""
    one_hot = (batch[None, :] == jnp.arange(num_graphs)[:, None]).astype(jnp.float32)
    counts = jnp.sum(one_hot, axis=1, keepdims=True)
    return one_hot / jnp.maximum(counts, 1.0)


def glorot(key, shape):
    fan_in, fan_out = shape[-2], shape[-1]
    limit = jnp.sqrt(6.0 / (fan_in + fan_out))
    return jax.random.uniform(key, shape, jnp.float32, -limit, limit)


def init_params(key, hidden=64, num_layers=8, num_classes=3):
    keys = jax.random.split(key, num_layers + 2)
    # conv1: GCNConv(1, hidden); convs[i]: GCNConv(hidden, hidden)
    w0 = glorot(keys[0], (1, hidden))
    ws = jnp.stack([glorot(keys[i], (hidden, hidden)) for i in range(1, num_layers)])
    bs = jnp.zeros((num_layers, 1, hidden), jnp.float32)
    # lin1: Linear(num_layers * hidden, hidden) (JK mode == 'cat'); lin2: Linear(hidden, 3)
    w1 = glorot(keys[num_layers], (num_layers * hidden, hidden))
    b1 = jnp.zeros((1, hidden), jnp.float32)
    w2 = glorot(keys[num_layers + 1], (hidden, num_classes))
    b2 = jnp.zeros((1, num_classes), jnp.float32)
    return {"w0": w0, "ws": ws, "bs": bs, "w1": w1, "b1": b1, "w2": w2, "b2": b2}


@functools.partial(jax.jit, static_argnames=("num_graphs",))
def gcn_with_jk_forward(params, x, edge_index, batch, num_graphs):
    n = x.shape[0]
    hidden = params["w0"].shape[1]
    num_layers = params["ws"].shape[0] + 1
    a_bf16 = build_normalized_adjacency(edge_index, n).astype(jnp.bfloat16)
    pool_bf16 = build_mean_pool_matrix(batch, num_graphs, n).astype(jnp.bfloat16)
    # First layer X @ W0 is a rank-1 (K=1) product: do it as a broadcast multiply
    # in the wrapper (never a K=1 MXU matmul) and ship it to the kernel as bf16.
    xw0 = (x * params["w0"]).astype(jnp.bfloat16)                  # [N,1]*[1,H] -> [N,H]
    ws_bf16 = params["ws"].astype(jnp.bfloat16)
    w1_bf16 = params["w1"].reshape(num_layers, hidden, hidden).astype(jnp.bfloat16)
    w2_bf16 = params["w2"].astype(jnp.bfloat16)
    return fused_forward(a_bf16, xw0, ws_bf16, params["bs"], pool_bf16,
                         w1_bf16, params["b1"], w2_bf16, params["b2"])


def reference_forward(params, x, edge_index, batch, num_graphs):
    """Pure-JAX reference replicating the kernel's bf16-operand / f32-accum numerics."""
    n = x.shape[0]
    hidden = params["w0"].shape[1]
    num_layers = params["ws"].shape[0] + 1
    a = build_normalized_adjacency(edge_index, n).astype(jnp.bfloat16)
    p = build_mean_pool_matrix(batch, num_graphs, n).astype(jnp.bfloat16)
    ws = params["ws"].astype(jnp.bfloat16)
    w1 = params["w1"].reshape(num_layers, hidden, hidden).astype(jnp.bfloat16)
    w2 = params["w2"].astype(jnp.bfloat16)

    xw = (x * params["w0"]).astype(jnp.bfloat16)
    acc = jnp.zeros((num_graphs, hidden), jnp.float32)
    h_bf = None
    for l in range(num_layers):
        if l > 0:
            xw = jnp.dot(h_bf, ws[l - 1],
                         preferred_element_type=jnp.float32).astype(jnp.bfloat16)
        h = jnp.maximum(jnp.dot(a, xw, preferred_element_type=jnp.float32)
                        + params["bs"][l], 0.0)
        h_bf = h.astype(jnp.bfloat16)
        pooled = jnp.dot(p, h_bf, preferred_element_type=jnp.float32)
        acc = acc + jnp.dot(pooled.astype(jnp.bfloat16), w1[l],
                            preferred_element_type=jnp.float32)
    hh = jnp.maximum(acc + params["b1"], 0.0)
    logits = jnp.dot(hh.astype(jnp.bfloat16), w2,
                     preferred_element_type=jnp.float32) + params["b2"]
    return jax.nn.log_softmax(logits, axis=-1)


# ----------------------------- main ----------------------------------------- #

if __name__ == "__main__":
    key = jax.random.PRNGKey(0)
    k_param, k_x, k_edge = jax.random.split(key, 3)

    num_nodes = 128
    num_edges = 256
    num_graphs = 3
    hidden = 64
    num_layers = 8
    num_classes = 3

    params = init_params(k_param, hidden=hidden, num_layers=num_layers,
                         num_classes=num_classes)

    # node features: GCNConv(1, hidden) -> x is [N, 1]
    x = jax.random.normal(k_x, (num_nodes, 1), jnp.float32)
    # random directed edges (2, E)
    edge_index = jax.random.randint(k_edge, (2, num_edges), 0, num_nodes, jnp.int32)
    # graph assignment for global_mean_pool: 3 contiguous graphs
    batch = jnp.concatenate([
        jnp.full((48,), 0, jnp.int32),
        jnp.full((40,), 1, jnp.int32),
        jnp.full((40,), 2, jnp.int32),
    ])

    out = gcn_with_jk_forward(params, x, edge_index, batch, num_graphs)
    out = jax.block_until_ready(out)
    assert out.shape == (num_graphs, num_classes)
    # rows of log_softmax output must exponentiate-sum to ~1
    assert jnp.allclose(jnp.sum(jnp.exp(out), axis=-1), 1.0, atol=1e-4)
    # numerical check against a pure-JAX reference with identical bf16/f32 dtypes
    ref = reference_forward(params, x, edge_index, batch, num_graphs)
    assert jnp.allclose(out, ref, atol=5e-2, rtol=5e-2)
    print("KERNEL_OK")
</pallas_src>

<mosaic_0001>
module attributes {stable_mosaic.version = 11 : i64} {
  func.func private @main(%arg0: i32) attributes {dimension_semantics = [#tpu.dimension_semantics<core_parallel>], iteration_bounds = array<i64: 2>, tpu.core_type = #tpu.core_type<sc_scalar_subcore>, window_params = []} {
    return
  }
}

module attributes {stable_mosaic.version = 11 : i64} {
  func.func private @main(%arg0: i32) attributes {dimension_semantics = [#tpu.dimension_semantics<core_parallel>], iteration_bounds = array<i64: 2>, tpu.core_type = #tpu.core_type<sc_scalar_subcore>, window_params = []} {
    return
  }
}

module attributes {stable_mosaic.version = 11 : i64} {
  func.func @fused_gcn_jk_kernel(%arg0: memref<128x128xbf16, #tpu.memory_space<vmem>>, %arg1: memref<128x64xbf16, #tpu.memory_space<vmem>>, %arg2: memref<7x64x64xbf16, #tpu.memory_space<vmem>>, %arg3: memref<8x1x64xf32, #tpu.memory_space<vmem>>, %arg4: memref<3x128xbf16, #tpu.memory_space<vmem>>, %arg5: memref<8x64x64xbf16, #tpu.memory_space<vmem>>, %arg6: memref<1x64xf32, #tpu.memory_space<vmem>>, %arg7: memref<64x3xbf16, #tpu.memory_space<vmem>>, %arg8: memref<1x3xf32, #tpu.memory_space<vmem>>, %arg9: memref<3x3xf32, #tpu.memory_space<vmem>>) attributes {dimension_semantics = [], scalar_prefetch = 0 : i64, scratch_operands = 0 : i64, tpu.core_type = #tpu.core_type<tc>} {
    %c0 = arith.constant 0 : index
    %c0_0 = arith.constant 0 : index
    %0 = vector.load %arg0[%c0, %c0_0] : memref<128x128xbf16, #tpu.memory_space<vmem>>, vector<128x128xbf16>
    %c0_1 = arith.constant 0 : index
    %c0_2 = arith.constant 0 : index
    %1 = vector.load %arg4[%c0_1, %c0_2] : memref<3x128xbf16, #tpu.memory_space<vmem>>, vector<3x128xbf16>
    %cst = arith.constant 0.000000e+00 : f32
    %2 = vector.broadcast %cst : f32 to vector<3x64xf32>
    %c0_3 = arith.constant 0 : index
    %c0_4 = arith.constant 0 : index
    %3 = vector.load %arg1[%c0_3, %c0_4] : memref<128x64xbf16, #tpu.memory_space<vmem>>, vector<128x64xbf16>
    %cst_5 = arith.constant dense<0.000000e+00> : vector<128x64xf32>
    %4 = tpu.matmul %0, %3, %cst_5 {dimension_numbers = #tpu.dot_dimension_numbers<[1], [0], [0], [1], [0, 0, 1, 1], [], []>} : vector<128x128xbf16>, vector<128x64xbf16>, vector<128x64xf32> -> vector<128x64xf32>
    %c0_6 = arith.constant 0 : index
    %c0_7 = arith.constant 0 : index
    %c0_8 = arith.constant 0 : index
    %5 = vector.load %arg3[%c0_6, %c0_7, %c0_8] : memref<8x1x64xf32, #tpu.memory_space<vmem>>, vector<1x1x64xf32>
    %6 = vector.shape_cast %5 : vector<1x1x64xf32> to vector<1x64xf32>
    %7 = vector.broadcast %6 : vector<1x64xf32> to vector<128x64xf32>
    %8 = arith.addf %4, %7 : vector<128x64xf32>
    %cst_9 = arith.constant 0.000000e+00 : f32
    %9 = vector.broadcast %cst_9 : f32 to vector<128x64xf32>
    %10 = arith.maximumf %8, %9 : vector<128x64xf32>
    %11 = arith.truncf %10 : vector<128x64xf32> to vector<128x64xbf16>
    %cst_10 = arith.constant dense<0.000000e+00> : vector<3x64xf32>
    %12 = tpu.matmul %1, %11, %cst_10 {dimension_numbers = #tpu.dot_dimension_numbers<[1], [0], [0], [1], [0, 0, 1, 1], [], []>} : vector<3x128xbf16>, vector<128x64xbf16>, vector<3x64xf32> -> vector<3x64xf32>
    %13 = arith.truncf %12 : vector<3x64xf32> to vector<3x64xbf16>
    %c0_11 = arith.constant 0 : index
    %c0_12 = arith.constant 0 : index
    %c0_13 = arith.constant 0 : index
    %14 = vector.load %arg5[%c0_11, %c0_12, %c0_13] : memref<8x64x64xbf16, #tpu.memory_space<vmem>>, vector<1x64x64xbf16>
    %15 = vector.shape_cast %14 : vector<1x64x64xbf16> to vector<64x64xbf16>
    %cst_14 = arith.constant dense<0.000000e+00> : vector<3x64xf32>
    %16 = tpu.matmul %13, %15, %cst_14 {dimension_numbers = #tpu.dot_dimension_numbers<[1], [0], [0], [1], [0, 0, 1, 1], [], []>} : vector<3x64xbf16>, vector<64x64xbf16>, vector<3x64xf32> -> vector<3x64xf32>
    %17 = arith.addf %2, %16 : vector<3x64xf32>
    %c0_15 = arith.constant 0 : index
    %c0_16 = arith.constant 0 : index
    %c0_17 = arith.constant 0 : index
    %18 = vector.load %arg2[%c0_15, %c0_16, %c0_17] : memref<7x64x64xbf16, #tpu.memory_space<vmem>>, vector<1x64x64xbf16>
    %19 = vector.shape_cast %18 : vector<1x64x64xbf16> to vector<64x64xbf16>
    %cst_18 = arith.constant dense<0.000000e+00> : vector<128x64xf32>
    %20 = tpu.matmul %11, %19, %cst_18 {dimension_numbers = #tpu.dot_dimension_numbers<[1], [0], [0], [1], [0, 0, 1, 1], [], []>} : vector<128x64xbf16>, vector<64x64xbf16>, vector<128x64xf32> -> vector<128x64xf32>
    %21 = arith.truncf %20 : vector<128x64xf32> to vector<128x64xbf16>
    %cst_19 = arith.constant dense<0.000000e+00> : vector<128x64xf32>
    %22 = tpu.matmul %0, %21, %cst_19 {dimension_numbers = #tpu.dot_dimension_numbers<[1], [0], [0], [1], [0, 0, 1, 1], [], []>} : vector<128x128xbf16>, vector<128x64xbf16>, vector<128x64xf32> -> vector<128x64xf32>
    %c1 = arith.constant 1 : index
    %c0_20 = arith.constant 0 : index
    %c0_21 = arith.constant 0 : index
    %23 = vector.load %arg3[%c1, %c0_20, %c0_21] : memref<8x1x64xf32, #tpu.memory_space<vmem>>, vector<1x1x64xf32>
    %24 = vector.shape_cast %23 : vector<1x1x64xf32> to vector<1x64xf32>
    %25 = vector.broadcast %24 : vector<1x64xf32> to vector<128x64xf32>
    %26 = arith.addf %22, %25 : vector<128x64xf32>
    %cst_22 = arith.constant 0.000000e+00 : f32
    %27 = vector.broadcast %cst_22 : f32 to vector<128x64xf32>
    %28 = arith.maximumf %26, %27 : vector<128x64xf32>
    %29 = arith.truncf %28 : vector<128x64xf32> to vector<128x64xbf16>
    %cst_23 = arith.constant dense<0.000000e+00> : vector<3x64xf32>
    %30 = tpu.matmul %1, %29, %cst_23 {dimension_numbers = #tpu.dot_dimension_numbers<[1], [0], [0], [1], [0, 0, 1, 1], [], []>} : vector<3x128xbf16>, vector<128x64xbf16>, vector<3x64xf32> -> vector<3x64xf32>
    %31 = arith.truncf %30 : vector<3x64xf32> to vector<3x64xbf16>
    %c1_24 = arith.constant 1 : index
    %c0_25 = arith.constant 0 : index
    %c0_26 = arith.constant 0 : index
    %32 = vector.load %arg5[%c1_24, %c0_25, %c0_26] : memref<8x64x64xbf16, #tpu.memory_space<vmem>>, vector<1x64x64xbf16>
    %33 = vector.shape_cast %32 : vector<1x64x64xbf16> to vector<64x64xbf16>
    %cst_27 = arith.constant dense<0.000000e+00> : vector<3x64xf32>
    %34 = tpu.matmul %31, %33, %cst_27 {dimension_numbers = #tpu.dot_dimension_numbers<[1], [0], [0], [1], [0, 0, 1, 1], [], []>} : vector<3x64xbf16>, vector<64x64xbf16>, vector<3x64xf32> -> vector<3x64xf32>
    %35 = arith.addf %17, %34 : vector<3x64xf32>
    %c1_28 = arith.constant 1 : index
    %c0_29 = arith.constant 0 : index
    %c0_30 = arith.constant 0 : index
    %36 = vector.load %arg2[%c1_28, %c0_29, %c0_30] : memref<7x64x64xbf16, #tpu.memory_space<vmem>>, vector<1x64x64xbf16>
    %37 = vector.shape_cast %36 : vector<1x64x64xbf16> to vector<64x64xbf16>
    %cst_31 = arith.constant dense<0.000000e+00> : vector<128x64xf32>
    %38 = tpu.matmul %29, %37, %cst_31 {dimension_numbers = #tpu.dot_dimension_numbers<[1], [0], [0], [1], [0, 0, 1, 1], [], []>} : vector<128x64xbf16>, vector<64x64xbf16>, vector<128x64xf32> -> vector<128x64xf32>
    %39 = arith.truncf %38 : vector<128x64xf32> to vector<128x64xbf16>
    %cst_32 = arith.constant dense<0.000000e+00> : vector<128x64xf32>
    %40 = tpu.matmul %0, %39, %cst_32 {dimension_numbers = #tpu.dot_dimension_numbers<[1], [0], [0], [1], [0, 0, 1, 1], [], []>} : vector<128x128xbf16>, vector<128x64xbf16>, vector<128x64xf32> -> vector<128x64xf32>
    %c2 = arith.constant 2 : index
    %c0_33 = arith.constant 0 : index
    %c0_34 = arith.constant 0 : index
    %41 = vector.load %arg3[%c2, %c0_33, %c0_34] : memref<8x1x64xf32, #tpu.memory_space<vmem>>, vector<1x1x64xf32>
    %42 = vector.shape_cast %41 : vector<1x1x64xf32> to vector<1x64xf32>
    %43 = vector.broadcast %42 : vector<1x64xf32> to vector<128x64xf32>
    %44 = arith.addf %40, %43 : vector<128x64xf32>
    %cst_35 = arith.constant 0.000000e+00 : f32
    %45 = vector.broadcast %cst_35 : f32 to vector<128x64xf32>
    %46 = arith.maximumf %44, %45 : vector<128x64xf32>
    %47 = arith.truncf %46 : vector<128x64xf32> to vector<128x64xbf16>
    %cst_36 = arith.constant dense<0.000000e+00> : vector<3x64xf32>
    %48 = tpu.matmul %1, %47, %cst_36 {dimension_numbers = #tpu.dot_dimension_numbers<[1], [0], [0], [1], [0, 0, 1, 1], [], []>} : vector<3x128xbf16>, vector<128x64xbf16>, vector<3x64xf32> -> vector<3x64xf32>
    %49 = arith.truncf %48 : vector<3x64xf32> to vector<3x64xbf16>
    %c2_37 = arith.constant 2 : index
    %c0_38 = arith.constant 0 : index
    %c0_39 = arith.constant 0 : index
    %50 = vector.load %arg5[%c2_37, %c0_38, %c0_39] : memref<8x64x64xbf16, #tpu.memory_space<vmem>>, vector<1x64x64xbf16>
    %51 = vector.shape_cast %50 : vector<1x64x64xbf16> to vector<64x64xbf16>
    %cst_40 = arith.constant dense<0.000000e+00> : vector<3x64xf32>
    %52 = tpu.matmul %49, %51, %cst_40 {dimension_numbers = #tpu.dot_dimension_numbers<[1], [0], [0], [1], [0, 0, 1, 1], [], []>} : vector<3x64xbf16>, vector<64x64xbf16>, vector<3x64xf32> -> vector<3x64xf32>
    %53 = arith.addf %35, %52 : vector<3x64xf32>
    %c2_41 = arith.constant 2 : index
    %c0_42 = arith.constant 0 : index
    %c0_43 = arith.constant 0 : index
    %54 = vector.load %arg2[%c2_41, %c0_42, %c0_43] : memref<7x64x64xbf16, #tpu.memory_space<vmem>>, vector<1x64x64xbf16>
    %55 = vector.shape_cast %54 : vector<1x64x64xbf16> to vector<64x64xbf16>
    %cst_44 = arith.constant dense<0.000000e+00> : vector<128x64xf32>
    %56 = tpu.matmul %47, %55, %cst_44 {dimension_numbers = #tpu.dot_dimension_numbers<[1], [0], [0], [1], [0, 0, 1, 1], [], []>} : vector<128x64xbf16>, vector<64x64xbf16>, vector<128x64xf32> -> vector<128x64xf32>
    %57 = arith.truncf %56 : vector<128x64xf32> to vector<128x64xbf16>
    %cst_45 = arith.constant dense<0.000000e+00> : vector<128x64xf32>
    %58 = tpu.matmul %0, %57, %cst_45 {dimension_numbers = #tpu.dot_dimension_numbers<[1], [0], [0], [1], [0, 0, 1, 1], [], []>} : vector<128x128xbf16>, vector<128x64xbf16>, vector<128x64xf32> -> vector<128x64xf32>
    %c3 = arith.constant 3 : index
    %c0_46 = arith.constant 0 : index
    %c0_47 = arith.constant 0 : index
    %59 = vector.load %arg3[%c3, %c0_46, %c0_47] : memref<8x1x64xf32, #tpu.memory_space<vmem>>, vector<1x1x64xf32>
    %60 = vector.shape_cast %59 : vector<1x1x64xf32> to vector<1x64xf32>
    %61 = vector.broadcast %60 : vector<1x64xf32> to vector<128x64xf32>
    %62 = arith.addf %58, %61 : vector<128x64xf32>
    %cst_48 = arith.constant 0.000000e+00 : f32
    %63 = vector.broadcast %cst_48 : f32 to vector<128x64xf32>
    %64 = arith.maximumf %62, %63 : vector<128x64xf32>
    %65 = arith.truncf %64 : vector<128x64xf32> to vector<128x64xbf16>
    %cst_49 = arith.constant dense<0.000000e+00> : vector<3x64xf32>
    %66 = tpu.matmul %1, %65, %cst_49 {dimension_numbers = #tpu.dot_dimension_numbers<[1], [0], [0], [1], [0, 0, 1, 1], [], []>} : vector<3x128xbf16>, vector<128x64xbf16>, vector<3x64xf32> -> vector<3x64xf32>
    %67 = arith.truncf %66 : vector<3x64xf32> to vector<3x64xbf16>
    %c3_50 = arith.constant 3 : index
    %c0_51 = arith.constant 0 : index
    %c0_52 = arith.constant 0 : index
    %68 = vector.load %arg5[%c3_50, %c0_51, %c0_52] : memref<8x64x64xbf16, #tpu.memory_space<vmem>>, vector<1x64x64xbf16>
    %69 = vector.shape_cast %68 : vector<1x64x64xbf16> to vector<64x64xbf16>
    %cst_53 = arith.constant dense<0.000000e+00> : vector<3x64xf32>
    %70 = tpu.matmul %67, %69, %cst_53 {dimension_numbers = #tpu.dot_dimension_numbers<[1], [0], [0], [1], [0, 0, 1, 1], [], []>} : vector<3x64xbf16>, vector<64x64xbf16>, vector<3x64xf32> -> vector<3x64xf32>
    %71 = arith.addf %53, %70 : vector<3x64xf32>
    %c3_54 = arith.constant 3 : index
    %c0_55 = arith.constant 0 : index
    %c0_56 = arith.constant 0 : index
    %72 = vector.load %arg2[%c3_54, %c0_55, %c0_56] : memref<7x64x64xbf16, #tpu.memory_space<vmem>>, vector<1x64x64xbf16>
    %73 = vector.shape_cast %72 : vector<1x64x64xbf16> to vector<64x64xbf16>
    %cst_57 = arith.constant dense<0.000000e+00> : vector<128x64xf32>
    %74 = tpu.matmul %65, %73, %cst_57 {dimension_numbers = #tpu.dot_dimension_numbers<[1], [0], [0], [1], [0, 0, 1, 1], [], []>} : vector<128x64xbf16>, vector<64x64xbf16>, vector<128x64xf32> -> vector<128x64xf32>
    %75 = arith.truncf %74 : vector<128x64xf32> to vector<128x64xbf16>
    %cst_58 = arith.constant dense<0.000000e+00> : vector<128x64xf32>
    %76 = tpu.matmul %0, %75, %cst_58 {dimension_numbers = #tpu.dot_dimension_numbers<[1], [0], [0], [1], [0, 0, 1, 1], [], []>} : vector<128x128xbf16>, vector<128x64xbf16>, vector<128x64xf32> -> vector<128x64xf32>
    %c4 = arith.constant 4 : index
    %c0_59 = arith.constant 0 : index
    %c0_60 = arith.constant 0 : index
    %77 = vector.load %arg3[%c4, %c0_59, %c0_60] : memref<8x1x64xf32, #tpu.memory_space<vmem>>, vector<1x1x64xf32>
    %78 = vector.shape_cast %77 : vector<1x1x64xf32> to vector<1x64xf32>
    %79 = vector.broadcast %78 : vector<1x64xf32> to vector<128x64xf32>
    %80 = arith.addf %76, %79 : vector<128x64xf32>
    %cst_61 = arith.constant 0.000000e+00 : f32
    %81 = vector.broadcast %cst_61 : f32 to vector<128x64xf32>
    %82 = arith.maximumf %80, %81 : vector<128x64xf32>
    %83 = arith.truncf %82 : vector<128x64xf32> to vector<128x64xbf16>
    %cst_62 = arith.constant dense<0.000000e+00> : vector<3x64xf32>
    %84 = tpu.matmul %1, %83, %cst_62 {dimension_numbers = #tpu.dot_dimension_numbers<[1], [0], [0], [1], [0, 0, 1, 1], [], []>} : vector<3x128xbf16>, vector<128x64xbf16>, vector<3x64xf32> -> vector<3x64xf32>
    %85 = arith.truncf %84 : vector<3x64xf32> to vector<3x64xbf16>
    %c4_63 = arith.constant 4 : index
    %c0_64 = arith.constant 0 : index
    %c0_65 = arith.constant 0 : index
    %86 = vector.load %arg5[%c4_63, %c0_64, %c0_65] : memref<8x64x64xbf16, #tpu.memory_space<vmem>>, vector<1x64x64xbf16>
    %87 = vector.shape_cast %86 : vector<1x64x64xbf16> to vector<64x64xbf16>
    %cst_66 = arith.constant dense<0.000000e+00> : vector<3x64xf32>
    %88 = tpu.matmul %85, %87, %cst_66 {dimension_numbers = #tpu.dot_dimension_numbers<[1], [0], [0], [1], [0, 0, 1, 1], [], []>} : vector<3x64xbf16>, vector<64x64xbf16>, vector<3x64xf32> -> vector<3x64xf32>
    %89 = arith.addf %71, %88 : vector<3x64xf32>
    %c4_67 = arith.constant 4 : index
    %c0_68 = arith.constant 0 : index
    %c0_69 = arith.constant 0 : index
    %90 = vector.load %arg2[%c4_67, %c0_68, %c0_69] : memref<7x64x64xbf16, #tpu.memory_space<vmem>>, vector<1x64x64xbf16>
    %91 = vector.shape_cast %90 : vector<1x64x64xbf16> to vector<64x64xbf16>
    %cst_70 = arith.constant dense<0.000000e+00> : vector<128x64xf32>
    %92 = tpu.matmul %83, %91, %cst_70 {dimension_numbers = #tpu.dot_dimension_numbers<[1], [0], [0], [1], [0, 0, 1, 1], [], []>} : vector<128x64xbf16>, vector<64x64xbf16>, vector<128x64xf32> -> vector<128x64xf32>
    %93 = arith.truncf %92 : vector<128x64xf32> to vector<128x64xbf16>
    %cst_71 = arith.constant dense<0.000000e+00> : vector<128x64xf32>
    %94 = tpu.matmul %0, %93, %cst_71 {dimension_numbers = #tpu.dot_dimension_numbers<[1], [0], [0], [1], [0, 0, 1, 1], [], []>} : vector<128x128xbf16>, vector<128x64xbf16>, vector<128x64xf32> -> vector<128x64xf32>
    %c5 = arith.constant 5 : index
    %c0_72 = arith.constant 0 : index
    %c0_73 = arith.constant 0 : index
    %95 = vector.load %arg3[%c5, %c0_72, %c0_73] : memref<8x1x64xf32, #tpu.memory_space<vmem>>, vector<1x1x64xf32>
    %96 = vector.shape_cast %95 : vector<1x1x64xf32> to vector<1x64xf32>
    %97 = vector.broadcast %96 : vector<1x64xf32> to vector<128x64xf32>
    %98 = arith.addf %94, %97 : vector<128x64xf32>
    %cst_74 = arith.constant 0.000000e+00 : f32
    %99 = vector.broadcast %cst_74 : f32 to vector<128x64xf32>
    %100 = arith.maximumf %98, %99 : vector<128x64xf32>
    %101 = arith.truncf %100 : vector<128x64xf32> to vector<128x64xbf16>
    %cst_75 = arith.constant dense<0.000000e+00> : vector<3x64xf32>
    %102 = tpu.matmul %1, %101, %cst_75 {dimension_numbers = #tpu.dot_dimension_numbers<[1], [0], [0], [1], [0, 0, 1, 1], [], []>} : vector<3x128xbf16>, vector<128x64xbf16>, vector<3x64xf32> -> vector<3x64xf32>
    %103 = arith.truncf %102 : vector<3x64xf32> to vector<3x64xbf16>
    %c5_76 = arith.constant 5 : index
    %c0_77 = arith.constant 0 : index
    %c0_78 = arith.constant 0 : index
    %104 = vector.load %arg5[%c5_76, %c0_77, %c0_78] : memref<8x64x64xbf16, #tpu.memory_space<vmem>>, vector<1x64x64xbf16>
    %105 = vector.shape_cast %104 : vector<1x64x64xbf16> to vector<64x64xbf16>
    %cst_79 = arith.constant dense<0.000000e+00> : vector<3x64xf32>
    %106 = tpu.matmul %103, %105, %cst_79 {dimension_numbers = #tpu.dot_dimension_numbers<[1], [0], [0], [1], [0, 0, 1, 1], [], []>} : vector<3x64xbf16>, vector<64x64xbf16>, vector<3x64xf32> -> vector<3x64xf32>
    %107 = arith.addf %89, %106 : vector<3x64xf32>
    %c5_80 = arith.constant 5 : index
    %c0_81 = arith.constant 0 : index
    %c0_82 = arith.constant 0 : index
    %108 = vector.load %arg2[%c5_80, %c0_81, %c0_82] : memref<7x64x64xbf16, #tpu.memory_space<vmem>>, vector<1x64x64xbf16>
    %109 = vector.shape_cast %108 : vector<1x64x64xbf16> to vector<64x64xbf16>
    %cst_83 = arith.constant dense<0.000000e+00> : vector<128x64xf32>
    %110 = tpu.matmul %101, %109, %cst_83 {dimension_numbers = #tpu.dot_dimension_numbers<[1], [0], [0], [1], [0, 0, 1, 1], [], []>} : vector<128x64xbf16>, vector<64x64xbf16>, vector<128x64xf32> -> vector<128x64xf32>
    %111 = arith.truncf %110 : vector<128x64xf32> to vector<128x64xbf16>
    %cst_84 = arith.constant dense<0.000000e+00> : vector<128x64xf32>
    %112 = tpu.matmul %0, %111, %cst_84 {dimension_numbers = #tpu.dot_dimension_numbers<[1], [0], [0], [1], [0, 0, 1, 1], [], []>} : vector<128x128xbf16>, vector<128x64xbf16>, vector<128x64xf32> -> vector<128x64xf32>
    %c6 = arith.constant 6 : index
    %c0_85 = arith.constant 0 : index
    %c0_86 = arith.constant 0 : index
    %113 = vector.load %arg3[%c6, %c0_85, %c0_86] : memref<8x1x64xf32, #tpu.memory_space<vmem>>, vector<1x1x64xf32>
    %114 = vector.shape_cast %113 : vector<1x1x64xf32> to vector<1x64xf32>
    %115 = vector.broadcast %114 : vector<1x64xf32> to vector<128x64xf32>
    %116 = arith.addf %112, %115 : vector<128x64xf32>
    %cst_87 = arith.constant 0.000000e+00 : f32
    %117 = vector.broadcast %cst_87 : f32 to vector<128x64xf32>
    %118 = arith.maximumf %116, %117 : vector<128x64xf32>
    %119 = arith.truncf %118 : vector<128x64xf32> to vector<128x64xbf16>
    %cst_88 = arith.constant dense<0.000000e+00> : vector<3x64xf32>
    %120 = tpu.matmul %1, %119, %cst_88 {dimension_numbers = #tpu.dot_dimension_numbers<[1], [0], [0], [1], [0, 0, 1, 1], [], []>} : vector<3x128xbf16>, vector<128x64xbf16>, vector<3x64xf32> -> vector<3x64xf32>
    %121 = arith.truncf %120 : vector<3x64xf32> to vector<3x64xbf16>
    %c6_89 = arith.constant 6 : index
    %c0_90 = arith.constant 0 : index
    %c0_91 = arith.constant 0 : index
    %122 = vector.load %arg5[%c6_89, %c0_90, %c0_91] : memref<8x64x64xbf16, #tpu.memory_space<vmem>>, vector<1x64x64xbf16>
    %123 = vector.shape_cast %122 : vector<1x64x64xbf16> to vector<64x64xbf16>
    %cst_92 = arith.constant dense<0.000000e+00> : vector<3x64xf32>
    %124 = tpu.matmul %121, %123, %cst_92 {dimension_numbers = #tpu.dot_dimension_numbers<[1], [0], [0], [1], [0, 0, 1, 1], [], []>} : vector<3x64xbf16>, vector<64x64xbf16>, vector<3x64xf32> -> vector<3x64xf32>
    %125 = arith.addf %107, %124 : vector<3x64xf32>
    %c6_93 = arith.constant 6 : index
    %c0_94 = arith.constant 0 : index
    %c0_95 = arith.constant 0 : index
    %126 = vector.load %arg2[%c6_93, %c0_94, %c0_95] : memref<7x64x64xbf16, #tpu.memory_space<vmem>>, vector<1x64x64xbf16>
    %127 = vector.shape_cast %126 : vector<1x64x64xbf16> to vector<64x64xbf16>
    %cst_96 = arith.constant dense<0.000000e+00> : vector<128x64xf32>
    %128 = tpu.matmul %119, %127, %cst_96 {dimension_numbers = #tpu.dot_dimension_numbers<[1], [0], [0], [1], [0, 0, 1, 1], [], []>} : vector<128x64xbf16>, vector<64x64xbf16>, vector<128x64xf32> -> vector<128x64xf32>
    %129 = arith.truncf %128 : vector<128x64xf32> to vector<128x64xbf16>
    %cst_97 = arith.constant dense<0.000000e+00> : vector<128x64xf32>
    %130 = tpu.matmul %0, %129, %cst_97 {dimension_numbers = #tpu.dot_dimension_numbers<[1], [0], [0], [1], [0, 0, 1, 1], [], []>} : vector<128x128xbf16>, vector<128x64xbf16>, vector<128x64xf32> -> vector<128x64xf32>
    %c7 = arith.constant 7 : index
    %c0_98 = arith.constant 0 : index
    %c0_99 = arith.constant 0 : index
    %131 = vector.load %arg3[%c7, %c0_98, %c0_99] : memref<8x1x64xf32, #tpu.memory_space<vmem>>, vector<1x1x64xf32>
    %132 = vector.shape_cast %131 : vector<1x1x64xf32> to vector<1x64xf32>
    %133 = vector.broadcast %132 : vector<1x64xf32> to vector<128x64xf32>
    %134 = arith.addf %130, %133 : vector<128x64xf32>
    %cst_100 = arith.constant 0.000000e+00 : f32
    %135 = vector.broadcast %cst_100 : f32 to vector<128x64xf32>
    %136 = arith.maximumf %134, %135 : vector<128x64xf32>
    %137 = arith.truncf %136 : vector<128x64xf32> to vector<128x64xbf16>
    %cst_101 = arith.constant dense<0.000000e+00> : vector<3x64xf32>
    %138 = tpu.matmul %1, %137, %cst_101 {dimension_numbers = #tpu.dot_dimension_numbers<[1], [0], [0], [1], [0, 0, 1, 1], [], []>} : vector<3x128xbf16>, vector<128x64xbf16>, vector<3x64xf32> -> vector<3x64xf32>
    %139 = arith.truncf %138 : vector<3x64xf32> to vector<3x64xbf16>
    %c7_102 = arith.constant 7 : index
    %c0_103 = arith.constant 0 : index
    %c0_104 = arith.constant 0 : index
    %140 = vector.load %arg5[%c7_102, %c0_103, %c0_104] : memref<8x64x64xbf16, #tpu.memory_space<vmem>>, vector<1x64x64xbf16>
    %141 = vector.shape_cast %140 : vector<1x64x64xbf16> to vector<64x64xbf16>
    %cst_105 = arith.constant dense<0.000000e+00> : vector<3x64xf32>
    %142 = tpu.matmul %139, %141, %cst_105 {dimension_numbers = #tpu.dot_dimension_numbers<[1], [0], [0], [1], [0, 0, 1, 1], [], []>} : vector<3x64xbf16>, vector<64x64xbf16>, vector<3x64xf32> -> vector<3x64xf32>
    %143 = arith.addf %125, %142 : vector<3x64xf32>
    %c0_106 = arith.constant 0 : index
    %c0_107 = arith.constant 0 : index
    %144 = vector.load %arg6[%c0_106, %c0_107] : memref<1x64xf32, #tpu.memory_space<vmem>>, vector<1x64xf32>
    %145 = vector.broadcast %144 : vector<1x64xf32> to vector<3x64xf32>
    %146 = arith.addf %143, %145 : vector<3x64xf32>
    %cst_108 = arith.constant 0.000000e+00 : f32
    %147 = vector.broadcast %cst_108 : f32 to vector<3x64xf32>
    %148 = arith.maximumf %146, %147 : vector<3x64xf32>
    %149 = arith.truncf %148 : vector<3x64xf32> to vector<3x64xbf16>
    %c0_109 = arith.constant 0 : index
    %c0_110 = arith.constant 0 : index
    %150 = vector.load %arg7[%c0_109, %c0_110] : memref<64x3xbf16, #tpu.memory_space<vmem>>, vector<64x3xbf16>
    %cst_111 = arith.constant dense<0.000000e+00> : vector<3x3xf32>
    %151 = tpu.matmul %149, %150, %cst_111 {dimension_numbers = #tpu.dot_dimension_numbers<[1], [0], [0], [1], [0, 0, 1, 1], [], []>} : vector<3x64xbf16>, vector<64x3xbf16>, vector<3x3xf32> -> vector<3x3xf32>
    %c0_112 = arith.constant 0 : index
    %c0_113 = arith.constant 0 : index
    %152 = vector.load %arg8[%c0_112, %c0_113] : memref<1x3xf32, #tpu.memory_space<vmem>>, vector<1x3xf32>
    %153 = vector.broadcast %152 : vector<1x3xf32> to vector<3x3xf32>
    %154 = arith.addf %151, %153 : vector<3x3xf32>
    %cst_114 = arith.constant dense<0xFF800000> : vector<3xf32>
    %155 = vector.multi_reduction <maximumf>, %154, %cst_114 [1] : vector<3x3xf32> to vector<3xf32>
    %156 = vector.shape_cast %155 : vector<3xf32> to vector<3x1xf32>
    %157 = vector.broadcast %156 : vector<3x1xf32> to vector<3x3xf32>
    %158 = arith.subf %154, %157 : vector<3x3xf32>
    %159 = math.exp %158 : vector<3x3xf32>
    %cst_115 = arith.constant dense<0.000000e+00> : vector<3xf32>
    %160 = vector.multi_reduction <add>, %159, %cst_115 [1] : vector<3x3xf32> to vector<3xf32>
    %161 = vector.shape_cast %160 : vector<3xf32> to vector<3x1xf32>
    %162 = math.log %161 : vector<3x1xf32>
    %163 = vector.broadcast %162 : vector<3x1xf32> to vector<3x3xf32>
    %164 = arith.subf %158, %163 : vector<3x3xf32>
    %c0_116 = arith.constant 0 : index
    %c0_117 = arith.constant 0 : index
    %165 = vector.load %arg9[%c0_116, %c0_117] : memref<3x3xf32, #tpu.memory_space<vmem>>, vector<3x3xf32>
    tpu.vector_store %arg9[%c0_116, %c0_117], %164 {strides = array<i32>} : memref<3x3xf32, #tpu.memory_space<vmem>>, vector<3x3xf32>,
    return
  }
}

</mosaic_0001>

<llo_original>
// kernel: gcn_with_jk_forward.1
$region0: #{gcn_with_jk_forward.1}
  #allocation0 [shape = 'u32[]', space=smem, size = 0x4, offset = 0x4, fixed_abs, tag = 'smem constant byte address 0x4 - core index']
  #allocation1 [shape = 'u32[144,128]{1,0:T(1,128)}', space=vmem, size = 0x12000, scoped, tag = 'internal scratch']
  %s0 = inlined_call_operand.vmem [shape: bf16[128,128], index: 0, kind: input, shape index: {}]
  %s1 = inlined_call_operand.vmem [shape: bf16[128,64], index: 1, kind: input, shape index: {}]
  %s2 = inlined_call_operand.vmem [shape: bf16[7,64,64], index: 2, kind: input, shape index: {}]
  %s3 = inlined_call_operand.vmem [shape: f32[8,1,64], index: 3, kind: input, shape index: {}]
  %s4 = inlined_call_operand.vmem [shape: bf16[3,128], index: 4, kind: input, shape index: {}]
  %s5 = inlined_call_operand.vmem [shape: bf16[8,64,64], index: 5, kind: input, shape index: {}]
  %s6 = inlined_call_operand.vmem [shape: f32[1,64], index: 6, kind: input, shape index: {}]
  %s7 = inlined_call_operand.vmem [shape: bf16[64,3], index: 7, kind: input, shape index: {}]
  %s8 = inlined_call_operand.vmem [shape: f32[1,3], index: 8, kind: input, shape index: {}]
  %s9 = inlined_call_operand.hbm [shape: f32[3,3], index: 9, kind: output, shape index: {}]
  %s10 = sld [smem:[#allocation0]]
  $region46: #{gcn_with_jk_forward.1} parent=0
    _
  %s12 = ssub.s32 1, %s10
  %s13 = scalar_select 0, %s12, %s10
  $region1: #{gcn_with_jk_forward.1} parent=0
    #allocation2 [shape = 'u8[2048]{0}', space=vmem, size = 0x800, scoped, tag = 'output window, operand 0, single buffered']
    #allocation3 [shape = 's32[1]{0}', space=sflag, size = 0x4, scoped, tag = 'scoped memory for gcn_with_jk_forward.1']
    %14 = vsyncpa [#allocation3], 0
    // Predicated region
    $region2: #{gcn_with_jk_forward.1} parent=1 // pred_check
      _
    $region3: #{gcn_with_jk_forward.1} parent=1 // pred_check_branch
      %16 = sbr.rel (0) target = $region5
    $region4: #{gcn_with_jk_forward.1} parent=1 // pred_region
      _
    $region5: #{gcn_with_jk_forward.1} parent=1 // pred_fallthru
      _
    // Predicated region
    $region6: #{gcn_with_jk_forward.1} parent=1 // pred_check
      _
    $region7: #{gcn_with_jk_forward.1} parent=1 // pred_check_branch
      %18 = sbr.rel (0) target = $region9
    $region8: #{gcn_with_jk_forward.1} parent=1 // pred_region
      _
    $region9: #{gcn_with_jk_forward.1} parent=1 // pred_fallthru
      _
    // Predicated region
    $region10: #{gcn_with_jk_forward.1} parent=1 // pred_check
      _
    $region11: #{gcn_with_jk_forward.1} parent=1 // pred_check_branch
      %20 = sbr.rel (0) target = $region13
    $region12: #{gcn_with_jk_forward.1} parent=1 // pred_region
      _
    $region13: #{gcn_with_jk_forward.1} parent=1 // pred_fallthru
      _
    // Predicated region
    $region14: #{gcn_with_jk_forward.1} parent=1 // pred_check
      _
    $region15: #{gcn_with_jk_forward.1} parent=1 // pred_check_branch
      %22 = sbr.rel (0) target = $region17
    $region16: #{gcn_with_jk_forward.1} parent=1 // pred_region
      _
    $region17: #{gcn_with_jk_forward.1} parent=1 // pred_fallthru
      _
    // Predicated region
    $region18: #{gcn_with_jk_forward.1} parent=1 // pred_check
      _
    $region19: #{gcn_with_jk_forward.1} parent=1 // pred_check_branch
      %24 = sbr.rel (0) target = $region21
    $region20: #{gcn_with_jk_forward.1} parent=1 // pred_region
      _
    $region21: #{gcn_with_jk_forward.1} parent=1 // pred_fallthru
      _
    // Predicated region
    $region22: #{gcn_with_jk_forward.1} parent=1 // pred_check
      _
    $region23: #{gcn_with_jk_forward.1} parent=1 // pred_check_branch
      %26 = sbr.rel (0) target = $region25
    $region24: #{gcn_with_jk_forward.1} parent=1 // pred_region
      _
    $region25: #{gcn_with_jk_forward.1} parent=1 // pred_fallthru
      _
    // Predicated region
    $region26: #{gcn_with_jk_forward.1} parent=1 // pred_check
      _
    $region27: #{gcn_with_jk_forward.1} parent=1 // pred_check_branch
      %28 = sbr.rel (0) target = $region29
    $region28: #{gcn_with_jk_forward.1} parent=1 // pred_region
      _
    $region29: #{gcn_with_jk_forward.1} parent=1 // pred_fallthru
      _
    // Predicated region
    $region30: #{gcn_with_jk_forward.1} parent=1 // pred_check
      _
    $region31: #{gcn_with_jk_forward.1} parent=1 // pred_check_branch
      %30 = sbr.rel (0) target = $region33
    $region32: #{gcn_with_jk_forward.1} parent=1 // pred_region
      _
    $region33: #{gcn_with_jk_forward.1} parent=1 // pred_fallthru
      _
    // Predicated region
    $region34: #{gcn_with_jk_forward.1} parent=1 // pred_check
      _
    $region35: #{gcn_with_jk_forward.1} parent=1 // pred_check_branch
      %32 = sbr.rel (0) target = $region37
    $region36: #{gcn_with_jk_forward.1} parent=1 // pred_region
      _
    $region37: #{gcn_with_jk_forward.1} parent=1 // pred_fallthru
      _
    %v34 = vld [vmem:[%s0] sm:$0xf]
    %v35 = vld [vmem:[%s0 + $0x4] sm:$0xf]
    %v36 = vld [vmem:[%s0 + $0x8] sm:$0xf]
    %v37 = vld [vmem:[%s0 + $0xc] sm:$0xf]
    %v38 = vld [vmem:[%s0 + $0x10] sm:$0xf]
    %v39 = vld [vmem:[%s0 + $0x14] sm:$0xf]
    %v40 = vld [vmem:[%s0 + $0x18] sm:$0xf]
    %v41 = vld [vmem:[%s0 + $0x1c] sm:$0xf]
    %v42 = vld [vmem:[%s0 + $0x20] sm:$0xf]
    %v43 = vld [vmem:[%s0 + $0x24] sm:$0xf]
    %v44 = vld [vmem:[%s0 + $0x28] sm:$0xf]
    %v45 = vld [vmem:[%s0 + $0x2c] sm:$0xf]
    %v46 = vld [vmem:[%s0 + $0x30] sm:$0xf]
    %v47 = vld [vmem:[%s0 + $0x34] sm:$0xf]
    %v48 = vld [vmem:[%s0 + $0x38] sm:$0xf]
    %v49 = vld [vmem:[%s0 + $0x3c] sm:$0xf]
    %v50 = vld [vmem:[%s4] sm:$0x3]
    %v51 = vld [vmem:[%s1] sm:$0xf]
    %v52 = vld [vmem:[%s1 + $0x4] sm:$0xf]
    %v53 = vld [vmem:[%s1 + $0x8] sm:$0xf]
    %v54 = vld [vmem:[%s1 + $0xc] sm:$0xf]
    %v55 = vld [vmem:[%s1 + $0x10] sm:$0xf]
    %v56 = vld [vmem:[%s1 + $0x14] sm:$0xf]
    %v57 = vld [vmem:[%s1 + $0x18] sm:$0xf]
    %v58 = vld [vmem:[%s1 + $0x1c] sm:$0xf]
    %v59 = vld [vmem:[%s1 + $0x20] sm:$0xf]
    %v60 = vld [vmem:[%s1 + $0x24] sm:$0xf]
    %v61 = vld [vmem:[%s1 + $0x28] sm:$0xf]
    %v62 = vld [vmem:[%s1 + $0x2c] sm:$0xf]
    %v63 = vld [vmem:[%s1 + $0x30] sm:$0xf]
    %v64 = vld [vmem:[%s1 + $0x34] sm:$0xf]
    %v65 = vld [vmem:[%s1 + $0x38] sm:$0xf]
    %v66 = vld [vmem:[%s1 + $0x3c] sm:$0xf]
    %v67 = vld [vmem:[%s3] sm:$0x1]
    %v69 = vlaneseq
    %v70 = vshrl.u32 %v69, 7
    %v71 = vsub.s32 0, %v70
    %v72 = vrot.slane %v67, %v71
    %v90 = vunpack.c.l.b16 %v34
    %v91 = vunpack.c.l.b16 %v35
    %v92 = vunpack.c.l.b16 %v36
    %v93 = vunpack.c.l.b16 %v37
    %v94 = vunpack.c.l.b16 %v38
    %v95 = vunpack.c.l.b16 %v39
    %v96 = vunpack.c.l.b16 %v40
    %v97 = vunpack.c.l.b16 %v41
    %v98 = vunpack.c.l.b16 %v42
    %v99 = vunpack.c.l.b16 %v43
    %v100 = vunpack.c.l.b16 %v44
    %v101 = vunpack.c.l.b16 %v45
    %v102 = vunpack.c.l.b16 %v46
    %v103 = vunpack.c.l.b16 %v47
    %v104 = vunpack.c.l.b16 %v48
    %v105 = vunpack.c.l.b16 %v49
    %v106 = vpack.c.b16 %v91, %v90
    %v107 = vpack.c.b16 %v93, %v92
    %v108 = vpack.c.b16 %v95, %v94
    %v109 = vpack.c.b16 %v97, %v96
    %v110 = vpack.c.b16 %v99, %v98
    %v111 = vpack.c.b16 %v101, %v100
    %v112 = vpack.c.b16 %v103, %v102
    %v113 = vpack.c.b16 %v105, %v104
    %v138 = vunpack.c.l.b16 %v51
    %v139 = vunpack.c.l.b16 %v52
    %v140 = vunpack.c.l.b16 %v53
    %v141 = vunpack.c.l.b16 %v54
    %v142 = vunpack.c.l.b16 %v55
    %v143 = vunpack.c.l.b16 %v56
    %v144 = vunpack.c.l.b16 %v57
    %v145 = vunpack.c.l.b16 %v58
    %v146 = vunpack.c.l.b16 %v59
    %v147 = vunpack.c.l.b16 %v60
    %v148 = vunpack.c.l.b16 %v61
    %v149 = vunpack.c.l.b16 %v62
    %v150 = vunpack.c.l.b16 %v63
    %v151 = vunpack.c.l.b16 %v64
    %v152 = vunpack.c.l.b16 %v65
    %v153 = vunpack.c.l.b16 %v66
    %v154 = vpack.c.b16 %v139, %v138
    %v155 = vpack.c.b16 %v141, %v140
    %v156 = vpack.c.b16 %v143, %v142
    %v157 = vpack.c.b16 %v145, %v144
    %v158 = vpack.c.b16 %v147, %v146
    %v159 = vpack.c.b16 %v149, %v148
    %v160 = vpack.c.b16 %v151, %v150
    %v161 = vpack.c.b16 %v153, %v152
    %170 = vmatprep.subr.bf16.mxu0 0
    %171 = vmatpush1.bf16.msra.mxu0 %v161
    %172 = vmatprep.subr.bf16.mxu0 0
    %173 = vmatpush1.bf16.msra.mxu0 %v160
    %174 = vmatprep.subr.bf16.mxu0 0
    %175 = vmatpush1.bf16.msra.mxu0 %v159
    %176 = vmatprep.subr.bf16.mxu0 0
    %177 = vmatpush1.bf16.msra.mxu0 %v158
    %178 = vmatprep.subr.bf16.mxu0 0
    %179 = vmatpush1.bf16.msra.mxu0 %v157
    %180 = vmatprep.subr.bf16.mxu0 0
    %181 = vmatpush1.bf16.msra.mxu0 %v156
    %182 = vmatprep.subr.bf16.mxu0 0
    %183 = vmatpush1.bf16.msra.mxu0 %v155
    %184 = vmatprep.subr.bf16.mxu0 0
    %185 = vmatpush1.bf16.msra.mxu0 %v154
    %186 = vmatprep.subr.bf16.mxu0 0
    %187 = vmatpush2.bf16.msra.mxu0 0
    %188 = vmatprep.subr.bf16.mxu0 0
    %189 = vmatpush2.bf16.msra.mxu0 0
    %190 = vmatprep.subr.bf16.mxu0 0
    %191 = vmatpush2.bf16.msra.mxu0 0
    %192 = vmatprep.subr.bf16.mxu0 0
    %193 = vmatpush2.bf16.msra.mxu0 0
    %194 = vmatprep.subr.bf16.mxu0 0
    %195 = vmatpush2.bf16.msra.mxu0 0
    %196 = vmatprep.subr.bf16.mxu0 0
    %197 = vmatpush2.bf16.msra.mxu0 0
    %198 = vmatprep.subr.bf16.mxu0 0
    %199 = vmatpush2.bf16.msra.mxu0 0
    %200 = vmatprep.subr.bf16.mxu0 0
    %201 = vmatpush2.bf16.msra.mxu0 0
    %202 = vmatprep.mubr.bf16.mxu0 0
    %203 = vmatmul.mubr.bf16.gmra.mxu0 %v106
    %v204 = vpop.f32.mrf.mxu0
    %v205 = vadd.f32 %v72, %v204
    %v206 = vpop.f32.mrf.mxu0
    %v207 = vpop.f32.mrf.mxu0
    %v208 = vadd.f32 %v72, %v207
    %v209 = vpop.f32.mrf.mxu0
    %210 = vmatprep.mubr.bf16.mxu0 0
    %211 = vmatmul.mubr.bf16.gmra.mxu0 %v107
    %v212 = vpop.f32.mrf.mxu0
    %v213 = vadd.f32 %v72, %v212
    %v214 = vpop.f32.mrf.mxu0
    %v215 = vpop.f32.mrf.mxu0
    %v216 = vadd.f32 %v72, %v215
    %v217 = vpop.f32.mrf.mxu0
    %218 = vmatprep.mubr.bf16.mxu0 0
    %219 = vmatmul.mubr.bf16.gmra.mxu0 %v108
    %v220 = vpop.f32.mrf.mxu0
    %v221 = vadd.f32 %v72, %v220
    %v222 = vpop.f32.mrf.mxu0
    %v223 = vpop.f32.mrf.mxu0
    %v224 = vadd.f32 %v72, %v223
    %v225 = vpop.f32.mrf.mxu0
    %226 = vmatprep.mubr.bf16.mxu0 0
    %227 = vmatmul.mubr.bf16.gmra.mxu0 %v109
    %v228 = vpop.f32.mrf.mxu0
    %v229 = vadd.f32 %v72, %v228
    %v230 = vpop.f32.mrf.mxu0
    %v231 = vpop.f32.mrf.mxu0
    %v232 = vadd.f32 %v72, %v231
    %v233 = vpop.f32.mrf.mxu0
    %234 = vmatprep.mubr.bf16.mxu0 0
    %235 = vmatmul.mubr.bf16.gmra.mxu0 %v110
    %v236 = vpop.f32.mrf.mxu0
    %v237 = vadd.f32 %v72, %v236
    %v238 = vpop.f32.mrf.mxu0
    %v239 = vpop.f32.mrf.mxu0
    %v240 = vadd.f32 %v72, %v239
    %v241 = vpop.f32.mrf.mxu0
    %242 = vmatprep.mubr.bf16.mxu0 0
    %243 = vmatmul.mubr.bf16.gmra.mxu0 %v111
    %v244 = vpop.f32.mrf.mxu0
    %v245 = vadd.f32 %v72, %v244
    %v246 = vpop.f32.mrf.mxu0
    %v247 = vpop.f32.mrf.mxu0
    %v248 = vadd.f32 %v72, %v247
    %v249 = vpop.f32.mrf.mxu0
    %250 = vmatprep.mubr.bf16.mxu0 0
    %251 = vmatmul.mubr.bf16.gmra.mxu0 %v112
    %v252 = vpop.f32.mrf.mxu0
    %v253 = vadd.f32 %v72, %v252
    %v254 = vpop.f32.mrf.mxu0
    %v255 = vpop.f32.mrf.mxu0
    %v256 = vadd.f32 %v72, %v255
    %v257 = vpop.f32.mrf.mxu0
    %258 = vmatprep.mubr.bf16.mxu0 0
    %259 = vmatmul.mubr.bf16.gmra.mxu0 %v113
    %v260 = vpop.f32.mrf.mxu0
    %v261 = vadd.f32 %v72, %v260
    %v262 = vpop.f32.mrf.mxu0
    %v263 = vpop.f32.mrf.mxu0
    %v264 = vadd.f32 %v72, %v263
    %v265 = vpop.f32.mrf.mxu0
    %266 = vdwg.mxu0
    %v267 = vmax.f32 %v205, 0.0
    %v268 = vmax.f32 %v208, 0.0
    %v269 = vmax.f32 %v213, 0.0
    %v270 = vmax.f32 %v216, 0.0
    %v271 = vmax.f32 %v221, 0.0
    %v272 = vmax.f32 %v224, 0.0
    %v273 = vmax.f32 %v229, 0.0
    %v274 = vmax.f32 %v232, 0.0
    %v275 = vmax.f32 %v237, 0.0
    %v276 = vmax.f32 %v240, 0.0
    %v277 = vmax.f32 %v245, 0.0
    %v278 = vmax.f32 %v248, 0.0
    %v279 = vmax.f32 %v253, 0.0
    %v280 = vmax.f32 %v256, 0.0
    %v281 = vmax.f32 %v261, 0.0
    %v282 = vmax.f32 %v264, 0.0
    %v283 = vpack.c.bf16 %v268, %v267
    %v284 = vpack.c.bf16 %v270, %v269
    %v285 = vpack.c.bf16 %v272, %v271
    %v286 = vpack.c.bf16 %v274, %v273
    %v287 = vpack.c.bf16 %v276, %v275
    %v288 = vpack.c.bf16 %v278, %v277
    %v289 = vpack.c.bf16 %v280, %v279
    %v290 = vpack.c.bf16 %v282, %v281
    %291 = vmatprep.subr.bf16.mxu0 0
    %292 = vmatpush1.bf16.msra.mxu0 %v290
    %293 = vmatprep.subr.bf16.mxu0 0
    %294 = vmatpush1.bf16.msra.mxu0 %v289
    %295 = vmatprep.subr.bf16.mxu0 0
    %296 = vmatpush1.bf16.msra.mxu0 %v288
    %297 = vmatprep.subr.bf16.mxu0 0
    %298 = vmatpush1.bf16.msra.mxu0 %v287
    %299 = vmatprep.subr.bf16.mxu0 0
    %300 = vmatpush1.bf16.msra.mxu0 %v286
    %301 = vmatprep.subr.bf16.mxu0 0
    %302 = vmatpush1.bf16.msra.mxu0 %v285
    %303 = vmatprep.subr.bf16.mxu0 0
    %304 = vmatpush1.bf16.msra.mxu0 %v284
    %305 = vmatprep.subr.bf16.mxu0 0
    %306 = vmatpush1.bf16.msra.mxu0 %v283
    %307 = vmatprep.subr.bf16.mxu0 0
    %308 = vmatpush2.bf16.msra.mxu0 0
    %309 = vmatprep.subr.bf16.mxu0 0
    %310 = vmatpush2.bf16.msra.mxu0 0
    %311 = vmatprep.subr.bf16.mxu0 0
    %312 = vmatpush2.bf16.msra.mxu0 0
    %313 = vmatprep.subr.bf16.mxu0 0
    %314 = vmatpush2.bf16.msra.mxu0 0
    %315 = vmatprep.subr.bf16.mxu0 0
    %316 = vmatpush2.bf16.msra.mxu0 0
    %317 = vmatprep.subr.bf16.mxu0 0
    %318 = vmatpush2.bf16.msra.mxu0 0
    %319 = vmatprep.subr.bf16.mxu0 0
    %320 = vmatpush2.bf16.msra.mxu0 0
    %321 = vmatprep.subr.bf16.mxu0 0
    %322 = vmatpush2.bf16.msra.mxu0 0
    %323 = vmatprep.mubr.bf16.mxu0 0
    %324 = vmatmul.mubr.bf16.gmra.mxu0 %v50
    %v325 = vpop.f32.mrf.mxu0
    %v326 = vadd.f32 0.0, %v325
    %v327 = vpop.f32.mrf.mxu0
    %v328 = vpop.f32.mrf.mxu0
    %v329 = vpop.f32.mrf.mxu0
    %330 = vdwg.mxu0
    %v331 = vpack.c.bf16 %v326, %v326
    %v332 = vld [vmem:[%s5] sm:$0xf]
    %v333 = vld [vmem:[%s5 + $0x4] sm:$0xf]
    %v334 = vld [vmem:[%s5 + $0x8] sm:$0xf]
    %v335 = vld [vmem:[%s5 + $0xc] sm:$0xf]
    %v336 = vld [vmem:[%s5 + $0x10] sm:$0xf]
    %v337 = vld [vmem:[%s5 + $0x14] sm:$0xf]
    %v338 = vld [vmem:[%s5 + $0x18] sm:$0xf]
    %v339 = vld [vmem:[%s5 + $0x1c] sm:$0xf]
    %v340 = vld [vmem:[%s2] sm:$0xf]
    %v341 = vld [vmem:[%s2 + $0x4] sm:$0xf]
    %v342 = vld [vmem:[%s2 + $0x8] sm:$0xf]
    %v343 = vld [vmem:[%s2 + $0xc] sm:$0xf]
    %v344 = vld [vmem:[%s2 + $0x10] sm:$0xf]
    %v345 = vld [vmem:[%s2 + $0x14] sm:$0xf]
    %v346 = vld [vmem:[%s2 + $0x18] sm:$0xf]
    %v347 = vld [vmem:[%s2 + $0x1c] sm:$0xf]
    %v356 = vunpack.c.l.b16 %v340
    %v357 = vunpack.c.l.b16 %v341
    %v358 = vunpack.c.l.b16 %v342
    %v359 = vunpack.c.l.b16 %v343
    %v360 = vunpack.c.l.b16 %v344
    %v361 = vunpack.c.l.b16 %v345
    %v362 = vunpack.c.l.b16 %v346
    %v363 = vunpack.c.l.b16 %v347
    %v364 = vpack.c.b16 %v357, %v356
    %v365 = vpack.c.b16 %v359, %v358
    %v366 = vpack.c.b16 %v361, %v360
    %v367 = vpack.c.b16 %v363, %v362
    %vm372 = vcmask 523264
    %v374 = vsel %vm372, %v283, 0
    %v377 = vsel %vm372, %v284, 0
    %v380 = vsel %vm372, %v285, 0
    %v383 = vsel %vm372, %v286, 0
    %v386 = vsel %vm372, %v287, 0
    %v389 = vsel %vm372, %v288, 0
    %v392 = vsel %vm372, %v289, 0
    %v395 = vsel %vm372, %v290, 0
    %397 = vmatprep.subr.bf16.mxu0 0
    %398 = vmatpush1.bf16.msra.mxu0 0
    %399 = vmatprep.subr.bf16.mxu0 0
    %400 = vmatpush1.bf16.msra.mxu0 0
    %401 = vmatprep.subr.bf16.mxu0 0
    %402 = vmatpush1.bf16.msra.mxu0 0
    %403 = vmatprep.subr.bf16.mxu0 0
    %404 = vmatpush1.bf16.msra.mxu0 0
    %405 = vmatprep.subr.bf16.mxu0 0
    %406 = vmatpush1.bf16.msra.mxu0 %v367
    %407 = vmatprep.subr.bf16.mxu0 0
    %408 = vmatpush1.bf16.msra.mxu0 %v366
    %409 = vmatprep.subr.bf16.mxu0 0
    %410 = vmatpush1.bf16.msra.mxu0 %v365
    %411 = vmatprep.subr.bf16.mxu0 0
    %412 = vmatpush1.bf16.msra.mxu0 %v364
    %413 = vmatprep.subr.bf16.mxu0 0
    %414 = vmatpush2.bf16.msra.mxu0 0
    %415 = vmatprep.subr.bf16.mxu0 0
    %416 = vmatpush2.bf16.msra.mxu0 0
    %417 = vmatprep.subr.bf16.mxu0 0
    %418 = vmatpush2.bf16.msra.mxu0 0
    %419 = vmatprep.subr.bf16.mxu0 0
    %420 = vmatpush2.bf16.msra.mxu0 0
    %421 = vmatprep.subr.bf16.mxu0 0
    %422 = vmatpush2.bf16.msra.mxu0 0
    %423 = vmatprep.subr.bf16.mxu0 0
    %424 = vmatpush2.bf16.msra.mxu0 0
    %425 = vmatprep.subr.bf16.mxu0 0
    %426 = vmatpush2.bf16.msra.mxu0 0
    %427 = vmatprep.subr.bf16.mxu0 0
    %428 = vmatpush2.bf16.msra.mxu0 0
    %429 = vmatprep.mubr.bf16.mxu0 0
    %430 = vmatmul.mubr.bf16.gmra.mxu0 %v374
    %v431 = vpop.f32.mrf.mxu0
    %v432 = vadd.f32 0.0, %v431
    %v433 = vpop.f32.mrf.mxu0
    %v434 = vpop.f32.mrf.mxu0
    %v435 = vadd.f32 0.0, %v434
    %v436 = vpop.f32.mrf.mxu0
    %437 = vmatprep.mubr.bf16.mxu0 0
    %438 = vmatmul.mubr.bf16.gmra.mxu0 %v377
    %v439 = vpop.f32.mrf.mxu0
    %v440 = vadd.f32 0.0, %v439
    %v441 = vpop.f32.mrf.mxu0
    %v442 = vpop.f32.mrf.mxu0
    %v443 = vadd.f32 0.0, %v442
    %v444 = vpop.f32.mrf.mxu0
    %445 = vmatprep.mubr.bf16.mxu0 0
    %446 = vmatmul.mubr.bf16.gmra.mxu0 %v380
    %v447 = vpop.f32.mrf.mxu0
    %v448 = vadd.f32 0.0, %v447
    %v449 = vpop.f32.mrf.mxu0
    %v450 = vpop.f32.mrf.mxu0
    %v451 = vadd.f32 0.0, %v450
    %v452 = vpop.f32.mrf.mxu0
    %453 = vmatprep.mubr.bf16.mxu0 0
    %454 = vmatmul.mubr.bf16.gmra.mxu0 %v383
    %v455 = vpop.f32.mrf.mxu0
    %v456 = vadd.f32 0.0, %v455
    %v457 = vpop.f32.mrf.mxu0
    %v458 = vpop.f32.mrf.mxu0
    %v459 = vadd.f32 0.0, %v458
    %v460 = vpop.f32.mrf.mxu0
    %461 = vmatprep.mubr.bf16.mxu0 0
    %462 = vmatmul.mubr.bf16.gmra.mxu0 %v386
    %v463 = vpop.f32.mrf.mxu0
    %v464 = vadd.f32 0.0, %v463
    %v465 = vpop.f32.mrf.mxu0
    %v466 = vpop.f32.mrf.mxu0
    %v467 = vadd.f32 0.0, %v466
    %v468 = vpop.f32.mrf.mxu0
    %469 = vmatprep.mubr.bf16.mxu0 0
    %470 = vmatmul.mubr.bf16.gmra.mxu0 %v389
    %v471 = vpop.f32.mrf.mxu0
    %v472 = vadd.f32 0.0, %v471
    %v473 = vpop.f32.mrf.mxu0
    %v474 = vpop.f32.mrf.mxu0
    %v475 = vadd.f32 0.0, %v474
    %v476 = vpop.f32.mrf.mxu0
    %477 = vmatprep.mubr.bf16.mxu0 0
    %478 = vmatmul.mubr.bf16.gmra.mxu0 %v392
    %v479 = vpop.f32.mrf.mxu0
    %v480 = vadd.f32 0.0, %v479
    %v481 = vpop.f32.mrf.mxu0
    %v482 = vpop.f32.mrf.mxu0
    %v483 = vadd.f32 0.0, %v482
    %v484 = vpop.f32.mrf.mxu0
    %485 = vmatprep.mubr.bf16.mxu0 0
    %486 = vmatmul.mubr.bf16.gmra.mxu0 %v395
    %v487 = vpop.f32.mrf.mxu0
    %v488 = vadd.f32 0.0, %v487
    %v489 = vpop.f32.mrf.mxu0
    %v490 = vpop.f32.mrf.mxu0
    %v491 = vadd.f32 0.0, %v490
    %v492 = vpop.f32.mrf.mxu0
    %493 = vdwg.mxu0
    %v494 = vpack.c.bf16 %v435, %v432
    %v495 = vpack.c.bf16 %v443, %v440
    %v496 = vpack.c.bf16 %v451, %v448
    %v497 = vpack.c.bf16 %v459, %v456
    %v498 = vpack.c.bf16 %v467, %v464
    %v499 = vpack.c.bf16 %v475, %v472
    %v500 = vpack.c.bf16 %v483, %v480
    %v501 = vpack.c.bf16 %v491, %v488
    %s502 = scalar_lea.vmem %s3, 1
    %v503 = vld [vmem:[%s502] sm:$0x1]
    %v505 = vlaneseq
    %v506 = vshrl.u32 %v505, 7
    %v507 = vsub.s32 0, %v506
    %v508 = vrot.slane %v503, %v507
    %510 = vmatprep.subr.bf16.mxu0 0
    %511 = vmatpush1.bf16.msra.mxu0 %v501
    %512 = vmatprep.subr.bf16.mxu0 0
    %513 = vmatpush1.bf16.msra.mxu0 %v500
    %514 = vmatprep.subr.bf16.mxu0 0
    %515 = vmatpush1.bf16.msra.mxu0 %v499
    %516 = vmatprep.subr.bf16.mxu0 0
    %517 = vmatpush1.bf16.msra.mxu0 %v498
    %518 = vmatprep.subr.bf16.mxu0 0
    %519 = vmatpush1.bf16.msra.mxu0 %v497
    %520 = vmatprep.subr.bf16.mxu0 0
    %521 = vmatpush1.bf16.msra.mxu0 %v496
    %522 = vmatprep.subr.bf16.mxu0 0
    %523 = vmatpush1.bf16.msra.mxu0 %v495
    %524 = vmatprep.subr.bf16.mxu0 0
    %525 = vmatpush1.bf16.msra.mxu0 %v494
    %526 = vmatprep.subr.bf16.mxu0 0
    %527 = vmatpush2.bf16.msra.mxu0 0
    %528 = vmatprep.subr.bf16.mxu0 0
    %529 = vmatpush2.bf16.msra.mxu0 0
    %530 = vmatprep.subr.bf16.mxu0 0
    %531 = vmatpush2.bf16.msra.mxu0 0
    %532 = vmatprep.subr.bf16.mxu0 0
    %533 = vmatpush2.bf16.msra.mxu0 0
    %534 = vmatprep.subr.bf16.mxu0 0
    %535 = vmatpush2.bf16.msra.mxu0 0
    %536 = vmatprep.subr.bf16.mxu0 0
    %537 = vmatpush2.bf16.msra.mxu0 0
    %538 = vmatprep.subr.bf16.mxu0 0
    %539 = vmatpush2.bf16.msra.mxu0 0
    %540 = vmatprep.subr.bf16.mxu0 0
    %541 = vmatpush2.bf16.msra.mxu0 0
    %542 = vmatprep.mubr.bf16.mxu0 0
    %543 = vmatmul.mubr.bf16.gmra.mxu0 %v106
    %v544 = vpop.f32.mrf.mxu0
    %v545 = vadd.f32 %v508, %v544
    %v546 = vpop.f32.mrf.mxu0
    %v547 = vpop.f32.mrf.mxu0
    %v548 = vadd.f32 %v508, %v547
    %v549 = vpop.f32.mrf.mxu0
    %550 = vmatprep.mubr.bf16.mxu0 0
    %551 = vmatmul.mubr.bf16.gmra.mxu0 %v107
    %v552 = vpop.f32.mrf.mxu0
    %v553 = vadd.f32 %v508, %v552
    %v554 = vpop.f32.mrf.mxu0
    %v555 = vpop.f32.mrf.mxu0
    %v556 = vadd.f32 %v508, %v555
    %v557 = vpop.f32.mrf.mxu0
    %558 = vmatprep.mubr.bf16.mxu0 0
    %559 = vmatmul.mubr.bf16.gmra.mxu0 %v108
    %v560 = vpop.f32.mrf.mxu0
    %v561 = vadd.f32 %v508, %v560
    %v562 = vpop.f32.mrf.mxu0
    %v563 = vpop.f32.mrf.mxu0
    %v564 = vadd.f32 %v508, %v563
    %v565 = vpop.f32.mrf.mxu0
    %566 = vmatprep.mubr.bf16.mxu0 0
    %567 = vmatmul.mubr.bf16.gmra.mxu0 %v109
    %v568 = vpop.f32.mrf.mxu0
    %v569 = vadd.f32 %v508, %v568
    %v570 = vpop.f32.mrf.mxu0
    %v571 = vpop.f32.mrf.mxu0
    %v572 = vadd.f32 %v508, %v571
    %v573 = vpop.f32.mrf.mxu0
    %574 = vmatprep.mubr.bf16.mxu0 0
    %575 = vmatmul.mubr.bf16.gmra.mxu0 %v110
    %v576 = vpop.f32.mrf.mxu0
    %v577 = vadd.f32 %v508, %v576
    %v578 = vpop.f32.mrf.mxu0
    %v579 = vpop.f32.mrf.mxu0
    %v580 = vadd.f32 %v508, %v579
    %v581 = vpop.f32.mrf.mxu0
    %582 = vmatprep.mubr.bf16.mxu0 0
    %583 = vmatmul.mubr.bf16.gmra.mxu0 %v111
    %v584 = vpop.f32.mrf.mxu0
    %v585 = vadd.f32 %v508, %v584
    %v586 = vpop.f32.mrf.mxu0
    %v587 = vpop.f32.mrf.mxu0
    %v588 = vadd.f32 %v508, %v587
    %v589 = vpop.f32.mrf.mxu0
    %590 = vmatprep.mubr.bf16.mxu0 0
    %591 = vmatmul.mubr.bf16.gmra.mxu0 %v112
    %v592 = vpop.f32.mrf.mxu0
    %v593 = vadd.f32 %v508, %v592
    %v594 = vpop.f32.mrf.mxu0
    %v595 = vpop.f32.mrf.mxu0
    %v596 = vadd.f32 %v508, %v595
    %v597 = vpop.f32.mrf.mxu0
    %598 = vmatprep.mubr.bf16.mxu0 0
    %599 = vmatmul.mubr.bf16.gmra.mxu0 %v113
    %v600 = vpop.f32.mrf.mxu0
    %v601 = vadd.f32 %v508, %v600
    %v602 = vpop.f32.mrf.mxu0
    %v603 = vpop.f32.mrf.mxu0
    %v604 = vadd.f32 %v508, %v603
    %v605 = vpop.f32.mrf.mxu0
    %606 = vdwg.mxu0
    %v607 = vmax.f32 %v545, 0.0
    %v608 = vmax.f32 %v548, 0.0
    %v609 = vmax.f32 %v553, 0.0
    %v610 = vmax.f32 %v556, 0.0
    %v611 = vmax.f32 %v561, 0.0
    %v612 = vmax.f32 %v564, 0.0
    %v613 = vmax.f32 %v569, 0.0
    %v614 = vmax.f32 %v572, 0.0
    %v615 = vmax.f32 %v577, 0.0
    %v616 = vmax.f32 %v580, 0.0
    %v617 = vmax.f32 %v585, 0.0
    %v618 = vmax.f32 %v588, 0.0
    %v619 = vmax.f32 %v593, 0.0
    %v620 = vmax.f32 %v596, 0.0
    %v621 = vmax.f32 %v601, 0.0
    %v622 = vmax.f32 %v604, 0.0
    %v623 = vpack.c.bf16 %v608, %v607
    %v624 = vpack.c.bf16 %v610, %v609
    %v625 = vpack.c.bf16 %v612, %v611
    %v626 = vpack.c.bf16 %v614, %v613
    %v627 = vpack.c.bf16 %v616, %v615
    %v628 = vpack.c.bf16 %v618, %v617
    %v629 = vpack.c.bf16 %v620, %v619
    %v630 = vpack.c.bf16 %v622, %v621
    %631 = vmatprep.subr.bf16.mxu0 0
    %632 = vmatpush1.bf16.msra.mxu0 %v630
    %633 = vmatprep.subr.bf16.mxu0 0
    %634 = vmatpush1.bf16.msra.mxu0 %v629
    %635 = vmatprep.subr.bf16.mxu0 0
    %636 = vmatpush1.bf16.msra.mxu0 %v628
    %637 = vmatprep.subr.bf16.mxu0 0
    %638 = vmatpush1.bf16.msra.mxu0 %v627
    %639 = vmatprep.subr.bf16.mxu0 0
    %640 = vmatpush1.bf16.msra.mxu0 %v626
    %641 = vmatprep.subr.bf16.mxu0 0
    %642 = vmatpush1.bf16.msra.mxu0 %v625
    %643 = vmatprep.subr.bf16.mxu0 0
    %644 = vmatpush1.bf16.msra.mxu0 %v624
    %645 = vmatprep.subr.bf16.mxu0 0
    %646 = vmatpush1.bf16.msra.mxu0 %v623
    %647 = vmatprep.subr.bf16.mxu0 0
    %648 = vmatpush2.bf16.msra.mxu0 0
    %649 = vmatprep.subr.bf16.mxu0 0
    %650 = vmatpush2.bf16.msra.mxu0 0
    %651 = vmatprep.subr.bf16.mxu0 0
    %652 = vmatpush2.bf16.msra.mxu0 0
    %653 = vmatprep.subr.bf16.mxu0 0
    %654 = vmatpush2.bf16.msra.mxu0 0
    %655 = vmatprep.subr.bf16.mxu0 0
    %656 = vmatpush2.bf16.msra.mxu0 0
    %657 = vmatprep.subr.bf16.mxu0 0
    %658 = vmatpush2.bf16.msra.mxu0 0
    %659 = vmatprep.subr.bf16.mxu0 0
    %660 = vmatpush2.bf16.msra.mxu0 0
    %661 = vmatprep.subr.bf16.mxu0 0
    %662 = vmatpush2.bf16.msra.mxu0 0
    %663 = vmatprep.mubr.bf16.mxu0 0
    %664 = vmatmul.mubr.bf16.gmra.mxu0 %v50
    %v665 = vpop.f32.mrf.mxu0
    %v666 = vadd.f32 0.0, %v665
    %v667 = vpop.f32.mrf.mxu0
    %v668 = vpop.f32.mrf.mxu0
    %v669 = vpop.f32.mrf.mxu0
    %670 = vdwg.mxu0
    %v671 = vpack.c.bf16 %v666, %v666
    %s672 = scalar_lea.vmem %s5, 32
    %v673 = vld [vmem:[%s672] sm:$0xf]
    %v674 = vld [vmem:[%s672 + $0x4] sm:$0xf]
    %v675 = vld [vmem:[%s672 + $0x8] sm:$0xf]
    %v676 = vld [vmem:[%s672 + $0xc] sm:$0xf]
    %v677 = vld [vmem:[%s672 + $0x10] sm:$0xf]
    %v678 = vld [vmem:[%s672 + $0x14] sm:$0xf]
    %v679 = vld [vmem:[%s672 + $0x18] sm:$0xf]
    %v680 = vld [vmem:[%s672 + $0x1c] sm:$0xf]
    %v689 = vunpack.c.l.b16 %v673
    %v690 = vunpack.c.l.b16 %v674
    %v691 = vunpack.c.l.b16 %v675
    %v692 = vunpack.c.l.b16 %v676
    %v693 = vunpack.c.l.b16 %v677
    %v694 = vunpack.c.l.b16 %v678
    %v695 = vunpack.c.l.b16 %v679
    %v696 = vunpack.c.l.b16 %v680
    %v697 = vpack.c.b16 %v690, %v689
    %v698 = vpack.c.b16 %v692, %v691
    %v699 = vpack.c.b16 %v694, %v693
    %v700 = vpack.c.b16 %v696, %v695
    %v706 = vsel %vm372, %v671, 0
    %708 = vmatprep.subr.bf16.mxu0 0
    %709 = vmatpush1.bf16.msra.mxu0 0
    %710 = vmatprep.subr.bf16.mxu0 0
    %711 = vmatpush1.bf16.msra.mxu0 0
    %712 = vmatprep.subr.bf16.mxu0 0
    %713 = vmatpush1.bf16.msra.mxu0 0
    %714 = vmatprep.subr.bf16.mxu0 0
    %715 = vmatpush1.bf16.msra.mxu0 0
    %716 = vmatprep.subr.bf16.mxu0 0
    %717 = vmatpush1.bf16.msra.mxu0 %v700
    %718 = vmatprep.subr.bf16.mxu0 0
    %719 = vmatpush1.bf16.msra.mxu0 %v699
    %720 = vmatprep.subr.bf16.mxu0 0
    %721 = vmatpush1.bf16.msra.mxu0 %v698
    %722 = vmatprep.subr.bf16.mxu0 0
    %723 = vmatpush1.bf16.msra.mxu0 %v697
    %724 = vmatprep.subr.bf16.mxu0 0
    %725 = vmatpush2.bf16.msra.mxu0 0
    %726 = vmatprep.subr.bf16.mxu0 0
    %727 = vmatpush2.bf16.msra.mxu0 0
    %728 = vmatprep.subr.bf16.mxu0 0
    %729 = vmatpush2.bf16.msra.mxu0 0
    %730 = vmatprep.subr.bf16.mxu0 0
    %731 = vmatpush2.bf16.msra.mxu0 0
    %732 = vmatprep.subr.bf16.mxu0 0
    %733 = vmatpush2.bf16.msra.mxu0 0
    %734 = vmatprep.subr.bf16.mxu0 0
    %735 = vmatpush2.bf16.msra.mxu0 0
    %736 = vmatprep.subr.bf16.mxu0 0
    %737 = vmatpush2.bf16.msra.mxu0 0
    %738 = vmatprep.subr.bf16.mxu0 0
    %739 = vmatpush2.bf16.msra.mxu0 0
    %740 = vmatprep.mubr.bf16.mxu0 0
    %741 = vmatmul.mubr.bf16.gmra.mxu0 %v706
    %v742 = vpop.f32.mrf.mxu0
    %v743 = vadd.f32 0.0, %v742
    %v744 = vpop.f32.mrf.mxu0
    %v745 = vpop.f32.mrf.mxu0
    %v746 = vpop.f32.mrf.mxu0
    %747 = vdwg.mxu0
    %v756 = vunpack.c.l.b16 %v332
    %v757 = vunpack.c.l.b16 %v333
    %v758 = vunpack.c.l.b16 %v334
    %v759 = vunpack.c.l.b16 %v335
    %v760 = vunpack.c.l.b16 %v336
    %v761 = vunpack.c.l.b16 %v337
    %v762 = vunpack.c.l.b16 %v338
    %v763 = vunpack.c.l.b16 %v339
    %v764 = vpack.c.b16 %v757, %v756
    %v765 = vpack.c.b16 %v759, %v758
    %v766 = vpack.c.b16 %v761, %v760
    %v767 = vpack.c.b16 %v763, %v762
    %v773 = vsel %vm372, %v331, 0
    %775 = vmatprep.subr.bf16.mxu0 0
    %776 = vmatpush1.bf16.msra.mxu0 0
    %777 = vmatprep.subr.bf16.mxu0 0
    %778 = vmatpush1.bf16.msra.mxu0 0
    %779 = vmatprep.subr.bf16.mxu0 0
    %780 = vmatpush1.bf16.msra.mxu0 0
    %781 = vmatprep.subr.bf16.mxu0 0
    %782 = vmatpush1.bf16.msra.mxu0 0
    %783 = vmatprep.subr.bf16.mxu0 0
    %784 = vmatpush1.bf16.msra.mxu0 %v767
    %785 = vmatprep.subr.bf16.mxu0 0
    %786 = vmatpush1.bf16.msra.mxu0 %v766
    %787 = vmatprep.subr.bf16.mxu0 0
    %788 = vmatpush1.bf16.msra.mxu0 %v765
    %789 = vmatprep.subr.bf16.mxu0 0
    %790 = vmatpush1.bf16.msra.mxu0 %v764
    %791 = vmatprep.subr.bf16.mxu0 0
    %792 = vmatpush2.bf16.msra.mxu0 0
    %793 = vmatprep.subr.bf16.mxu0 0
    %794 = vmatpush2.bf16.msra.mxu0 0
    %795 = vmatprep.subr.bf16.mxu0 0
    %796 = vmatpush2.bf16.msra.mxu0 0
    %797 = vmatprep.subr.bf16.mxu0 0
    %798 = vmatpush2.bf16.msra.mxu0 0
    %799 = vmatprep.subr.bf16.mxu0 0
    %800 = vmatpush2.bf16.msra.mxu0 0
    %801 = vmatprep.subr.bf16.mxu0 0
    %802 = vmatpush2.bf16.msra.mxu0 0
    %803 = vmatprep.subr.bf16.mxu0 0
    %804 = vmatpush2.bf16.msra.mxu0 0
    %805 = vmatprep.subr.bf16.mxu0 0
    %806 = vmatpush2.bf16.msra.mxu0 0
    %807 = vmatprep.mubr.bf16.mxu0 0
    %808 = vmatmul.mubr.bf16.gmra.mxu0 %v773
    %v809 = vpop.f32.mrf.mxu0
    %v810 = vadd.f32 %v743, %v809
    %v811 = vpop.f32.mrf.mxu0
    %v812 = vpop.f32.mrf.mxu0
    %v813 = vpop.f32.mrf.mxu0
    %814 = vdwg.mxu0
    %s815 = scalar_lea.vmem %s2, 32
    %v816 = vld [vmem:[%s815] sm:$0xf]
    %v817 = vld [vmem:[%s815 + $0x4] sm:$0xf]
    %v818 = vld [vmem:[%s815 + $0x8] sm:$0xf]
    %v819 = vld [vmem:[%s815 + $0xc] sm:$0xf]
    %v820 = vld [vmem:[%s815 + $0x10] sm:$0xf]
    %v821 = vld [vmem:[%s815 + $0x14] sm:$0xf]
    %v822 = vld [vmem:[%s815 + $0x18] sm:$0xf]
    %v823 = vld [vmem:[%s815 + $0x1c] sm:$0xf]
    %v832 = vunpack.c.l.b16 %v816
    %v833 = vunpack.c.l.b16 %v817
    %v834 = vunpack.c.l.b16 %v818
    %v835 = vunpack.c.l.b16 %v819
    %v836 = vunpack.c.l.b16 %v820
    %v837 = vunpack.c.l.b16 %v821
    %v838 = vunpack.c.l.b16 %v822
    %v839 = vunpack.c.l.b16 %v823
    %v840 = vpack.c.b16 %v833, %v832
    %v841 = vpack.c.b16 %v835, %v834
    %v842 = vpack.c.b16 %v837, %v836
    %v843 = vpack.c.b16 %v839, %v838
    %v849 = vsel %vm372, %v623, 0
    %v852 = vsel %vm372, %v624, 0
    %v855 = vsel %vm372, %v625, 0
    %v858 = vsel %vm372, %v626, 0
    %v861 = vsel %vm372, %v627, 0
    %v864 = vsel %vm372, %v628, 0
    %v867 = vsel %vm372, %v629, 0
    %v870 = vsel %vm372, %v630, 0
    %872 = vmatprep.subr.bf16.mxu0 0
    %873 = vmatpush1.bf16.msra.mxu0 0
    %874 = vmatprep.subr.bf16.mxu0 0
    %875 = vmatpush1.bf16.msra.mxu0 0
    %876 = vmatprep.subr.bf16.mxu0 0
    %877 = vmatpush1.bf16.msra.mxu0 0
    %878 = vmatprep.subr.bf16.mxu0 0
    %879 = vmatpush1.bf16.msra.mxu0 0
    %880 = vmatprep.subr.bf16.mxu0 0
    %881 = vmatpush1.bf16.msra.mxu0 %v843
    %882 = vmatprep.subr.bf16.mxu0 0
    %883 = vmatpush1.bf16.msra.mxu0 %v842
    %884 = vmatprep.subr.bf16.mxu0 0
    %885 = vmatpush1.bf16.msra.mxu0 %v841
    %886 = vmatprep.subr.bf16.mxu0 0
    %887 = vmatpush1.bf16.msra.mxu0 %v840
    %888 = vmatprep.subr.bf16.mxu0 0
    %889 = vmatpush2.bf16.msra.mxu0 0
    %890 = vmatprep.subr.bf16.mxu0 0
    %891 = vmatpush2.bf16.msra.mxu0 0
    %892 = vmatprep.subr.bf16.mxu0 0
    %893 = vmatpush2.bf16.msra.mxu0 0
    %894 = vmatprep.subr.bf16.mxu0 0
    %895 = vmatpush2.bf16.msra.mxu0 0
    %896 = vmatprep.subr.bf16.mxu0 0
    %897 = vmatpush2.bf16.msra.mxu0 0
    %898 = vmatprep.subr.bf16.mxu0 0
    %899 = vmatpush2.bf16.msra.mxu0 0
    %900 = vmatprep.subr.bf16.mxu0 0
    %901 = vmatpush2.bf16.msra.mxu0 0
    %902 = vmatprep.subr.bf16.mxu0 0
    %903 = vmatpush2.bf16.msra.mxu0 0
    %904 = vmatprep.mubr.bf16.mxu0 0
    %905 = vmatmul.mubr.bf16.gmra.mxu0 %v849
    %v906 = vpop.f32.mrf.mxu0
    %v907 = vadd.f32 0.0, %v906
    %v908 = vpop.f32.mrf.mxu0
    %v909 = vpop.f32.mrf.mxu0
    %v910 = vadd.f32 0.0, %v909
    %v911 = vpop.f32.mrf.mxu0
    %912 = vmatprep.mubr.bf16.mxu0 0
    %913 = vmatmul.mubr.bf16.gmra.mxu0 %v852
    %v914 = vpop.f32.mrf.mxu0
    %v915 = vadd.f32 0.0, %v914
    %v916 = vpop.f32.mrf.mxu0
    %v917 = vpop.f32.mrf.mxu0
    %v918 = vadd.f32 0.0, %v917
    %v919 = vpop.f32.mrf.mxu0
    %920 = vmatprep.mubr.bf16.mxu0 0
    %921 = vmatmul.mubr.bf16.gmra.mxu0 %v855
    %v922 = vpop.f32.mrf.mxu0
    %v923 = vadd.f32 0.0, %v922
    %v924 = vpop.f32.mrf.mxu0
    %v925 = vpop.f32.mrf.mxu0
    %v926 = vadd.f32 0.0, %v925
    %v927 = vpop.f32.mrf.mxu0
    %928 = vmatprep.mubr.bf16.mxu0 0
    %929 = vmatmul.mubr.bf16.gmra.mxu0 %v858
    %v930 = vpop.f32.mrf.mxu0
    %v931 = vadd.f32 0.0, %v930
    %v932 = vpop.f32.mrf.mxu0
    %v933 = vpop.f32.mrf.mxu0
    %v934 = vadd.f32 0.0, %v933
    %v935 = vpop.f32.mrf.mxu0
    %936 = vmatprep.mubr.bf16.mxu0 0
    %937 = vmatmul.mubr.bf16.gmra.mxu0 %v861
    %v938 = vpop.f32.mrf.mxu0
    %v939 = vadd.f32 0.0, %v938
    %v940 = vpop.f32.mrf.mxu0
    %v941 = vpop.f32.mrf.mxu0
    %v942 = vadd.f32 0.0, %v941
    %v943 = vpop.f32.mrf.mxu0
    %944 = vmatprep.mubr.bf16.mxu0 0
    %945 = vmatmul.mubr.bf16.gmra.mxu0 %v864
    %v946 = vpop.f32.mrf.mxu0
    %v947 = vadd.f32 0.0, %v946
    %v948 = vpop.f32.mrf.mxu0
    %v949 = vpop.f32.mrf.mxu0
    %v950 = vadd.f32 0.0, %v949
    %v951 = vpop.f32.mrf.mxu0
    %952 = vmatprep.mubr.bf16.mxu0 0
    %953 = vmatmul.mubr.bf16.gmra.mxu0 %v867
    %v954 = vpop.f32.mrf.mxu0
    %v955 = vadd.f32 0.0, %v954
    %v956 = vpop.f32.mrf.mxu0
    %v957 = vpop.f32.mrf.mxu0
    %v958 = vadd.f32 0.0, %v957
    %v959 = vpop.f32.mrf.mxu0
    %960 = vmatprep.mubr.bf16.mxu0 0
    %961 = vmatmul.mubr.bf16.gmra.mxu0 %v870
    %v962 = vpop.f32.mrf.mxu0
    %v963 = vadd.f32 0.0, %v962
    %v964 = vpop.f32.mrf.mxu0
    %v965 = vpop.f32.mrf.mxu0
    %v966 = vadd.f32 0.0, %v965
    %v967 = vpop.f32.mrf.mxu0
    %968 = vdwg.mxu0
    %v969 = vpack.c.bf16 %v910, %v907
    %v970 = vpack.c.bf16 %v918, %v915
    %v971 = vpack.c.bf16 %v926, %v923
    %v972 = vpack.c.bf16 %v934, %v931
    %v973 = vpack.c.bf16 %v942, %v939
    %v974 = vpack.c.bf16 %v950, %v947
    %v975 = vpack.c.bf16 %v958, %v955
    %v976 = vpack.c.bf16 %v966, %v963
    %s977 = scalar_lea.vmem %s3, 2
    %v978 = vld [vmem:[%s977] sm:$0x1]
    %v980 = vlaneseq
    %v981 = vshrl.u32 %v980, 7
    %v982 = vsub.s32 0, %v981
    %v983 = vrot.slane %v978, %v982
    %985 = vmatprep.subr.bf16.mxu0 0
    %986 = vmatpush1.bf16.msra.mxu0 %v976
    %987 = vmatprep.subr.bf16.mxu0 0
    %988 = vmatpush1.bf16.msra.mxu0 %v975
    %989 = vmatprep.subr.bf16.mxu0 0
    %990 = vmatpush1.bf16.msra.mxu0 %v974
    %991 = vmatprep.subr.bf16.mxu0 0
    %992 = vmatpush1.bf16.msra.mxu0 %v973
    %993 = vmatprep.subr.bf16.mxu0 0
    %994 = vmatpush1.bf16.msra.mxu0 %v972
    %995 = vmatprep.subr.bf16.mxu0 0
    %996 = vmatpush1.bf16.msra.mxu0 %v971
    %997 = vmatprep.subr.bf16.mxu0 0
    %998 = vmatpush1.bf16.msra.mxu0 %v970
    %999 = vmatprep.subr.bf16.mxu0 0
    %1000 = vmatpush1.bf16.msra.mxu0 %v969
    %1001 = vmatprep.subr.bf16.mxu0 0
    %1002 = vmatpush2.bf16.msra.mxu0 0
    %1003 = vmatprep.subr.bf16.mxu0 0
    %1004 = vmatpush2.bf16.msra.mxu0 0
    %1005 = vmatprep.subr.bf16.mxu0 0
    %1006 = vmatpush2.bf16.msra.mxu0 0
    %1007 = vmatprep.subr.bf16.mxu0 0
    %1008 = vmatpush2.bf16.msra.mxu0 0
    %1009 = vmatprep.subr.bf16.mxu0 0
    %1010 = vmatpush2.bf16.msra.mxu0 0
    %1011 = vmatprep.subr.bf16.mxu0 0
    %1012 = vmatpush2.bf16.msra.mxu0 0
    %1013 = vmatprep.subr.bf16.mxu0 0
    %1014 = vmatpush2.bf16.msra.mxu0 0
    %1015 = vmatprep.subr.bf16.mxu0 0
    %1016 = vmatpush2.bf16.msra.mxu0 0
    %1017 = vmatprep.mubr.bf16.mxu0 0
    %1018 = vmatmul.mubr.bf16.gmra.mxu0 %v106
    %v1019 = vpop.f32.mrf.mxu0
    %v1020 = vadd.f32 %v983, %v1019
    %v1021 = vpop.f32.mrf.mxu0
    %v1022 = vpop.f32.mrf.mxu0
    %v1023 = vadd.f32 %v983, %v1022
    %v1024 = vpop.f32.mrf.mxu0
    %1025 = vmatprep.mubr.bf16.mxu0 0
    %1026 = vmatmul.mubr.bf16.gmra.mxu0 %v107
    %v1027 = vpop.f32.mrf.mxu0
    %v1028 = vadd.f32 %v983, %v1027
    %v1029 = vpop.f32.mrf.mxu0
    %v1030 = vpop.f32.mrf.mxu0
    %v1031 = vadd.f32 %v983, %v1030
    %v1032 = vpop.f32.mrf.mxu0
    %1033 = vmatprep.mubr.bf16.mxu0 0
    %1034 = vmatmul.mubr.bf16.gmra.mxu0 %v108
    %v1035 = vpop.f32.mrf.mxu0
    %v1036 = vadd.f32 %v983, %v1035
    %v1037 = vpop.f32.mrf.mxu0
    %v1038 = vpop.f32.mrf.mxu0
    %v1039 = vadd.f32 %v983, %v1038
    %v1040 = vpop.f32.mrf.mxu0
    %1041 = vmatprep.mubr.bf16.mxu0 0
    %1042 = vmatmul.mubr.bf16.gmra.mxu0 %v109
    %v1043 = vpop.f32.mrf.mxu0
    %v1044 = vadd.f32 %v983, %v1043
    %v1045 = vpop.f32.mrf.mxu0
    %v1046 = vpop.f32.mrf.mxu0
    %v1047 = vadd.f32 %v983, %v1046
    %v1048 = vpop.f32.mrf.mxu0
    %1049 = vmatprep.mubr.bf16.mxu0 0
    %1050 = vmatmul.mubr.bf16.gmra.mxu0 %v110
    %v1051 = vpop.f32.mrf.mxu0
    %v1052 = vadd.f32 %v983, %v1051
    %v1053 = vpop.f32.mrf.mxu0
    %v1054 = vpop.f32.mrf.mxu0
    %v1055 = vadd.f32 %v983, %v1054
    %v1056 = vpop.f32.mrf.mxu0
    %1057 = vmatprep.mubr.bf16.mxu0 0
    %1058 = vmatmul.mubr.bf16.gmra.mxu0 %v111
    %v1059 = vpop.f32.mrf.mxu0
    %v1060 = vadd.f32 %v983, %v1059
    %v1061 = vpop.f32.mrf.mxu0
    %v1062 = vpop.f32.mrf.mxu0
    %v1063 = vadd.f32 %v983, %v1062
    %v1064 = vpop.f32.mrf.mxu0
    %1065 = vmatprep.mubr.bf16.mxu0 0
    %1066 = vmatmul.mubr.bf16.gmra.mxu0 %v112
    %v1067 = vpop.f32.mrf.mxu0
    %v1068 = vadd.f32 %v983, %v1067
    %v1069 = vpop.f32.mrf.mxu0
    %v1070 = vpop.f32.mrf.mxu0
    %v1071 = vadd.f32 %v983, %v1070
    %v1072 = vpop.f32.mrf.mxu0
    %1073 = vmatprep.mubr.bf16.mxu0 0
    %1074 = vmatmul.mubr.bf16.gmra.mxu0 %v113
    %v1075 = vpop.f32.mrf.mxu0
    %v1076 = vadd.f32 %v983, %v1075
    %v1077 = vpop.f32.mrf.mxu0
    %v1078 = vpop.f32.mrf.mxu0
    %v1079 = vadd.f32 %v983, %v1078
    %v1080 = vpop.f32.mrf.mxu0
    %1081 = vdwg.mxu0
    %v1082 = vmax.f32 %v1020, 0.0
    %v1083 = vmax.f32 %v1023, 0.0
    %v1084 = vmax.f32 %v1028, 0.0
    %v1085 = vmax.f32 %v1031, 0.0
    %v1086 = vmax.f32 %v1036, 0.0
    %v1087 = vmax.f32 %v1039, 0.0
    %v1088 = vmax.f32 %v1044, 0.0
    %v1089 = vmax.f32 %v1047, 0.0
    %v1090 = vmax.f32 %v1052, 0.0
    %v1091 = vmax.f32 %v1055, 0.0
    %v1092 = vmax.f32 %v1060, 0.0
    %v1093 = vmax.f32 %v1063, 0.0
    %v1094 = vmax.f32 %v1068, 0.0
    %v1095 = vmax.f32 %v1071, 0.0
    %v1096 = vmax.f32 %v1076, 0.0
    %v1097 = vmax.f32 %v1079, 0.0
    %v1098 = vpack.c.bf16 %v1083, %v1082
    %v1099 = vpack.c.bf16 %v1085, %v1084
    %v1100 = vpack.c.bf16 %v1087, %v1086
    %v1101 = vpack.c.bf16 %v1089, %v1088
    %v1102 = vpack.c.bf16 %v1091, %v1090
    %v1103 = vpack.c.bf16 %v1093, %v1092
    %v1104 = vpack.c.bf16 %v1095, %v1094
    %v1105 = vpack.c.bf16 %v1097, %v1096
    %1106 = vmatprep.subr.bf16.mxu0 0
    %1107 = vmatpush1.bf16.msra.mxu0 %v1105
    %1108 = vmatprep.subr.bf16.mxu0 0
    %1109 = vmatpush1.bf16.msra.mxu0 %v1104
    %1110 = vmatprep.subr.bf16.mxu0 0
    %1111 = vmatpush1.bf16.msra.mxu0 %v1103
    %1112 = vmatprep.subr.bf16.mxu0 0
    %1113 = vmatpush1.bf16.msra.mxu0 %v1102
    %1114 = vmatprep.subr.bf16.mxu0 0
    %1115 = vmatpush1.bf16.msra.mxu0 %v1101
    %1116 = vmatprep.subr.bf16.mxu0 0
    %1117 = vmatpush1.bf16.msra.mxu0 %v1100
    %1118 = vmatprep.subr.bf16.mxu0 0
    %1119 = vmatpush1.bf16.msra.mxu0 %v1099
    %1120 = vmatprep.subr.bf16.mxu0 0
    %1121 = vmatpush1.bf16.msra.mxu0 %v1098
    %1122 = vmatprep.subr.bf16.mxu0 0
    %1123 = vmatpush2.bf16.msra.mxu0 0
    %1124 = vmatprep.subr.bf16.mxu0 0
    %1125 = vmatpush2.bf16.msra.mxu0 0
    %1126 = vmatprep.subr.bf16.mxu0 0
    %1127 = vmatpush2.bf16.msra.mxu0 0
    %1128 = vmatprep.subr.bf16.mxu0 0
    %1129 = vmatpush2.bf16.msra.mxu0 0
    %1130 = vmatprep.subr.bf16.mxu0 0
    %1131 = vmatpush2.bf16.msra.mxu0 0
    %1132 = vmatprep.subr.bf16.mxu0 0
    %1133 = vmatpush2.bf16.msra.mxu0 0
    %1134 = vmatprep.subr.bf16.mxu0 0
    %1135 = vmatpush2.bf16.msra.mxu0 0
    %1136 = vmatprep.subr.bf16.mxu0 0
    %1137 = vmatpush2.bf16.msra.mxu0 0
    %1138 = vmatprep.mubr.bf16.mxu0 0
    %1139 = vmatmul.mubr.bf16.gmra.mxu0 %v50
    %v1140 = vpop.f32.mrf.mxu0
    %v1141 = vadd.f32 0.0, %v1140
    %v1142 = vpop.f32.mrf.mxu0
    %v1143 = vpop.f32.mrf.mxu0
    %v1144 = vpop.f32.mrf.mxu0
    %1145 = vdwg.mxu0
    %v1146 = vpack.c.bf16 %v1141, %v1141
    %s1147 = scalar_lea.vmem %s5, 64
    %v1148 = vld [vmem:[%s1147] sm:$0xf]
    %v1149 = vld [vmem:[%s1147 + $0x4] sm:$0xf]
    %v1150 = vld [vmem:[%s1147 + $0x8] sm:$0xf]
    %v1151 = vld [vmem:[%s1147 + $0xc] sm:$0xf]
    %v1152 = vld [vmem:[%s1147 + $0x10] sm:$0xf]
    %v1153 = vld [vmem:[%s1147 + $0x14] sm:$0xf]
    %v1154 = vld [vmem:[%s1147 + $0x18] sm:$0xf]
    %v1155 = vld [vmem:[%s1147 + $0x1c] sm:$0xf]
    %v1164 = vunpack.c.l.b16 %v1148
    %v1165 = vunpack.c.l.b16 %v1149
    %v1166 = vunpack.c.l.b16 %v1150
    %v1167 = vunpack.c.l.b16 %v1151
    %v1168 = vunpack.c.l.b16 %v1152
    %v1169 = vunpack.c.l.b16 %v1153
    %v1170 = vunpack.c.l.b16 %v1154
    %v1171 = vunpack.c.l.b16 %v1155
    %v1172 = vpack.c.b16 %v1165, %v1164
    %v1173 = vpack.c.b16 %v1167, %v1166
    %v1174 = vpack.c.b16 %v1169, %v1168
    %v1175 = vpack.c.b16 %v1171, %v1170
    %v1181 = vsel %vm372, %v1146, 0
    %1183 = vmatprep.subr.bf16.mxu0 0
    %1184 = vmatpush1.bf16.msra.mxu0 0
    %1185 = vmatprep.subr.bf16.mxu0 0
    %1186 = vmatpush1.bf16.msra.mxu0 0
    %1187 = vmatprep.subr.bf16.mxu0 0
    %1188 = vmatpush1.bf16.msra.mxu0 0
    %1189 = vmatprep.subr.bf16.mxu0 0
    %1190 = vmatpush1.bf16.msra.mxu0 0
    %1191 = vmatprep.subr.bf16.mxu0 0
    %1192 = vmatpush1.bf16.msra.mxu0 %v1175
    %1193 = vmatprep.subr.bf16.mxu0 0
    %1194 = vmatpush1.bf16.msra.mxu0 %v1174
    %1195 = vmatprep.subr.bf16.mxu0 0
    %1196 = vmatpush1.bf16.msra.mxu0 %v1173
    %1197 = vmatprep.subr.bf16.mxu0 0
    %1198 = vmatpush1.bf16.msra.mxu0 %v1172
    %1199 = vmatprep.subr.bf16.mxu0 0
    %1200 = vmatpush2.bf16.msra.mxu0 0
    %1201 = vmatprep.subr.bf16.mxu0 0
    %1202 = vmatpush2.bf16.msra.mxu0 0
    %1203 = vmatprep.subr.bf16.mxu0 0
    %1204 = vmatpush2.bf16.msra.mxu0 0
    %1205 = vmatprep.subr.bf16.mxu0 0
    %1206 = vmatpush2.bf16.msra.mxu0 0
    %1207 = vmatprep.subr.bf16.mxu0 0
    %1208 = vmatpush2.bf16.msra.mxu0 0
    %1209 = vmatprep.subr.bf16.mxu0 0
    %1210 = vmatpush2.bf16.msra.mxu0 0
    %1211 = vmatprep.subr.bf16.mxu0 0
    %1212 = vmatpush2.bf16.msra.mxu0 0
    %1213 = vmatprep.subr.bf16.mxu0 0
    %1214 = vmatpush2.bf16.msra.mxu0 0
    %1215 = vmatprep.mubr.bf16.mxu0 0
    %1216 = vmatmul.mubr.bf16.gmra.mxu0 %v1181
    %v1217 = vpop.f32.mrf.mxu0
    %v1218 = vadd.f32 0.0, %v1217
    %v1219 = vpop.f32.mrf.mxu0
    %v1220 = vpop.f32.mrf.mxu0
    %v1221 = vpop.f32.mrf.mxu0
    %1222 = vdwg.mxu0
    %v1223 = vadd.f32 %v810, %v1218
    %s1224 = scalar_lea.vmem %s2, 64
    %v1225 = vld [vmem:[%s1224] sm:$0xf]
    %v1226 = vld [vmem:[%s1224 + $0x4] sm:$0xf]
    %v1227 = vld [vmem:[%s1224 + $0x8] sm:$0xf]
    %v1228 = vld [vmem:[%s1224 + $0xc] sm:$0xf]
    %v1229 = vld [vmem:[%s1224 + $0x10] sm:$0xf]
    %v1230 = vld [vmem:[%s1224 + $0x14] sm:$0xf]
    %v1231 = vld [vmem:[%s1224 + $0x18] sm:$0xf]
    %v1232 = vld [vmem:[%s1224 + $0x1c] sm:$0xf]
    %v1241 = vunpack.c.l.b16 %v1225
    %v1242 = vunpack.c.l.b16 %v1226
    %v1243 = vunpack.c.l.b16 %v1227
    %v1244 = vunpack.c.l.b16 %v1228
    %v1245 = vunpack.c.l.b16 %v1229
    %v1246 = vunpack.c.l.b16 %v1230
    %v1247 = vunpack.c.l.b16 %v1231
    %v1248 = vunpack.c.l.b16 %v1232
    %v1249 = vpack.c.b16 %v1242, %v1241
    %v1250 = vpack.c.b16 %v1244, %v1243
    %v1251 = vpack.c.b16 %v1246, %v1245
    %v1252 = vpack.c.b16 %v1248, %v1247
    %v1258 = vsel %vm372, %v1098, 0
    %v1261 = vsel %vm372, %v1099, 0
    %v1264 = vsel %vm372, %v1100, 0
    %v1267 = vsel %vm372, %v1101, 0
    %v1270 = vsel %vm372, %v1102, 0
    %v1273 = vsel %vm372, %v1103, 0
    %v1276 = vsel %vm372, %v1104, 0
    %v1279 = vsel %vm372, %v1105, 0
    %1281 = vmatprep.subr.bf16.mxu0 0
    %1282 = vmatpush1.bf16.msra.mxu0 0
    %1283 = vmatprep.subr.bf16.mxu0 0
    %1284 = vmatpush1.bf16.msra.mxu0 0
    %1285 = vmatprep.subr.bf16.mxu0 0
    %1286 = vmatpush1.bf16.msra.mxu0 0
    %1287 = vmatprep.subr.bf16.mxu0 0
    %1288 = vmatpush1.bf16.msra.mxu0 0
    %1289 = vmatprep.subr.bf16.mxu0 0
    %1290 = vmatpush1.bf16.msra.mxu0 %v1252
    %1291 = vmatprep.subr.bf16.mxu0 0
    %1292 = vmatpush1.bf16.msra.mxu0 %v1251
    %1293 = vmatprep.subr.bf16.mxu0 0
    %1294 = vmatpush1.bf16.msra.mxu0 %v1250
    %1295 = vmatprep.subr.bf16.mxu0 0
    %1296 = vmatpush1.bf16.msra.mxu0 %v1249
    %1297 = vmatprep.subr.bf16.mxu0 0
    %1298 = vmatpush2.bf16.msra.mxu0 0
    %1299 = vmatprep.subr.bf16.mxu0 0
    %1300 = vmatpush2.bf16.msra.mxu0 0
    %1301 = vmatprep.subr.bf16.mxu0 0
    %1302 = vmatpush2.bf16.msra.mxu0 0
    %1303 = vmatprep.subr.bf16.mxu0 0
    %1304 = vmatpush2.bf16.msra.mxu0 0
    %1305 = vmatprep.subr.bf16.mxu0 0
    %1306 = vmatpush2.bf16.msra.mxu0 0
    %1307 = vmatprep.subr.bf16.mxu0 0
    %1308 = vmatpush2.bf16.msra.mxu0 0
    %1309 = vmatprep.subr.bf16.mxu0 0
    %1310 = vmatpush2.bf16.msra.mxu0 0
    %1311 = vmatprep.subr.bf16.mxu0 0
    %1312 = vmatpush2.bf16.msra.mxu0 0
    %1313 = vmatprep.mubr.bf16.mxu0 0
    %1314 = vmatmul.mubr.bf16.gmra.mxu0 %v1258
    %v1315 = vpop.f32.mrf.mxu0
    %v1316 = vadd.f32 0.0, %v1315
    %v1317 = vpop.f32.mrf.mxu0
    %v1318 = vpop.f32.mrf.mxu0
    %v1319 = vadd.f32 0.0, %v1318
    %v1320 = vpop.f32.mrf.mxu0
    %1321 = vmatprep.mubr.bf16.mxu0 0
    %1322 = vmatmul.mubr.bf16.gmra.mxu0 %v1261
    %v1323 = vpop.f32.mrf.mxu0
    %v1324 = vadd.f32 0.0, %v1323
    %v1325 = vpop.f32.mrf.mxu0
    %v1326 = vpop.f32.mrf.mxu0
    %v1327 = vadd.f32 0.0, %v1326
    %v1328 = vpop.f32.mrf.mxu0
    %1329 = vmatprep.mubr.bf16.mxu0 0
    %1330 = vmatmul.mubr.bf16.gmra.mxu0 %v1264
    %v1331 = vpop.f32.mrf.mxu0
    %v1332 = vadd.f32 0.0, %v1331
    %v1333 = vpop.f32.mrf.mxu0
    %v1334 = vpop.f32.mrf.mxu0
    %v1335 = vadd.f32 0.0, %v1334
    %v1336 = vpop.f32.mrf.mxu0
    %1337 = vmatprep.mubr.bf16.mxu0 0
    %1338 = vmatmul.mubr.bf16.gmra.mxu0 %v1267
    %v1339 = vpop.f32.mrf.mxu0
    %v1340 = vadd.f32 0.0, %v1339
    %v1341 = vpop.f32.mrf.mxu0
    %v1342 = vpop.f32.mrf.mxu0
    %v1343 = vadd.f32 0.0, %v1342
    %v1344 = vpop.f32.mrf.mxu0
    %1345 = vmatprep.mubr.bf16.mxu0 0
    %1346 = vmatmul.mubr.bf16.gmra.mxu0 %v1270
    %v1347 = vpop.f32.mrf.mxu0
    %v1348 = vadd.f32 0.0, %v1347
    %v1349 = vpop.f32.mrf.mxu0
    %v1350 = vpop.f32.mrf.mxu0
    %v1351 = vadd.f32 0.0, %v1350
    %v1352 = vpop.f32.mrf.mxu0
    %1353 = vmatprep.mubr.bf16.mxu0 0
    %1354 = vmatmul.mubr.bf16.gmra.mxu0 %v1273
    %v1355 = vpop.f32.mrf.mxu0
    %v1356 = vadd.f32 0.0, %v1355
    %v1357 = vpop.f32.mrf.mxu0
    %v1358 = vpop.f32.mrf.mxu0
    %v1359 = vadd.f32 0.0, %v1358
    %v1360 = vpop.f32.mrf.mxu0
    %1361 = vmatprep.mubr.bf16.mxu0 0
    %1362 = vmatmul.mubr.bf16.gmra.mxu0 %v1276
    %v1363 = vpop.f32.mrf.mxu0
    %v1364 = vadd.f32 0.0, %v1363
    %v1365 = vpop.f32.mrf.mxu0
    %v1366 = vpop.f32.mrf.mxu0
    %v1367 = vadd.f32 0.0, %v1366
    %v1368 = vpop.f32.mrf.mxu0
    %1369 = vmatprep.mubr.bf16.mxu0 0
    %1370 = vmatmul.mubr.bf16.gmra.mxu0 %v1279
    %v1371 = vpop.f32.mrf.mxu0
    %v1372 = vadd.f32 0.0, %v1371
    %v1373 = vpop.f32.mrf.mxu0
    %v1374 = vpop.f32.mrf.mxu0
    %v1375 = vadd.f32 0.0, %v1374
    %v1376 = vpop.f32.mrf.mxu0
    %1377 = vdwg.mxu0
    %v1378 = vpack.c.bf16 %v1319, %v1316
    %v1379 = vpack.c.bf16 %v1327, %v1324
    %v1380 = vpack.c.bf16 %v1335, %v1332
    %v1381 = vpack.c.bf16 %v1343, %v1340
    %v1382 = vpack.c.bf16 %v1351, %v1348
    %v1383 = vpack.c.bf16 %v1359, %v1356
    %v1384 = vpack.c.bf16 %v1367, %v1364
    %v1385 = vpack.c.bf16 %v1375, %v1372
    %s1386 = scalar_lea.vmem %s3, 3
    %v1387 = vld [vmem:[%s1386] sm:$0x1]
    %v1389 = vlaneseq
    %v1390 = vshrl.u32 %v1389, 7
    %v1391 = vsub.s32 0, %v1390
    %v1392 = vrot.slane %v1387, %v1391
    %1394 = vmatprep.subr.bf16.mxu0 0
    %1395 = vmatpush1.bf16.msra.mxu0 %v1385
    %1396 = vmatprep.subr.bf16.mxu0 0
    %1397 = vmatpush1.bf16.msra.mxu0 %v1384
    %1398 = vmatprep.subr.bf16.mxu0 0
    %1399 = vmatpush1.bf16.msra.mxu0 %v1383
    %1400 = vmatprep.subr.bf16.mxu0 0
    %1401 = vmatpush1.bf16.msra.mxu0 %v1382
    %1402 = vmatprep.subr.bf16.mxu0 0
    %1403 = vmatpush1.bf16.msra.mxu0 %v1381
    %1404 = vmatprep.subr.bf16.mxu0 0
    %1405 = vmatpush1.bf16.msra.mxu0 %v1380
    %1406 = vmatprep.subr.bf16.mxu0 0
    %1407 = vmatpush1.bf16.msra.mxu0 %v1379
    %1408 = vmatprep.subr.bf16.mxu0 0
    %1409 = vmatpush1.bf16.msra.mxu0 %v1378
    %1410 = vmatprep.subr.bf16.mxu0 0
    %1411 = vmatpush2.bf16.msra.mxu0 0
    %1412 = vmatprep.subr.bf16.mxu0 0
    %1413 = vmatpush2.bf16.msra.mxu0 0
    %1414 = vmatprep.subr.bf16.mxu0 0
    %1415 = vmatpush2.bf16.msra.mxu0 0
    %1416 = vmatprep.subr.bf16.mxu0 0
    %1417 = vmatpush2.bf16.msra.mxu0 0
    %1418 = vmatprep.subr.bf16.mxu0 0
    %1419 = vmatpush2.bf16.msra.mxu0 0
    %1420 = vmatprep.subr.bf16.mxu0 0
    %1421 = vmatpush2.bf16.msra.mxu0 0
    %1422 = vmatprep.subr.bf16.mxu0 0
    %1423 = vmatpush2.bf16.msra.mxu0 0
    %1424 = vmatprep.subr.bf16.mxu0 0
    %1425 = vmatpush2.bf16.msra.mxu0 0
    %1426 = vmatprep.mubr.bf16.mxu0 0
    %1427 = vmatmul.mubr.bf16.gmra.mxu0 %v106
    %v1428 = vpop.f32.mrf.mxu0
    %v1429 = vadd.f32 %v1392, %v1428
    %v1430 = vpop.f32.mrf.mxu0
    %v1431 = vpop.f32.mrf.mxu0
    %v1432 = vadd.f32 %v1392, %v1431
    %v1433 = vpop.f32.mrf.mxu0
    %1434 = vmatprep.mubr.bf16.mxu0 0
    %1435 = vmatmul.mubr.bf16.gmra.mxu0 %v107
    %v1436 = vpop.f32.mrf.mxu0
    %v1437 = vadd.f32 %v1392, %v1436
    %v1438 = vpop.f32.mrf.mxu0
    %v1439 = vpop.f32.mrf.mxu0
    %v1440 = vadd.f32 %v1392, %v1439
    %v1441 = vpop.f32.mrf.mxu0
    %1442 = vmatprep.mubr.bf16.mxu0 0
    %1443 = vmatmul.mubr.bf16.gmra.mxu0 %v108
    %v1444 = vpop.f32.mrf.mxu0
    %v1445 = vadd.f32 %v1392, %v1444
    %v1446 = vpop.f32.mrf.mxu0
    %v1447 = vpop.f32.mrf.mxu0
    %v1448 = vadd.f32 %v1392, %v1447
    %v1449 = vpop.f32.mrf.mxu0
    %1450 = vmatprep.mubr.bf16.mxu0 0
    %1451 = vmatmul.mubr.bf16.gmra.mxu0 %v109
    %v1452 = vpop.f32.mrf.mxu0
    %v1453 = vadd.f32 %v1392, %v1452
    %v1454 = vpop.f32.mrf.mxu0
    %v1455 = vpop.f32.mrf.mxu0
    %v1456 = vadd.f32 %v1392, %v1455
    %v1457 = vpop.f32.mrf.mxu0
    %1458 = vmatprep.mubr.bf16.mxu0 0
    %1459 = vmatmul.mubr.bf16.gmra.mxu0 %v110
    %v1460 = vpop.f32.mrf.mxu0
    %v1461 = vadd.f32 %v1392, %v1460
    %v1462 = vpop.f32.mrf.mxu0
    %v1463 = vpop.f32.mrf.mxu0
    %v1464 = vadd.f32 %v1392, %v1463
    %v1465 = vpop.f32.mrf.mxu0
    %1466 = vmatprep.mubr.bf16.mxu0 0
    %1467 = vmatmul.mubr.bf16.gmra.mxu0 %v111
    %v1468 = vpop.f32.mrf.mxu0
    %v1469 = vadd.f32 %v1392, %v1468
    %v1470 = vpop.f32.mrf.mxu0
    %v1471 = vpop.f32.mrf.mxu0
    %v1472 = vadd.f32 %v1392, %v1471
    %v1473 = vpop.f32.mrf.mxu0
    %1474 = vmatprep.mubr.bf16.mxu0 0
    %1475 = vmatmul.mubr.bf16.gmra.mxu0 %v112
    %v1476 = vpop.f32.mrf.mxu0
    %v1477 = vadd.f32 %v1392, %v1476
    %v1478 = vpop.f32.mrf.mxu0
    %v1479 = vpop.f32.mrf.mxu0
    %v1480 = vadd.f32 %v1392, %v1479
    %v1481 = vpop.f32.mrf.mxu0
    %1482 = vmatprep.mubr.bf16.mxu0 0
    %1483 = vmatmul.mubr.bf16.gmra.mxu0 %v113
    %v1484 = vpop.f32.mrf.mxu0
    %v1485 = vadd.f32 %v1392, %v1484
    %v1486 = vpop.f32.mrf.mxu0
    %v1487 = vpop.f32.mrf.mxu0
    %v1488 = vadd.f32 %v1392, %v1487
    %v1489 = vpop.f32.mrf.mxu0
    %1490 = vdwg.mxu0
    %v1491 = vmax.f32 %v1429, 0.0
    %v1492 = vmax.f32 %v1432, 0.0
    %v1493 = vmax.f32 %v1437, 0.0
    %v1494 = vmax.f32 %v1440, 0.0
    %v1495 = vmax.f32 %v1445, 0.0
    %v1496 = vmax.f32 %v1448, 0.0
    %v1497 = vmax.f32 %v1453, 0.0
    %v1498 = vmax.f32 %v1456, 0.0
    %v1499 = vmax.f32 %v1461, 0.0
    %v1500 = vmax.f32 %v1464, 0.0
    %v1501 = vmax.f32 %v1469, 0.0
    %v1502 = vmax.f32 %v1472, 0.0
    %v1503 = vmax.f32 %v1477, 0.0
    %v1504 = vmax.f32 %v1480, 0.0
    %v1505 = vmax.f32 %v1485, 0.0
    %v1506 = vmax.f32 %v1488, 0.0
    %v1507 = vpack.c.bf16 %v1492, %v1491
    %v1508 = vpack.c.bf16 %v1494, %v1493
    %v1509 = vpack.c.bf16 %v1496, %v1495
    %v1510 = vpack.c.bf16 %v1498, %v1497
    %v1511 = vpack.c.bf16 %v1500, %v1499
    %v1512 = vpack.c.bf16 %v1502, %v1501
    %v1513 = vpack.c.bf16 %v1504, %v1503
    %v1514 = vpack.c.bf16 %v1506, %v1505
    %1515 = vmatprep.subr.bf16.mxu0 0
    %1516 = vmatpush1.bf16.msra.mxu0 %v1514
    %1517 = vmatprep.subr.bf16.mxu0 0
    %1518 = vmatpush1.bf16.msra.mxu0 %v1513
    %1519 = vmatprep.subr.bf16.mxu0 0
    %1520 = vmatpush1.bf16.msra.mxu0 %v1512
    %1521 = vmatprep.subr.bf16.mxu0 0
    %1522 = vmatpush1.bf16.msra.mxu0 %v1511
    %1523 = vmatprep.subr.bf16.mxu0 0
    %1524 = vmatpush1.bf16.msra.mxu0 %v1510
    %1525 = vmatprep.subr.bf16.mxu0 0
    %1526 = vmatpush1.bf16.msra.mxu0 %v1509
    %1527 = vmatprep.subr.bf16.mxu0 0
    %1528 = vmatpush1.bf16.msra.mxu0 %v1508
    %1529 = vmatprep.subr.bf16.mxu0 0
    %1530 = vmatpush1.bf16.msra.mxu0 %v1507
    %1531 = vmatprep.subr.bf16.mxu0 0
    %1532 = vmatpush2.bf16.msra.mxu0 0
    %1533 = vmatprep.subr.bf16.mxu0 0
    %1534 = vmatpush2.bf16.msra.mxu0 0
    %1535 = vmatprep.subr.bf16.mxu0 0
    %1536 = vmatpush2.bf16.msra.mxu0 0
    %1537 = vmatprep.subr.bf16.mxu0 0
    %1538 = vmatpush2.bf16.msra.mxu0 0
    %1539 = vmatprep.subr.bf16.mxu0 0
    %1540 = vmatpush2.bf16.msra.mxu0 0
    %1541 = vmatprep.subr.bf16.mxu0 0
    %1542 = vmatpush2.bf16.msra.mxu0 0
    %1543 = vmatprep.subr.bf16.mxu0 0
    %1544 = vmatpush2.bf16.msra.mxu0 0
    %1545 = vmatprep.subr.bf16.mxu0 0
    %1546 = vmatpush2.bf16.msra.mxu0 0
    %1547 = vmatprep.mubr.bf16.mxu0 0
    %1548 = vmatmul.mubr.bf16.gmra.mxu0 %v50
    %v1549 = vpop.f32.mrf.mxu0
    %v1550 = vadd.f32 0.0, %v1549
    %v1551 = vpop.f32.mrf.mxu0
    %v1552 = vpop.f32.mrf.mxu0
    %v1553 = vpop.f32.mrf.mxu0
    %1554 = vdwg.mxu0
    %v1555 = vpack.c.bf16 %v1550, %v1550
    %s1556 = scalar_lea.vmem %s5, 96
    %v1557 = vld [vmem:[%s1556] sm:$0xf]
    %v1558 = vld [vmem:[%s1556 + $0x4] sm:$0xf]
    %v1559 = vld [vmem:[%s1556 + $0x8] sm:$0xf]
    %v1560 = vld [vmem:[%s1556 + $0xc] sm:$0xf]
    %v1561 = vld [vmem:[%s1556 + $0x10] sm:$0xf]
    %v1562 = vld [vmem:[%s1556 + $0x14] sm:$0xf]
    %v1563 = vld [vmem:[%s1556 + $0x18] sm:$0xf]
    %v1564 = vld [vmem:[%s1556 + $0x1c] sm:$0xf]
    %v1573 = vunpack.c.l.b16 %v1557
    %v1574 = vunpack.c.l.b16 %v1558
    %v1575 = vunpack.c.l.b16 %v1559
    %v1576 = vunpack.c.l.b16 %v1560
    %v1577 = vunpack.c.l.b16 %v1561
    %v1578 = vunpack.c.l.b16 %v1562
    %v1579 = vunpack.c.l.b16 %v1563
    %v1580 = vunpack.c.l.b16 %v1564
    %v1581 = vpack.c.b16 %v1574, %v1573
    %v1582 = vpack.c.b16 %v1576, %v1575
    %v1583 = vpack.c.b16 %v1578, %v1577
    %v1584 = vpack.c.b16 %v1580, %v1579
    %v1590 = vsel %vm372, %v1555, 0
    %1592 = vmatprep.subr.bf16.mxu0 0
    %1593 = vmatpush1.bf16.msra.mxu0 0
    %1594 = vmatprep.subr.bf16.mxu0 0
    %1595 = vmatpush1.bf16.msra.mxu0 0
    %1596 = vmatprep.subr.bf16.mxu0 0
    %1597 = vmatpush1.bf16.msra.mxu0 0
    %1598 = vmatprep.subr.bf16.mxu0 0
    %1599 = vmatpush1.bf16.msra.mxu0 0
    %1600 = vmatprep.subr.bf16.mxu0 0
    %1601 = vmatpush1.bf16.msra.mxu0 %v1584
    %1602 = vmatprep.subr.bf16.mxu0 0
    %1603 = vmatpush1.bf16.msra.mxu0 %v1583
    %1604 = vmatprep.subr.bf16.mxu0 0
    %1605 = vmatpush1.bf16.msra.mxu0 %v1582
    %1606 = vmatprep.subr.bf16.mxu0 0
    %1607 = vmatpush1.bf16.msra.mxu0 %v1581
    %1608 = vmatprep.subr.bf16.mxu0 0
    %1609 = vmatpush2.bf16.msra.mxu0 0
    %1610 = vmatprep.subr.bf16.mxu0 0
    %1611 = vmatpush2.bf16.msra.mxu0 0
    %1612 = vmatprep.subr.bf16.mxu0 0
    %1613 = vmatpush2.bf16.msra.mxu0 0
    %1614 = vmatprep.subr.bf16.mxu0 0
    %1615 = vmatpush2.bf16.msra.mxu0 0
    %1616 = vmatprep.subr.bf16.mxu0 0
    %1617 = vmatpush2.bf16.msra.mxu0 0
    %1618 = vmatprep.subr.bf16.mxu0 0
    %1619 = vmatpush2.bf16.msra.mxu0 0
    %1620 = vmatprep.subr.bf16.mxu0 0
    %1621 = vmatpush2.bf16.msra.mxu0 0
    %1622 = vmatprep.subr.bf16.mxu0 0
    %1623 = vmatpush2.bf16.msra.mxu0 0
    %1624 = vmatprep.mubr.bf16.mxu0 0
    %1625 = vmatmul.mubr.bf16.gmra.mxu0 %v1590
    %v1626 = vpop.f32.mrf.mxu0
    %v1627 = vadd.f32 0.0, %v1626
    %v1628 = vpop.f32.mrf.mxu0
    %v1629 = vpop.f32.mrf.mxu0
    %v1630 = vpop.f32.mrf.mxu0
    %1631 = vdwg.mxu0
    %v1632 = vadd.f32 %v1223, %v1627
    %s1633 = scalar_lea.vmem %s2, 96
    %v1634 = vld [vmem:[%s1633] sm:$0xf]
    %v1635 = vld [vmem:[%s1633 + $0x4] sm:$0xf]
    %v1636 = vld [vmem:[%s1633 + $0x8] sm:$0xf]
    %v1637 = vld [vmem:[%s1633 + $0xc] sm:$0xf]
    %v1638 = vld [vmem:[%s1633 + $0x10] sm:$0xf]
    %v1639 = vld [vmem:[%s1633 + $0x14] sm:$0xf]
    %v1640 = vld [vmem:[%s1633 + $0x18] sm:$0xf]
    %v1641 = vld [vmem:[%s1633 + $0x1c] sm:$0xf]
    %v1650 = vunpack.c.l.b16 %v1634
    %v1651 = vunpack.c.l.b16 %v1635
    %v1652 = vunpack.c.l.b16 %v1636
    %v1653 = vunpack.c.l.b16 %v1637
    %v1654 = vunpack.c.l.b16 %v1638
    %v1655 = vunpack.c.l.b16 %v1639
    %v1656 = vunpack.c.l.b16 %v1640
    %v1657 = vunpack.c.l.b16 %v1641
    %v1658 = vpack.c.b16 %v1651, %v1650
    %v1659 = vpack.c.b16 %v1653, %v1652
    %v1660 = vpack.c.b16 %v1655, %v1654
    %v1661 = vpack.c.b16 %v1657, %v1656
    %v1667 = vsel %vm372, %v1507, 0
    %v1670 = vsel %vm372, %v1508, 0
    %v1673 = vsel %vm372, %v1509, 0
    %v1676 = vsel %vm372, %v1510, 0
    %v1679 = vsel %vm372, %v1511, 0
    %v1682 = vsel %vm372, %v1512, 0
    %v1685 = vsel %vm372, %v1513, 0
    %v1688 = vsel %vm372, %v1514, 0
    %1690 = vmatprep.subr.bf16.mxu0 0
    %1691 = vmatpush1.bf16.msra.mxu0 0
    %1692 = vmatprep.subr.bf16.mxu0 0
    %1693 = vmatpush1.bf16.msra.mxu0 0
    %1694 = vmatprep.subr.bf16.mxu0 0
    %1695 = vmatpush1.bf16.msra.mxu0 0
    %1696 = vmatprep.subr.bf16.mxu0 0
    %1697 = vmatpush1.bf16.msra.mxu0 0
    %1698 = vmatprep.subr.bf16.mxu0 0
    %1699 = vmatpush1.bf16.msra.mxu0 %v1661
    %1700 = vmatprep.subr.bf16.mxu0 0
    %1701 = vmatpush1.bf16.msra.mxu0 %v1660
    %1702 = vmatprep.subr.bf16.mxu0 0
    %1703 = vmatpush1.bf16.msra.mxu0 %v1659
    %1704 = vmatprep.subr.bf16.mxu0 0
    %1705 = vmatpush1.bf16.msra.mxu0 %v1658
    %1706 = vmatprep.subr.bf16.mxu0 0
    %1707 = vmatpush2.bf16.msra.mxu0 0
    %1708 = vmatprep.subr.bf16.mxu0 0
    %1709 = vmatpush2.bf16.msra.mxu0 0
    %1710 = vmatprep.subr.bf16.mxu0 0
    %1711 = vmatpush2.bf16.msra.mxu0 0
    %1712 = vmatprep.subr.bf16.mxu0 0
    %1713 = vmatpush2.bf16.msra.mxu0 0
    %1714 = vmatprep.subr.bf16.mxu0 0
    %1715 = vmatpush2.bf16.msra.mxu0 0
    %1716 = vmatprep.subr.bf16.mxu0 0
    %1717 = vmatpush2.bf16.msra.mxu0 0
    %1718 = vmatprep.subr.bf16.mxu0 0
    %1719 = vmatpush2.bf16.msra.mxu0 0
    %1720 = vmatprep.subr.bf16.mxu0 0
    %1721 = vmatpush2.bf16.msra.mxu0 0
    %1722 = vmatprep.mubr.bf16.mxu0 0
    %1723 = vmatmul.mubr.bf16.gmra.mxu0 %v1667
    %v1724 = vpop.f32.mrf.mxu0
    %v1725 = vadd.f32 0.0, %v1724
    %v1726 = vpop.f32.mrf.mxu0
    %v1727 = vpop.f32.mrf.mxu0
    %v1728 = vadd.f32 0.0, %v1727
    %v1729 = vpop.f32.mrf.mxu0
    %1730 = vmatprep.mubr.bf16.mxu0 0
    %1731 = vmatmul.mubr.bf16.gmra.mxu0 %v1670
    %v1732 = vpop.f32.mrf.mxu0
    %v1733 = vadd.f32 0.0, %v1732
    %v1734 = vpop.f32.mrf.mxu0
    %v1735 = vpop.f32.mrf.mxu0
    %v1736 = vadd.f32 0.0, %v1735
    %v1737 = vpop.f32.mrf.mxu0
    %1738 = vmatprep.mubr.bf16.mxu0 0
    %1739 = vmatmul.mubr.bf16.gmra.mxu0 %v1673
    %v1740 = vpop.f32.mrf.mxu0
    %v1741 = vadd.f32 0.0, %v1740
    %v1742 = vpop.f32.mrf.mxu0
    %v1743 = vpop.f32.mrf.mxu0
    %v1744 = vadd.f32 0.0, %v1743
    %v1745 = vpop.f32.mrf.mxu0
    %1746 = vmatprep.mubr.bf16.mxu0 0
    %1747 = vmatmul.mubr.bf16.gmra.mxu0 %v1676
    %v1748 = vpop.f32.mrf.mxu0
    %v1749 = vadd.f32 0.0, %v1748
    %v1750 = vpop.f32.mrf.mxu0
    %v1751 = vpop.f32.mrf.mxu0
    %v1752 = vadd.f32 0.0, %v1751
    %v1753 = vpop.f32.mrf.mxu0
    %1754 = vmatprep.mubr.bf16.mxu0 0
    %1755 = vmatmul.mubr.bf16.gmra.mxu0 %v1679
    %v1756 = vpop.f32.mrf.mxu0
    %v1757 = vadd.f32 0.0, %v1756
    %v1758 = vpop.f32.mrf.mxu0
    %v1759 = vpop.f32.mrf.mxu0
    %v1760 = vadd.f32 0.0, %v1759
    %v1761 = vpop.f32.mrf.mxu0
    %1762 = vmatprep.mubr.bf16.mxu0 0
    %1763 = vmatmul.mubr.bf16.gmra.mxu0 %v1682
    %v1764 = vpop.f32.mrf.mxu0
    %v1765 = vadd.f32 0.0, %v1764
    %v1766 = vpop.f32.mrf.mxu0
    %v1767 = vpop.f32.mrf.mxu0
    %v1768 = vadd.f32 0.0, %v1767
    %v1769 = vpop.f32.mrf.mxu0
    %1770 = vmatprep.mubr.bf16.mxu0 0
    %1771 = vmatmul.mubr.bf16.gmra.mxu0 %v1685
    %v1772 = vpop.f32.mrf.mxu0
    %v1773 = vadd.f32 0.0, %v1772
    %v1774 = vpop.f32.mrf.mxu0
    %v1775 = vpop.f32.mrf.mxu0
    %v1776 = vadd.f32 0.0, %v1775
    %v1777 = vpop.f32.mrf.mxu0
    %1778 = vmatprep.mubr.bf16.mxu0 0
    %1779 = vmatmul.mubr.bf16.gmra.mxu0 %v1688
    %v1780 = vpop.f32.mrf.mxu0
    %v1781 = vadd.f32 0.0, %v1780
    %v1782 = vpop.f32.mrf.mxu0
    %v1783 = vpop.f32.mrf.mxu0
    %v1784 = vadd.f32 0.0, %v1783
    %v1785 = vpop.f32.mrf.mxu0
    %1786 = vdwg.mxu0
    %v1787 = vpack.c.bf16 %v1728, %v1725
    %v1788 = vpack.c.bf16 %v1736, %v1733
    %v1789 = vpack.c.bf16 %v1744, %v1741
    %v1790 = vpack.c.bf16 %v1752, %v1749
    %v1791 = vpack.c.bf16 %v1760, %v1757
    %v1792 = vpack.c.bf16 %v1768, %v1765
    %v1793 = vpack.c.bf16 %v1776, %v1773
    %v1794 = vpack.c.bf16 %v1784, %v1781
    %s1795 = scalar_lea.vmem %s3, 4
    %v1796 = vld [vmem:[%s1795] sm:$0x1]
    %v1798 = vlaneseq
    %v1799 = vshrl.u32 %v1798, 7
    %v1800 = vsub.s32 0, %v1799
    %v1801 = vrot.slane %v1796, %v1800
    %1803 = vmatprep.subr.bf16.mxu0 0
    %1804 = vmatpush1.bf16.msra.mxu0 %v1794
    %1805 = vmatprep.subr.bf16.mxu0 0
    %1806 = vmatpush1.bf16.msra.mxu0 %v1793
    %1807 = vmatprep.subr.bf16.mxu0 0
    %1808 = vmatpush1.bf16.msra.mxu0 %v1792
    %1809 = vmatprep.subr.bf16.mxu0 0
    %1810 = vmatpush1.bf16.msra.mxu0 %v1791
    %1811 = vmatprep.subr.bf16.mxu0 0
    %1812 = vmatpush1.bf16.msra.mxu0 %v1790
    %1813 = vmatprep.subr.bf16.mxu0 0
    %1814 = vmatpush1.bf16.msra.mxu0 %v1789
    %1815 = vmatprep.subr.bf16.mxu0 0
    %1816 = vmatpush1.bf16.msra.mxu0 %v1788
    %1817 = vmatprep.subr.bf16.mxu0 0
    %1818 = vmatpush1.bf16.msra.mxu0 %v1787
    %1819 = vmatprep.subr.bf16.mxu0 0
    %1820 = vmatpush2.bf16.msra.mxu0 0
    %1821 = vmatprep.subr.bf16.mxu0 0
    %1822 = vmatpush2.bf16.msra.mxu0 0
    %1823 = vmatprep.subr.bf16.mxu0 0
    %1824 = vmatpush2.bf16.msra.mxu0 0
    %1825 = vmatprep.subr.bf16.mxu0 0
    %1826 = vmatpush2.bf16.msra.mxu0 0
    %1827 = vmatprep.subr.bf16.mxu0 0
    %1828 = vmatpush2.bf16.msra.mxu0 0
    %1829 = vmatprep.subr.bf16.mxu0 0
    %1830 = vmatpush2.bf16.msra.mxu0 0
    %1831 = vmatprep.subr.bf16.mxu0 0
    %1832 = vmatpush2.bf16.msra.mxu0 0
    %1833 = vmatprep.subr.bf16.mxu0 0
    %1834 = vmatpush2.bf16.msra.mxu0 0
    %1835 = vmatprep.mubr.bf16.mxu0 0
    %1836 = vmatmul.mubr.bf16.gmra.mxu0 %v106
    %v1837 = vpop.f32.mrf.mxu0
    %v1838 = vadd.f32 %v1801, %v1837
    %v1839 = vpop.f32.mrf.mxu0
    %v1840 = vpop.f32.mrf.mxu0
    %v1841 = vadd.f32 %v1801, %v1840
    %v1842 = vpop.f32.mrf.mxu0
    %1843 = vmatprep.mubr.bf16.mxu0 0
    %1844 = vmatmul.mubr.bf16.gmra.mxu0 %v107
    %v1845 = vpop.f32.mrf.mxu0
    %v1846 = vadd.f32 %v1801, %v1845
    %v1847 = vpop.f32.mrf.mxu0
    %v1848 = vpop.f32.mrf.mxu0
    %v1849 = vadd.f32 %v1801, %v1848
    %v1850 = vpop.f32.mrf.mxu0
    %1851 = vmatprep.mubr.bf16.mxu0 0
    %1852 = vmatmul.mubr.bf16.gmra.mxu0 %v108
    %v1853 = vpop.f32.mrf.mxu0
    %v1854 = vadd.f32 %v1801, %v1853
    %v1855 = vpop.f32.mrf.mxu0
    %v1856 = vpop.f32.mrf.mxu0
    %v1857 = vadd.f32 %v1801, %v1856
    %v1858 = vpop.f32.mrf.mxu0
    %1859 = vmatprep.mubr.bf16.mxu0 0
    %1860 = vmatmul.mubr.bf16.gmra.mxu0 %v109
    %v1861 = vpop.f32.mrf.mxu0
    %v1862 = vadd.f32 %v1801, %v1861
    %v1863 = vpop.f32.mrf.mxu0
    %v1864 = vpop.f32.mrf.mxu0
    %v1865 = vadd.f32 %v1801, %v1864
    %v1866 = vpop.f32.mrf.mxu0
    %1867 = vmatprep.mubr.bf16.mxu0 0
    %1868 = vmatmul.mubr.bf16.gmra.mxu0 %v110
    %v1869 = vpop.f32.mrf.mxu0
    %v1870 = vadd.f32 %v1801, %v1869
    %v1871 = vpop.f32.mrf.mxu0
    %v1872 = vpop.f32.mrf.mxu0
    %v1873 = vadd.f32 %v1801, %v1872
    %v1874 = vpop.f32.mrf.mxu0
    %1875 = vmatprep.mubr.bf16.mxu0 0
    %1876 = vmatmul.mubr.bf16.gmra.mxu0 %v111
    %v1877 = vpop.f32.mrf.mxu0
    %v1878 = vadd.f32 %v1801, %v1877
    %v1879 = vpop.f32.mrf.mxu0
    %v1880 = vpop.f32.mrf.mxu0
    %v1881 = vadd.f32 %v1801, %v1880
    %v1882 = vpop.f32.mrf.mxu0
    %1883 = vmatprep.mubr.bf16.mxu0 0
    %1884 = vmatmul.mubr.bf16.gmra.mxu0 %v112
    %v1885 = vpop.f32.mrf.mxu0
    %v1886 = vadd.f32 %v1801, %v1885
    %v1887 = vpop.f32.mrf.mxu0
    %v1888 = vpop.f32.mrf.mxu0
    %v1889 = vadd.f32 %v1801, %v1888
    %v1890 = vpop.f32.mrf.mxu0
    %1891 = vmatprep.mubr.bf16.mxu0 0
    %1892 = vmatmul.mubr.bf16.gmra.mxu0 %v113
    %v1893 = vpop.f32.mrf.mxu0
    %v1894 = vadd.f32 %v1801, %v1893
    %v1895 = vpop.f32.mrf.mxu0
    %v1896 = vpop.f32.mrf.mxu0
    %v1897 = vadd.f32 %v1801, %v1896
    %v1898 = vpop.f32.mrf.mxu0
    %1899 = vdwg.mxu0
    %v1900 = vmax.f32 %v1838, 0.0
    %v1901 = vmax.f32 %v1841, 0.0
    %v1902 = vmax.f32 %v1846, 0.0
    %v1903 = vmax.f32 %v1849, 0.0
    %v1904 = vmax.f32 %v1854, 0.0
    %v1905 = vmax.f32 %v1857, 0.0
    %v1906 = vmax.f32 %v1862, 0.0
    %v1907 = vmax.f32 %v1865, 0.0
    %v1908 = vmax.f32 %v1870, 0.0
    %v1909 = vmax.f32 %v1873, 0.0
    %v1910 = vmax.f32 %v1878, 0.0
    %v1911 = vmax.f32 %v1881, 0.0
    %v1912 = vmax.f32 %v1886, 0.0
    %v1913 = vmax.f32 %v1889, 0.0
    %v1914 = vmax.f32 %v1894, 0.0
    %v1915 = vmax.f32 %v1897, 0.0
    %v1916 = vpack.c.bf16 %v1901, %v1900
    %v1917 = vpack.c.bf16 %v1903, %v1902
    %v1918 = vpack.c.bf16 %v1905, %v1904
    %v1919 = vpack.c.bf16 %v1907, %v1906
    %v1920 = vpack.c.bf16 %v1909, %v1908
    %v1921 = vpack.c.bf16 %v1911, %v1910
    %v1922 = vpack.c.bf16 %v1913, %v1912
    %v1923 = vpack.c.bf16 %v1915, %v1914
    %1924 = vmatprep.subr.bf16.mxu0 0
    %1925 = vmatpush1.bf16.msra.mxu0 %v1923
    %1926 = vmatprep.subr.bf16.mxu0 0
    %1927 = vmatpush1.bf16.msra.mxu0 %v1922
    %1928 = vmatprep.subr.bf16.mxu0 0
    %1929 = vmatpush1.bf16.msra.mxu0 %v1921
    %1930 = vmatprep.subr.bf16.mxu0 0
    %1931 = vmatpush1.bf16.msra.mxu0 %v1920
    %1932 = vmatprep.subr.bf16.mxu0 0
    %1933 = vmatpush1.bf16.msra.mxu0 %v1919
    %1934 = vmatprep.subr.bf16.mxu0 0
    %1935 = vmatpush1.bf16.msra.mxu0 %v1918
    %1936 = vmatprep.subr.bf16.mxu0 0
    %1937 = vmatpush1.bf16.msra.mxu0 %v1917
    %1938 = vmatprep.subr.bf16.mxu0 0
    %1939 = vmatpush1.bf16.msra.mxu0 %v1916
    %1940 = vmatprep.subr.bf16.mxu0 0
    %1941 = vmatpush2.bf16.msra.mxu0 0
    %1942 = vmatprep.subr.bf16.mxu0 0
    %1943 = vmatpush2.bf16.msra.mxu0 0
    %1944 = vmatprep.subr.bf16.mxu0 0
    %1945 = vmatpush2.bf16.msra.mxu0 0
    %1946 = vmatprep.subr.bf16.mxu0 0
    %1947 = vmatpush2.bf16.msra.mxu0 0
    %1948 = vmatprep.subr.bf16.mxu0 0
    %1949 = vmatpush2.bf16.msra.mxu0 0
    %1950 = vmatprep.subr.bf16.mxu0 0
    %1951 = vmatpush2.bf16.msra.mxu0 0
    %1952 = vmatprep.subr.bf16.mxu0 0
    %1953 = vmatpush2.bf16.msra.mxu0 0
    %1954 = vmatprep.subr.bf16.mxu0 0
    %1955 = vmatpush2.bf16.msra.mxu0 0
    %1956 = vmatprep.mubr.bf16.mxu0 0
    %1957 = vmatmul.mubr.bf16.gmra.mxu0 %v50
    %v1958 = vpop.f32.mrf.mxu0
    %v1959 = vadd.f32 0.0, %v1958
    %v1960 = vpop.f32.mrf.mxu0
    %v1961 = vpop.f32.mrf.mxu0
    %v1962 = vpop.f32.mrf.mxu0
    %1963 = vdwg.mxu0
    %v1964 = vpack.c.bf16 %v1959, %v1959
    %s1965 = scalar_lea.vmem %s5, 128
    %v1966 = vld [vmem:[%s1965] sm:$0xf]
    %v1967 = vld [vmem:[%s1965 + $0x4] sm:$0xf]
    %v1968 = vld [vmem:[%s1965 + $0x8] sm:$0xf]
    %v1969 = vld [vmem:[%s1965 + $0xc] sm:$0xf]
    %v1970 = vld [vmem:[%s1965 + $0x10] sm:$0xf]
    %v1971 = vld [vmem:[%s1965 + $0x14] sm:$0xf]
    %v1972 = vld [vmem:[%s1965 + $0x18] sm:$0xf]
    %v1973 = vld [vmem:[%s1965 + $0x1c] sm:$0xf]
    %v1982 = vunpack.c.l.b16 %v1966
    %v1983 = vunpack.c.l.b16 %v1967
    %v1984 = vunpack.c.l.b16 %v1968
    %v1985 = vunpack.c.l.b16 %v1969
    %v1986 = vunpack.c.l.b16 %v1970
    %v1987 = vunpack.c.l.b16 %v1971
    %v1988 = vunpack.c.l.b16 %v1972
    %v1989 = vunpack.c.l.b16 %v1973
    %v1990 = vpack.c.b16 %v1983, %v1982
    %v1991 = vpack.c.b16 %v1985, %v1984
    %v1992 = vpack.c.b16 %v1987, %v1986
    %v1993 = vpack.c.b16 %v1989, %v1988
    %v1999 = vsel %vm372, %v1964, 0
    %2001 = vmatprep.subr.bf16.mxu0 0
    %2002 = vmatpush1.bf16.msra.mxu0 0
    %2003 = vmatprep.subr.bf16.mxu0 0
    %2004 = vmatpush1.bf16.msra.mxu0 0
    %2005 = vmatprep.subr.bf16.mxu0 0
    %2006 = vmatpush1.bf16.msra.mxu0 0
    %2007 = vmatprep.subr.bf16.mxu0 0
    %2008 = vmatpush1.bf16.msra.mxu0 0
    %2009 = vmatprep.subr.bf16.mxu0 0
    %2010 = vmatpush1.bf16.msra.mxu0 %v1993
    %2011 = vmatprep.subr.bf16.mxu0 0
    %2012 = vmatpush1.bf16.msra.mxu0 %v1992
    %2013 = vmatprep.subr.bf16.mxu0 0
    %2014 = vmatpush1.bf16.msra.mxu0 %v1991
    %2015 = vmatprep.subr.bf16.mxu0 0
    %2016 = vmatpush1.bf16.msra.mxu0 %v1990
    %2017 = vmatprep.subr.bf16.mxu0 0
    %2018 = vmatpush2.bf16.msra.mxu0 0
    %2019 = vmatprep.subr.bf16.mxu0 0
    %2020 = vmatpush2.bf16.msra.mxu0 0
    %2021 = vmatprep.subr.bf16.mxu0 0
    %2022 = vmatpush2.bf16.msra.mxu0 0
    %2023 = vmatprep.subr.bf16.mxu0 0
    %2024 = vmatpush2.bf16.msra.mxu0 0
    %2025 = vmatprep.subr.bf16.mxu0 0
    %2026 = vmatpush2.bf16.msra.mxu0 0
    %2027 = vmatprep.subr.bf16.mxu0 0
    %2028 = vmatpush2.bf16.msra.mxu0 0
    %2029 = vmatprep.subr.bf16.mxu0 0
    %2030 = vmatpush2.bf16.msra.mxu0 0
    %2031 = vmatprep.subr.bf16.mxu0 0
    %2032 = vmatpush2.bf16.msra.mxu0 0
    %2033 = vmatprep.mubr.bf16.mxu0 0
    %2034 = vmatmul.mubr.bf16.gmra.mxu0 %v1999
    %v2035 = vpop.f32.mrf.mxu0
    %v2036 = vadd.f32 0.0, %v2035
    %v2037 = vpop.f32.mrf.mxu0
    %v2038 = vpop.f32.mrf.mxu0
    %v2039 = vpop.f32.mrf.mxu0
    %2040 = vdwg.mxu0
    %v2041 = vadd.f32 %v1632, %v2036
    %s2042 = scalar_lea.vmem %s2, 128
    %v2043 = vld [vmem:[%s2042] sm:$0xf]
    %v2044 = vld [vmem:[%s2042 + $0x4] sm:$0xf]
    %v2045 = vld [vmem:[%s2042 + $0x8] sm:$0xf]
    %v2046 = vld [vmem:[%s2042 + $0xc] sm:$0xf]
    %v2047 = vld [vmem:[%s2042 + $0x10] sm:$0xf]
    %v2048 = vld [vmem:[%s2042 + $0x14] sm:$0xf]
    %v2049 = vld [vmem:[%s2042 + $0x18] sm:$0xf]
    %v2050 = vld [vmem:[%s2042 + $0x1c] sm:$0xf]
    %v2059 = vunpack.c.l.b16 %v2043
    %v2060 = vunpack.c.l.b16 %v2044
    %v2061 = vunpack.c.l.b16 %v2045
    %v2062 = vunpack.c.l.b16 %v2046
    %v2063 = vunpack.c.l.b16 %v2047
    %v2064 = vunpack.c.l.b16 %v2048
    %v2065 = vunpack.c.l.b16 %v2049
    %v2066 = vunpack.c.l.b16 %v2050
    %v2067 = vpack.c.b16 %v2060, %v2059
    %v2068 = vpack.c.b16 %v2062, %v2061
    %v2069 = vpack.c.b16 %v2064, %v2063
    %v2070 = vpack.c.b16 %v2066, %v2065
    %v2076 = vsel %vm372, %v1916, 0
    %v2079 = vsel %vm372, %v1917, 0
    %v2082 = vsel %vm372, %v1918, 0
    %v2085 = vsel %vm372, %v1919, 0
    %v2088 = vsel %vm372, %v1920, 0
    %v2091 = vsel %vm372, %v1921, 0
    %v2094 = vsel %vm372, %v1922, 0
    %v2097 = vsel %vm372, %v1923, 0
    %2099 = vmatprep.subr.bf16.mxu0 0
    %2100 = vmatpush1.bf16.msra.mxu0 0
    %2101 = vmatprep.subr.bf16.mxu0 0
    %2102 = vmatpush1.bf16.msra.mxu0 0
    %2103 = vmatprep.subr.bf16.mxu0 0
    %2104 = vmatpush1.bf16.msra.mxu0 0
    %2105 = vmatprep.subr.bf16.mxu0 0
    %2106 = vmatpush1.bf16.msra.mxu0 0
    %2107 = vmatprep.subr.bf16.mxu0 0
    %2108 = vmatpush1.bf16.msra.mxu0 %v2070
    %2109 = vmatprep.subr.bf16.mxu0 0
    %2110 = vmatpush1.bf16.msra.mxu0 %v2069
    %2111 = vmatprep.subr.bf16.mxu0 0
    %2112 = vmatpush1.bf16.msra.mxu0 %v2068
    %2113 = vmatprep.subr.bf16.mxu0 0
    %2114 = vmatpush1.bf16.msra.mxu0 %v2067
    %2115 = vmatprep.subr.bf16.mxu0 0
    %2116 = vmatpush2.bf16.msra.mxu0 0
    %2117 = vmatprep.subr.bf16.mxu0 0
    %2118 = vmatpush2.bf16.msra.mxu0 0
    %2119 = vmatprep.subr.bf16.mxu0 0
    %2120 = vmatpush2.bf16.msra.mxu0 0
    %2121 = vmatprep.subr.bf16.mxu0 0
    %2122 = vmatpush2.bf16.msra.mxu0 0
    %2123 = vmatprep.subr.bf16.mxu0 0
    %2124 = vmatpush2.bf16.msra.mxu0 0
    %2125 = vmatprep.subr.bf16.mxu0 0
    %2126 = vmatpush2.bf16.msra.mxu0 0
    %2127 = vmatprep.subr.bf16.mxu0 0
    %2128 = vmatpush2.bf16.msra.mxu0 0
    %2129 = vmatprep.subr.bf16.mxu0 0
    %2130 = vmatpush2.bf16.msra.mxu0 0
    %2131 = vmatprep.mubr.bf16.mxu0 0
    %2132 = vmatmul.mubr.bf16.gmra.mxu0 %v2076
    %v2133 = vpop.f32.mrf.mxu0
    %v2134 = vadd.f32 0.0, %v2133
    %v2135 = vpop.f32.mrf.mxu0
    %v2136 = vpop.f32.mrf.mxu0
    %v2137 = vadd.f32 0.0, %v2136
    %v2138 = vpop.f32.mrf.mxu0
    %2139 = vmatprep.mubr.bf16.mxu0 0
    %2140 = vmatmul.mubr.bf16.gmra.mxu0 %v2079
    %v2141 = vpop.f32.mrf.mxu0
    %v2142 = vadd.f32 0.0, %v2141
    %v2143 = vpop.f32.mrf.mxu0
    %v2144 = vpop.f32.mrf.mxu0
    %v2145 = vadd.f32 0.0, %v2144
    %v2146 = vpop.f32.mrf.mxu0
    %2147 = vmatprep.mubr.bf16.mxu0 0
    %2148 = vmatmul.mubr.bf16.gmra.mxu0 %v2082
    %v2149 = vpop.f32.mrf.mxu0
    %v2150 = vadd.f32 0.0, %v2149
    %v2151 = vpop.f32.mrf.mxu0
    %v2152 = vpop.f32.mrf.mxu0
    %v2153 = vadd.f32 0.0, %v2152
    %v2154 = vpop.f32.mrf.mxu0
    %2155 = vmatprep.mubr.bf16.mxu0 0
    %2156 = vmatmul.mubr.bf16.gmra.mxu0 %v2085
    %v2157 = vpop.f32.mrf.mxu0
    %v2158 = vadd.f32 0.0, %v2157
    %v2159 = vpop.f32.mrf.mxu0
    %v2160 = vpop.f32.mrf.mxu0
    %v2161 = vadd.f32 0.0, %v2160
    %v2162 = vpop.f32.mrf.mxu0
    %2163 = vmatprep.mubr.bf16.mxu0 0
    %2164 = vmatmul.mubr.bf16.gmra.mxu0 %v2088
    %v2165 = vpop.f32.mrf.mxu0
    %v2166 = vadd.f32 0.0, %v2165
    %v2167 = vpop.f32.mrf.mxu0
    %v2168 = vpop.f32.mrf.mxu0
    %v2169 = vadd.f32 0.0, %v2168
    %v2170 = vpop.f32.mrf.mxu0
    %2171 = vmatprep.mubr.bf16.mxu0 0
    %2172 = vmatmul.mubr.bf16.gmra.mxu0 %v2091
    %v2173 = vpop.f32.mrf.mxu0
    %v2174 = vadd.f32 0.0, %v2173
    %v2175 = vpop.f32.mrf.mxu0
    %v2176 = vpop.f32.mrf.mxu0
    %v2177 = vadd.f32 0.0, %v2176
    %v2178 = vpop.f32.mrf.mxu0
    %2179 = vmatprep.mubr.bf16.mxu0 0
    %2180 = vmatmul.mubr.bf16.gmra.mxu0 %v2094
    %v2181 = vpop.f32.mrf.mxu0
    %v2182 = vadd.f32 0.0, %v2181
    %v2183 = vpop.f32.mrf.mxu0
    %v2184 = vpop.f32.mrf.mxu0
    %v2185 = vadd.f32 0.0, %v2184
    %v2186 = vpop.f32.mrf.mxu0
    %2187 = vmatprep.mubr.bf16.mxu0 0
    %2188 = vmatmul.mubr.bf16.gmra.mxu0 %v2097
    %v2189 = vpop.f32.mrf.mxu0
    %v2190 = vadd.f32 0.0, %v2189
    %v2191 = vpop.f32.mrf.mxu0
    %v2192 = vpop.f32.mrf.mxu0
    %v2193 = vadd.f32 0.0, %v2192
    %v2194 = vpop.f32.mrf.mxu0
    %2195 = vdwg.mxu0
    %v2196 = vpack.c.bf16 %v2137, %v2134
    %v2197 = vpack.c.bf16 %v2145, %v2142
    %v2198 = vpack.c.bf16 %v2153, %v2150
    %v2199 = vpack.c.bf16 %v2161, %v2158
    %v2200 = vpack.c.bf16 %v2169, %v2166
    %v2201 = vpack.c.bf16 %v2177, %v2174
    %v2202 = vpack.c.bf16 %v2185, %v2182
    %v2203 = vpack.c.bf16 %v2193, %v2190
    %s2204 = scalar_lea.vmem %s3, 5
    %v2205 = vld [vmem:[%s2204] sm:$0x1]
    %v2207 = vlaneseq
    %v2208 = vshrl.u32 %v2207, 7
    %v2209 = vsub.s32 0, %v2208
    %v2210 = vrot.slane %v2205, %v2209
    %2212 = vmatprep.subr.bf16.mxu0 0
    %2213 = vmatpush1.bf16.msra.mxu0 %v2203
    %2214 = vmatprep.subr.bf16.mxu0 0
    %2215 = vmatpush1.bf16.msra.mxu0 %v2202
    %2216 = vmatprep.subr.bf16.mxu0 0
    %2217 = vmatpush1.bf16.msra.mxu0 %v2201
    %2218 = vmatprep.subr.bf16.mxu0 0
    %2219 = vmatpush1.bf16.msra.mxu0 %v2200
    %2220 = vmatprep.subr.bf16.mxu0 0
    %2221 = vmatpush1.bf16.msra.mxu0 %v2199
    %2222 = vmatprep.subr.bf16.mxu0 0
    %2223 = vmatpush1.bf16.msra.mxu0 %v2198
    %2224 = vmatprep.subr.bf16.mxu0 0
    %2225 = vmatpush1.bf16.msra.mxu0 %v2197
    %2226 = vmatprep.subr.bf16.mxu0 0
    %2227 = vmatpush1.bf16.msra.mxu0 %v2196
    %2228 = vmatprep.subr.bf16.mxu0 0
    %2229 = vmatpush2.bf16.msra.mxu0 0
    %2230 = vmatprep.subr.bf16.mxu0 0
    %2231 = vmatpush2.bf16.msra.mxu0 0
    %2232 = vmatprep.subr.bf16.mxu0 0
    %2233 = vmatpush2.bf16.msra.mxu0 0
    %2234 = vmatprep.subr.bf16.mxu0 0
    %2235 = vmatpush2.bf16.msra.mxu0 0
    %2236 = vmatprep.subr.bf16.mxu0 0
    %2237 = vmatpush2.bf16.msra.mxu0 0
    %2238 = vmatprep.subr.bf16.mxu0 0
    %2239 = vmatpush2.bf16.msra.mxu0 0
    %2240 = vmatprep.subr.bf16.mxu0 0
    %2241 = vmatpush2.bf16.msra.mxu0 0
    %2242 = vmatprep.subr.bf16.mxu0 0
    %2243 = vmatpush2.bf16.msra.mxu0 0
    %2244 = vmatprep.mubr.bf16.mxu0 0
    %2245 = vmatmul.mubr.bf16.gmra.mxu0 %v106
    %v2246 = vpop.f32.mrf.mxu0
    %v2247 = vadd.f32 %v2210, %v2246
    %v2248 = vpop.f32.mrf.mxu0
    %v2249 = vpop.f32.mrf.mxu0
    %v2250 = vadd.f32 %v2210, %v2249
    %v2251 = vpop.f32.mrf.mxu0
    %2252 = vmatprep.mubr.bf16.mxu0 0
    %2253 = vmatmul.mubr.bf16.gmra.mxu0 %v107
    %v2254 = vpop.f32.mrf.mxu0
    %v2255 = vadd.f32 %v2210, %v2254
    %v2256 = vpop.f32.mrf.mxu0
    %v2257 = vpop.f32.mrf.mxu0
    %v2258 = vadd.f32 %v2210, %v2257
    %v2259 = vpop.f32.mrf.mxu0
    %2260 = vmatprep.mubr.bf16.mxu0 0
    %2261 = vmatmul.mubr.bf16.gmra.mxu0 %v108
    %v2262 = vpop.f32.mrf.mxu0
    %v2263 = vadd.f32 %v2210, %v2262
    %v2264 = vpop.f32.mrf.mxu0
    %v2265 = vpop.f32.mrf.mxu0
    %v2266 = vadd.f32 %v2210, %v2265
    %v2267 = vpop.f32.mrf.mxu0
    %2268 = vmatprep.mubr.bf16.mxu0 0
    %2269 = vmatmul.mubr.bf16.gmra.mxu0 %v109
    %v2270 = vpop.f32.mrf.mxu0
    %v2271 = vadd.f32 %v2210, %v2270
    %v2272 = vpop.f32.mrf.mxu0
    %v2273 = vpop.f32.mrf.mxu0
    %v2274 = vadd.f32 %v2210, %v2273
    %v2275 = vpop.f32.mrf.mxu0
    %2276 = vmatprep.mubr.bf16.mxu0 0
    %2277 = vmatmul.mubr.bf16.gmra.mxu0 %v110
    %v2278 = vpop.f32.mrf.mxu0
    %v2279 = vadd.f32 %v2210, %v2278
    %v2280 = vpop.f32.mrf.mxu0
    %v2281 = vpop.f32.mrf.mxu0
    %v2282 = vadd.f32 %v2210, %v2281
    %v2283 = vpop.f32.mrf.mxu0
    %2284 = vmatprep.mubr.bf16.mxu0 0
    %2285 = vmatmul.mubr.bf16.gmra.mxu0 %v111
    %v2286 = vpop.f32.mrf.mxu0
    %v2287 = vadd.f32 %v2210, %v2286
    %v2288 = vpop.f32.mrf.mxu0
    %v2289 = vpop.f32.mrf.mxu0
    %v2290 = vadd.f32 %v2210, %v2289
    %v2291 = vpop.f32.mrf.mxu0
    %2292 = vmatprep.mubr.bf16.mxu0 0
    %2293 = vmatmul.mubr.bf16.gmra.mxu0 %v112
    %v2294 = vpop.f32.mrf.mxu0
    %v2295 = vadd.f32 %v2210, %v2294
    %v2296 = vpop.f32.mrf.mxu0
    %v2297 = vpop.f32.mrf.mxu0
    %v2298 = vadd.f32 %v2210, %v2297
    %v2299 = vpop.f32.mrf.mxu0
    %2300 = vmatprep.mubr.bf16.mxu0 0
    %2301 = vmatmul.mubr.bf16.gmra.mxu0 %v113
    %v2302 = vpop.f32.mrf.mxu0
    %v2303 = vadd.f32 %v2210, %v2302
    %v2304 = vpop.f32.mrf.mxu0
    %v2305 = vpop.f32.mrf.mxu0
    %v2306 = vadd.f32 %v2210, %v2305
    %v2307 = vpop.f32.mrf.mxu0
    %2308 = vdwg.mxu0
    %v2309 = vmax.f32 %v2247, 0.0
    %v2310 = vmax.f32 %v2250, 0.0
    %v2311 = vmax.f32 %v2255, 0.0
    %v2312 = vmax.f32 %v2258, 0.0
    %v2313 = vmax.f32 %v2263, 0.0
    %v2314 = vmax.f32 %v2266, 0.0
    %v2315 = vmax.f32 %v2271, 0.0
    %v2316 = vmax.f32 %v2274, 0.0
    %v2317 = vmax.f32 %v2279, 0.0
    %v2318 = vmax.f32 %v2282, 0.0
    %v2319 = vmax.f32 %v2287, 0.0
    %v2320 = vmax.f32 %v2290, 0.0
    %v2321 = vmax.f32 %v2295, 0.0
    %v2322 = vmax.f32 %v2298, 0.0
    %v2323 = vmax.f32 %v2303, 0.0
    %v2324 = vmax.f32 %v2306, 0.0
    %v2325 = vpack.c.bf16 %v2310, %v2309
    %v2326 = vpack.c.bf16 %v2312, %v2311
    %v2327 = vpack.c.bf16 %v2314, %v2313
    %v2328 = vpack.c.bf16 %v2316, %v2315
    %v2329 = vpack.c.bf16 %v2318, %v2317
    %v2330 = vpack.c.bf16 %v2320, %v2319
    %v2331 = vpack.c.bf16 %v2322, %v2321
    %v2332 = vpack.c.bf16 %v2324, %v2323
    %2333 = vmatprep.subr.bf16.mxu0 0
    %2334 = vmatpush1.bf16.msra.mxu0 %v2332
    %2335 = vmatprep.subr.bf16.mxu0 0
    %2336 = vmatpush1.bf16.msra.mxu0 %v2331
    %2337 = vmatprep.subr.bf16.mxu0 0
    %2338 = vmatpush1.bf16.msra.mxu0 %v2330
    %2339 = vmatprep.subr.bf16.mxu0 0
    %2340 = vmatpush1.bf16.msra.mxu0 %v2329
    %2341 = vmatprep.subr.bf16.mxu0 0
    %2342 = vmatpush1.bf16.msra.mxu0 %v2328
    %2343 = vmatprep.subr.bf16.mxu0 0
    %2344 = vmatpush1.bf16.msra.mxu0 %v2327
    %2345 = vmatprep.subr.bf16.mxu0 0
    %2346 = vmatpush1.bf16.msra.mxu0 %v2326
    %2347 = vmatprep.subr.bf16.mxu0 0
    %2348 = vmatpush1.bf16.msra.mxu0 %v2325
    %2349 = vmatprep.subr.bf16.mxu0 0
    %2350 = vmatpush2.bf16.msra.mxu0 0
    %2351 = vmatprep.subr.bf16.mxu0 0
    %2352 = vmatpush2.bf16.msra.mxu0 0
    %2353 = vmatprep.subr.bf16.mxu0 0
    %2354 = vmatpush2.bf16.msra.mxu0 0
    %2355 = vmatprep.subr.bf16.mxu0 0
    %2356 = vmatpush2.bf16.msra.mxu0 0
    %2357 = vmatprep.subr.bf16.mxu0 0
    %2358 = vmatpush2.bf16.msra.mxu0 0
    %2359 = vmatprep.subr.bf16.mxu0 0
    %2360 = vmatpush2.bf16.msra.mxu0 0
    %2361 = vmatprep.subr.bf16.mxu0 0
    %2362 = vmatpush2.bf16.msra.mxu0 0
    %2363 = vmatprep.subr.bf16.mxu0 0
    %2364 = vmatpush2.bf16.msra.mxu0 0
    %2365 = vmatprep.mubr.bf16.mxu0 0
    %2366 = vmatmul.mubr.bf16.gmra.mxu0 %v50
    %v2367 = vpop.f32.mrf.mxu0
    %v2368 = vadd.f32 0.0, %v2367
    %v2369 = vpop.f32.mrf.mxu0
    %v2370 = vpop.f32.mrf.mxu0
    %v2371 = vpop.f32.mrf.mxu0
    %2372 = vdwg.mxu0
    %v2373 = vpack.c.bf16 %v2368, %v2368
    %s2374 = scalar_lea.vmem %s5, 160
    %v2375 = vld [vmem:[%s2374] sm:$0xf]
    %v2376 = vld [vmem:[%s2374 + $0x4] sm:$0xf]
    %v2377 = vld [vmem:[%s2374 + $0x8] sm:$0xf]
    %v2378 = vld [vmem:[%s2374 + $0xc] sm:$0xf]
    %v2379 = vld [vmem:[%s2374 + $0x10] sm:$0xf]
    %v2380 = vld [vmem:[%s2374 + $0x14] sm:$0xf]
    %v2381 = vld [vmem:[%s2374 + $0x18] sm:$0xf]
    %v2382 = vld [vmem:[%s2374 + $0x1c] sm:$0xf]
    %v2391 = vunpack.c.l.b16 %v2375
    %v2392 = vunpack.c.l.b16 %v2376
    %v2393 = vunpack.c.l.b16 %v2377
    %v2394 = vunpack.c.l.b16 %v2378
    %v2395 = vunpack.c.l.b16 %v2379
    %v2396 = vunpack.c.l.b16 %v2380
    %v2397 = vunpack.c.l.b16 %v2381
    %v2398 = vunpack.c.l.b16 %v2382
    %v2399 = vpack.c.b16 %v2392, %v2391
    %v2400 = vpack.c.b16 %v2394, %v2393
    %v2401 = vpack.c.b16 %v2396, %v2395
    %v2402 = vpack.c.b16 %v2398, %v2397
    %v2408 = vsel %vm372, %v2373, 0
    %2410 = vmatprep.subr.bf16.mxu0 0
    %2411 = vmatpush1.bf16.msra.mxu0 0
    %2412 = vmatprep.subr.bf16.mxu0 0
    %2413 = vmatpush1.bf16.msra.mxu0 0
    %2414 = vmatprep.subr.bf16.mxu0 0
    %2415 = vmatpush1.bf16.msra.mxu0 0
    %2416 = vmatprep.subr.bf16.mxu0 0
    %2417 = vmatpush1.bf16.msra.mxu0 0
    %2418 = vmatprep.subr.bf16.mxu0 0
    %2419 = vmatpush1.bf16.msra.mxu0 %v2402
    %2420 = vmatprep.subr.bf16.mxu0 0
    %2421 = vmatpush1.bf16.msra.mxu0 %v2401
    %2422 = vmatprep.subr.bf16.mxu0 0
    %2423 = vmatpush1.bf16.msra.mxu0 %v2400
    %2424 = vmatprep.subr.bf16.mxu0 0
    %2425 = vmatpush1.bf16.msra.mxu0 %v2399
    %2426 = vmatprep.subr.bf16.mxu0 0
    %2427 = vmatpush2.bf16.msra.mxu0 0
    %2428 = vmatprep.subr.bf16.mxu0 0
    %2429 = vmatpush2.bf16.msra.mxu0 0
    %2430 = vmatprep.subr.bf16.mxu0 0
    %2431 = vmatpush2.bf16.msra.mxu0 0
    %2432 = vmatprep.subr.bf16.mxu0 0
    %2433 = vmatpush2.bf16.msra.mxu0 0
    %2434 = vmatprep.subr.bf16.mxu0 0
    %2435 = vmatpush2.bf16.msra.mxu0 0
    %2436 = vmatprep.subr.bf16.mxu0 0
    %2437 = vmatpush2.bf16.msra.mxu0 0
    %2438 = vmatprep.subr.bf16.mxu0 0
    %2439 = vmatpush2.bf16.msra.mxu0 0
    %2440 = vmatprep.subr.bf16.mxu0 0
    %2441 = vmatpush2.bf16.msra.mxu0 0
    %2442 = vmatprep.mubr.bf16.mxu0 0
    %2443 = vmatmul.mubr.bf16.gmra.mxu0 %v2408
    %v2444 = vpop.f32.mrf.mxu0
    %v2445 = vadd.f32 0.0, %v2444
    %v2446 = vpop.f32.mrf.mxu0
    %v2447 = vpop.f32.mrf.mxu0
    %v2448 = vpop.f32.mrf.mxu0
    %2449 = vdwg.mxu0
    %v2450 = vadd.f32 %v2041, %v2445
    %s2451 = scalar_lea.vmem %s2, 160
    %v2452 = vld [vmem:[%s2451] sm:$0xf]
    %v2453 = vld [vmem:[%s2451 + $0x4] sm:$0xf]
    %v2454 = vld [vmem:[%s2451 + $0x8] sm:$0xf]
    %v2455 = vld [vmem:[%s2451 + $0xc] sm:$0xf]
    %v2456 = vld [vmem:[%s2451 + $0x10] sm:$0xf]
    %v2457 = vld [vmem:[%s2451 + $0x14] sm:$0xf]
    %v2458 = vld [vmem:[%s2451 + $0x18] sm:$0xf]
    %v2459 = vld [vmem:[%s2451 + $0x1c] sm:$0xf]
    %v2468 = vunpack.c.l.b16 %v2452
    %v2469 = vunpack.c.l.b16 %v2453
    %v2470 = vunpack.c.l.b16 %v2454
    %v2471 = vunpack.c.l.b16 %v2455
    %v2472 = vunpack.c.l.b16 %v2456
    %v2473 = vunpack.c.l.b16 %v2457
    %v2474 = vunpack.c.l.b16 %v2458
    %v2475 = vunpack.c.l.b16 %v2459
    %v2476 = vpack.c.b16 %v2469, %v2468
    %v2477 = vpack.c.b16 %v2471, %v2470
    %v2478 = vpack.c.b16 %v2473, %v2472
    %v2479 = vpack.c.b16 %v2475, %v2474
    %v2485 = vsel %vm372, %v2325, 0
    %v2488 = vsel %vm372, %v2326, 0
    %v2491 = vsel %vm372, %v2327, 0
    %v2494 = vsel %vm372, %v2328, 0
    %v2497 = vsel %vm372, %v2329, 0
    %v2500 = vsel %vm372, %v2330, 0
    %v2503 = vsel %vm372, %v2331, 0
    %v2506 = vsel %vm372, %v2332, 0
    %2508 = vmatprep.subr.bf16.mxu0 0
    %2509 = vmatpush1.bf16.msra.mxu0 0
    %2510 = vmatprep.subr.bf16.mxu0 0
    %2511 = vmatpush1.bf16.msra.mxu0 0
    %2512 = vmatprep.subr.bf16.mxu0 0
    %2513 = vmatpush1.bf16.msra.mxu0 0
    %2514 = vmatprep.subr.bf16.mxu0 0
    %2515 = vmatpush1.bf16.msra.mxu0 0
    %2516 = vmatprep.subr.bf16.mxu0 0
    %2517 = vmatpush1.bf16.msra.mxu0 %v2479
    %2518 = vmatprep.subr.bf16.mxu0 0
    %2519 = vmatpush1.bf16.msra.mxu0 %v2478
    %2520 = vmatprep.subr.bf16.mxu0 0
    %2521 = vmatpush1.bf16.msra.mxu0 %v2477
    %2522 = vmatprep.subr.bf16.mxu0 0
    %2523 = vmatpush1.bf16.msra.mxu0 %v2476
    %2524 = vmatprep.subr.bf16.mxu0 0
    %2525 = vmatpush2.bf16.msra.mxu0 0
    %2526 = vmatprep.subr.bf16.mxu0 0
    %2527 = vmatpush2.bf16.msra.mxu0 0
    %2528 = vmatprep.subr.bf16.mxu0 0
    %2529 = vmatpush2.bf16.msra.mxu0 0
    %2530 = vmatprep.subr.bf16.mxu0 0
    %2531 = vmatpush2.bf16.msra.mxu0 0
    %2532 = vmatprep.subr.bf16.mxu0 0
    %2533 = vmatpush2.bf16.msra.mxu0 0
    %2534 = vmatprep.subr.bf16.mxu0 0
    %2535 = vmatpush2.bf16.msra.mxu0 0
    %2536 = vmatprep.subr.bf16.mxu0 0
    %2537 = vmatpush2.bf16.msra.mxu0 0
    %2538 = vmatprep.subr.bf16.mxu0 0
    %2539 = vmatpush2.bf16.msra.mxu0 0
    %2540 = vmatprep.mubr.bf16.mxu0 0
    %2541 = vmatmul.mubr.bf16.gmra.mxu0 %v2485
    %v2542 = vpop.f32.mrf.mxu0
    %v2543 = vadd.f32 0.0, %v2542
    %v2544 = vpop.f32.mrf.mxu0
    %v2545 = vpop.f32.mrf.mxu0
    %v2546 = vadd.f32 0.0, %v2545
    %v2547 = vpop.f32.mrf.mxu0
    %2548 = vmatprep.mubr.bf16.mxu0 0
    %2549 = vmatmul.mubr.bf16.gmra.mxu0 %v2488
    %v2550 = vpop.f32.mrf.mxu0
    %v2551 = vadd.f32 0.0, %v2550
    %v2552 = vpop.f32.mrf.mxu0
    %v2553 = vpop.f32.mrf.mxu0
    %v2554 = vadd.f32 0.0, %v2553
    %v2555 = vpop.f32.mrf.mxu0
    %2556 = vmatprep.mubr.bf16.mxu0 0
    %2557 = vmatmul.mubr.bf16.gmra.mxu0 %v2491
    %v2558 = vpop.f32.mrf.mxu0
    %v2559 = vadd.f32 0.0, %v2558
    %v2560 = vpop.f32.mrf.mxu0
    %v2561 = vpop.f32.mrf.mxu0
    %v2562 = vadd.f32 0.0, %v2561
    %v2563 = vpop.f32.mrf.mxu0
    %2564 = vmatprep.mubr.bf16.mxu0 0
    %2565 = vmatmul.mubr.bf16.gmra.mxu0 %v2494
    %v2566 = vpop.f32.mrf.mxu0
    %v2567 = vadd.f32 0.0, %v2566
    %v2568 = vpop.f32.mrf.mxu0
    %v2569 = vpop.f32.mrf.mxu0
    %v2570 = vadd.f32 0.0, %v2569
    %v2571 = vpop.f32.mrf.mxu0
    %2572 = vmatprep.mubr.bf16.mxu0 0
    %2573 = vmatmul.mubr.bf16.gmra.mxu0 %v2497
    %v2574 = vpop.f32.mrf.mxu0
    %v2575 = vadd.f32 0.0, %v2574
    %v2576 = vpop.f32.mrf.mxu0
    %v2577 = vpop.f32.mrf.mxu0
    %v2578 = vadd.f32 0.0, %v2577
    %v2579 = vpop.f32.mrf.mxu0
    %2580 = vmatprep.mubr.bf16.mxu0 0
    %2581 = vmatmul.mubr.bf16.gmra.mxu0 %v2500
    %v2582 = vpop.f32.mrf.mxu0
    %v2583 = vadd.f32 0.0, %v2582
    %v2584 = vpop.f32.mrf.mxu0
    %v2585 = vpop.f32.mrf.mxu0
    %v2586 = vadd.f32 0.0, %v2585
    %v2587 = vpop.f32.mrf.mxu0
    %2588 = vmatprep.mubr.bf16.mxu0 0
    %2589 = vmatmul.mubr.bf16.gmra.mxu0 %v2503
    %v2590 = vpop.f32.mrf.mxu0
    %v2591 = vadd.f32 0.0, %v2590
    %v2592 = vpop.f32.mrf.mxu0
    %v2593 = vpop.f32.mrf.mxu0
    %v2594 = vadd.f32 0.0, %v2593
    %v2595 = vpop.f32.mrf.mxu0
    %2596 = vmatprep.mubr.bf16.mxu0 0
    %2597 = vmatmul.mubr.bf16.gmra.mxu0 %v2506
    %v2598 = vpop.f32.mrf.mxu0
    %v2599 = vadd.f32 0.0, %v2598
    %v2600 = vpop.f32.mrf.mxu0
    %v2601 = vpop.f32.mrf.mxu0
    %v2602 = vadd.f32 0.0, %v2601
    %v2603 = vpop.f32.mrf.mxu0
    %2604 = vdwg.mxu0
    %v2605 = vpack.c.bf16 %v2546, %v2543
    %v2606 = vpack.c.bf16 %v2554, %v2551
    %v2607 = vpack.c.bf16 %v2562, %v2559
    %v2608 = vpack.c.bf16 %v2570, %v2567
    %v2609 = vpack.c.bf16 %v2578, %v2575
    %v2610 = vpack.c.bf16 %v2586, %v2583
    %v2611 = vpack.c.bf16 %v2594, %v2591
    %v2612 = vpack.c.bf16 %v2602, %v2599
    %s2613 = scalar_lea.vmem %s3, 6
    %v2614 = vld [vmem:[%s2613] sm:$0x1]
    %v2616 = vlaneseq
    %v2617 = vshrl.u32 %v2616, 7
    %v2618 = vsub.s32 0, %v2617
    %v2619 = vrot.slane %v2614, %v2618
    %2621 = vmatprep.subr.bf16.mxu0 0
    %2622 = vmatpush1.bf16.msra.mxu0 %v2612
    %2623 = vmatprep.subr.bf16.mxu0 0
    %2624 = vmatpush1.bf16.msra.mxu0 %v2611
    %2625 = vmatprep.subr.bf16.mxu0 0
    %2626 = vmatpush1.bf16.msra.mxu0 %v2610
    %2627 = vmatprep.subr.bf16.mxu0 0
    %2628 = vmatpush1.bf16.msra.mxu0 %v2609
    %2629 = vmatprep.subr.bf16.mxu0 0
    %2630 = vmatpush1.bf16.msra.mxu0 %v2608
    %2631 = vmatprep.subr.bf16.mxu0 0
    %2632 = vmatpush1.bf16.msra.mxu0 %v2607
    %2633 = vmatprep.subr.bf16.mxu0 0
    %2634 = vmatpush1.bf16.msra.mxu0 %v2606
    %2635 = vmatprep.subr.bf16.mxu0 0
    %2636 = vmatpush1.bf16.msra.mxu0 %v2605
    %2637 = vmatprep.subr.bf16.mxu0 0
    %2638 = vmatpush2.bf16.msra.mxu0 0
    %2639 = vmatprep.subr.bf16.mxu0 0
    %2640 = vmatpush2.bf16.msra.mxu0 0
    %2641 = vmatprep.subr.bf16.mxu0 0
    %2642 = vmatpush2.bf16.msra.mxu0 0
    %2643 = vmatprep.subr.bf16.mxu0 0
    %2644 = vmatpush2.bf16.msra.mxu0 0
    %2645 = vmatprep.subr.bf16.mxu0 0
    %2646 = vmatpush2.bf16.msra.mxu0 0
    %2647 = vmatprep.subr.bf16.mxu0 0
    %2648 = vmatpush2.bf16.msra.mxu0 0
    %2649 = vmatprep.subr.bf16.mxu0 0
    %2650 = vmatpush2.bf16.msra.mxu0 0
    %2651 = vmatprep.subr.bf16.mxu0 0
    %2652 = vmatpush2.bf16.msra.mxu0 0
    %2653 = vmatprep.mubr.bf16.mxu0 0
    %2654 = vmatmul.mubr.bf16.gmra.mxu0 %v106
    %v2655 = vpop.f32.mrf.mxu0
    %v2656 = vadd.f32 %v2619, %v2655
    %v2657 = vpop.f32.mrf.mxu0
    %v2658 = vpop.f32.mrf.mxu0
    %v2659 = vadd.f32 %v2619, %v2658
    %v2660 = vpop.f32.mrf.mxu0
    %2661 = vmatprep.mubr.bf16.mxu0 0
    %2662 = vmatmul.mubr.bf16.gmra.mxu0 %v107
    %v2663 = vpop.f32.mrf.mxu0
    %v2664 = vadd.f32 %v2619, %v2663
    %v2665 = vpop.f32.mrf.mxu0
    %v2666 = vpop.f32.mrf.mxu0
    %v2667 = vadd.f32 %v2619, %v2666
    %v2668 = vpop.f32.mrf.mxu0
    %2669 = vmatprep.mubr.bf16.mxu0 0
    %2670 = vmatmul.mubr.bf16.gmra.mxu0 %v108
    %v2671 = vpop.f32.mrf.mxu0
    %v2672 = vadd.f32 %v2619, %v2671
    %v2673 = vpop.f32.mrf.mxu0
    %v2674 = vpop.f32.mrf.mxu0
    %v2675 = vadd.f32 %v2619, %v2674
    %v2676 = vpop.f32.mrf.mxu0
    %2677 = vmatprep.mubr.bf16.mxu0 0
    %2678 = vmatmul.mubr.bf16.gmra.mxu0 %v109
    %v2679 = vpop.f32.mrf.mxu0
    %v2680 = vadd.f32 %v2619, %v2679
    %v2681 = vpop.f32.mrf.mxu0
    %v2682 = vpop.f32.mrf.mxu0
    %v2683 = vadd.f32 %v2619, %v2682
    %v2684 = vpop.f32.mrf.mxu0
    %2685 = vmatprep.mubr.bf16.mxu0 0
    %2686 = vmatmul.mubr.bf16.gmra.mxu0 %v110
    %v2687 = vpop.f32.mrf.mxu0
    %v2688 = vadd.f32 %v2619, %v2687
    %v2689 = vpop.f32.mrf.mxu0
    %v2690 = vpop.f32.mrf.mxu0
    %v2691 = vadd.f32 %v2619, %v2690
    %v2692 = vpop.f32.mrf.mxu0
    %2693 = vmatprep.mubr.bf16.mxu0 0
    %2694 = vmatmul.mubr.bf16.gmra.mxu0 %v111
    %v2695 = vpop.f32.mrf.mxu0
    %v2696 = vadd.f32 %v2619, %v2695
    %v2697 = vpop.f32.mrf.mxu0
    %v2698 = vpop.f32.mrf.mxu0
    %v2699 = vadd.f32 %v2619, %v2698
    %v2700 = vpop.f32.mrf.mxu0
    %2701 = vmatprep.mubr.bf16.mxu0 0
    %2702 = vmatmul.mubr.bf16.gmra.mxu0 %v112
    %v2703 = vpop.f32.mrf.mxu0
    %v2704 = vadd.f32 %v2619, %v2703
    %v2705 = vpop.f32.mrf.mxu0
    %v2706 = vpop.f32.mrf.mxu0
    %v2707 = vadd.f32 %v2619, %v2706
    %v2708 = vpop.f32.mrf.mxu0
    %2709 = vmatprep.mubr.bf16.mxu0 0
    %2710 = vmatmul.mubr.bf16.gmra.mxu0 %v113
    %v2711 = vpop.f32.mrf.mxu0
    %v2712 = vadd.f32 %v2619, %v2711
    %v2713 = vpop.f32.mrf.mxu0
    %v2714 = vpop.f32.mrf.mxu0
    %v2715 = vadd.f32 %v2619, %v2714
    %v2716 = vpop.f32.mrf.mxu0
    %2717 = vdwg.mxu0
    %v2718 = vmax.f32 %v2656, 0.0
    %v2719 = vmax.f32 %v2659, 0.0
    %v2720 = vmax.f32 %v2664, 0.0
    %v2721 = vmax.f32 %v2667, 0.0
    %v2722 = vmax.f32 %v2672, 0.0
    %v2723 = vmax.f32 %v2675, 0.0
    %v2724 = vmax.f32 %v2680, 0.0
    %v2725 = vmax.f32 %v2683, 0.0
    %v2726 = vmax.f32 %v2688, 0.0
    %v2727 = vmax.f32 %v2691, 0.0
    %v2728 = vmax.f32 %v2696, 0.0
    %v2729 = vmax.f32 %v2699, 0.0
    %v2730 = vmax.f32 %v2704, 0.0
    %v2731 = vmax.f32 %v2707, 0.0
    %v2732 = vmax.f32 %v2712, 0.0
    %v2733 = vmax.f32 %v2715, 0.0
    %v2734 = vpack.c.bf16 %v2719, %v2718
    %v2735 = vpack.c.bf16 %v2721, %v2720
    %v2736 = vpack.c.bf16 %v2723, %v2722
    %v2737 = vpack.c.bf16 %v2725, %v2724
    %v2738 = vpack.c.bf16 %v2727, %v2726
    %v2739 = vpack.c.bf16 %v2729, %v2728
    %v2740 = vpack.c.bf16 %v2731, %v2730
    %v2741 = vpack.c.bf16 %v2733, %v2732
    %2742 = vmatprep.subr.bf16.mxu0 0
    %2743 = vmatpush1.bf16.msra.mxu0 %v2741
    %2744 = vmatprep.subr.bf16.mxu0 0
    %2745 = vmatpush1.bf16.msra.mxu0 %v2740
    %2746 = vmatprep.subr.bf16.mxu0 0
    %2747 = vmatpush1.bf16.msra.mxu0 %v2739
    %2748 = vmatprep.subr.bf16.mxu0 0
    %2749 = vmatpush1.bf16.msra.mxu0 %v2738
    %2750 = vmatprep.subr.bf16.mxu0 0
    %2751 = vmatpush1.bf16.msra.mxu0 %v2737
    %2752 = vmatprep.subr.bf16.mxu0 0
    %2753 = vmatpush1.bf16.msra.mxu0 %v2736
    %2754 = vmatprep.subr.bf16.mxu0 0
    %2755 = vmatpush1.bf16.msra.mxu0 %v2735
    %2756 = vmatprep.subr.bf16.mxu0 0
    %2757 = vmatpush1.bf16.msra.mxu0 %v2734
    %2758 = vmatprep.subr.bf16.mxu0 0
    %2759 = vmatpush2.bf16.msra.mxu0 0
    %2760 = vmatprep.subr.bf16.mxu0 0
    %2761 = vmatpush2.bf16.msra.mxu0 0
    %2762 = vmatprep.subr.bf16.mxu0 0
    %2763 = vmatpush2.bf16.msra.mxu0 0
    %2764 = vmatprep.subr.bf16.mxu0 0
    %2765 = vmatpush2.bf16.msra.mxu0 0
    %2766 = vmatprep.subr.bf16.mxu0 0
    %2767 = vmatpush2.bf16.msra.mxu0 0
    %2768 = vmatprep.subr.bf16.mxu0 0
    %2769 = vmatpush2.bf16.msra.mxu0 0
    %2770 = vmatprep.subr.bf16.mxu0 0
    %2771 = vmatpush2.bf16.msra.mxu0 0
    %2772 = vmatprep.subr.bf16.mxu0 0
    %2773 = vmatpush2.bf16.msra.mxu0 0
    %2774 = vmatprep.mubr.bf16.mxu0 0
    %2775 = vmatmul.mubr.bf16.gmra.mxu0 %v50
    %v2776 = vpop.f32.mrf.mxu0
    %v2777 = vadd.f32 0.0, %v2776
    %v2778 = vpop.f32.mrf.mxu0
    %v2779 = vpop.f32.mrf.mxu0
    %v2780 = vpop.f32.mrf.mxu0
    %2781 = vdwg.mxu0
    %v2782 = vpack.c.bf16 %v2777, %v2777
    %s2783 = scalar_lea.vmem %s5, 192
    %v2784 = vld [vmem:[%s2783] sm:$0xf]
    %v2785 = vld [vmem:[%s2783 + $0x4] sm:$0xf]
    %v2786 = vld [vmem:[%s2783 + $0x8] sm:$0xf]
    %v2787 = vld [vmem:[%s2783 + $0xc] sm:$0xf]
    %v2788 = vld [vmem:[%s2783 + $0x10] sm:$0xf]
    %v2789 = vld [vmem:[%s2783 + $0x14] sm:$0xf]
    %v2790 = vld [vmem:[%s2783 + $0x18] sm:$0xf]
    %v2791 = vld [vmem:[%s2783 + $0x1c] sm:$0xf]
    %v2800 = vunpack.c.l.b16 %v2784
    %v2801 = vunpack.c.l.b16 %v2785
    %v2802 = vunpack.c.l.b16 %v2786
    %v2803 = vunpack.c.l.b16 %v2787
    %v2804 = vunpack.c.l.b16 %v2788
    %v2805 = vunpack.c.l.b16 %v2789
    %v2806 = vunpack.c.l.b16 %v2790
    %v2807 = vunpack.c.l.b16 %v2791
    %v2808 = vpack.c.b16 %v2801, %v2800
    %v2809 = vpack.c.b16 %v2803, %v2802
    %v2810 = vpack.c.b16 %v2805, %v2804
    %v2811 = vpack.c.b16 %v2807, %v2806
    %v2817 = vsel %vm372, %v2782, 0
    %2819 = vmatprep.subr.bf16.mxu0 0
    %2820 = vmatpush1.bf16.msra.mxu0 0
    %2821 = vmatprep.subr.bf16.mxu0 0
    %2822 = vmatpush1.bf16.msra.mxu0 0
    %2823 = vmatprep.subr.bf16.mxu0 0
    %2824 = vmatpush1.bf16.msra.mxu0 0
    %2825 = vmatprep.subr.bf16.mxu0 0
    %2826 = vmatpush1.bf16.msra.mxu0 0
    %2827 = vmatprep.subr.bf16.mxu0 0
    %2828 = vmatpush1.bf16.msra.mxu0 %v2811
    %2829 = vmatprep.subr.bf16.mxu0 0
    %2830 = vmatpush1.bf16.msra.mxu0 %v2810
    %2831 = vmatprep.subr.bf16.mxu0 0
    %2832 = vmatpush1.bf16.msra.mxu0 %v2809
    %2833 = vmatprep.subr.bf16.mxu0 0
    %2834 = vmatpush1.bf16.msra.mxu0 %v2808
    %2835 = vmatprep.subr.bf16.mxu0 0
    %2836 = vmatpush2.bf16.msra.mxu0 0
    %2837 = vmatprep.subr.bf16.mxu0 0
    %2838 = vmatpush2.bf16.msra.mxu0 0
    %2839 = vmatprep.subr.bf16.mxu0 0
    %2840 = vmatpush2.bf16.msra.mxu0 0
    %2841 = vmatprep.subr.bf16.mxu0 0
    %2842 = vmatpush2.bf16.msra.mxu0 0
    %2843 = vmatprep.subr.bf16.mxu0 0
    %2844 = vmatpush2.bf16.msra.mxu0 0
    %2845 = vmatprep.subr.bf16.mxu0 0
    %2846 = vmatpush2.bf16.msra.mxu0 0
    %2847 = vmatprep.subr.bf16.mxu0 0
    %2848 = vmatpush2.bf16.msra.mxu0 0
    %2849 = vmatprep.subr.bf16.mxu0 0
    %2850 = vmatpush2.bf16.msra.mxu0 0
    %2851 = vmatprep.mubr.bf16.mxu0 0
    %2852 = vmatmul.mubr.bf16.gmra.mxu0 %v2817
    %v2853 = vpop.f32.mrf.mxu0
    %v2854 = vadd.f32 0.0, %v2853
    %v2855 = vpop.f32.mrf.mxu0
    %v2856 = vpop.f32.mrf.mxu0
    %v2857 = vpop.f32.mrf.mxu0
    %2858 = vdwg.mxu0
    %v2859 = vadd.f32 %v2450, %v2854
    %s2860 = scalar_lea.vmem %s2, 192
    %v2861 = vld [vmem:[%s2860] sm:$0xf]
    %v2862 = vld [vmem:[%s2860 + $0x4] sm:$0xf]
    %v2863 = vld [vmem:[%s2860 + $0x8] sm:$0xf]
    %v2864 = vld [vmem:[%s2860 + $0xc] sm:$0xf]
    %v2865 = vld [vmem:[%s2860 + $0x10] sm:$0xf]
    %v2866 = vld [vmem:[%s2860 + $0x14] sm:$0xf]
    %v2867 = vld [vmem:[%s2860 + $0x18] sm:$0xf]
    %v2868 = vld [vmem:[%s2860 + $0x1c] sm:$0xf]
    %v2877 = vunpack.c.l.b16 %v2861
    %v2878 = vunpack.c.l.b16 %v2862
    %v2879 = vunpack.c.l.b16 %v2863
    %v2880 = vunpack.c.l.b16 %v2864
    %v2881 = vunpack.c.l.b16 %v2865
    %v2882 = vunpack.c.l.b16 %v2866
    %v2883 = vunpack.c.l.b16 %v2867
    %v2884 = vunpack.c.l.b16 %v2868
    %v2885 = vpack.c.b16 %v2878, %v2877
    %v2886 = vpack.c.b16 %v2880, %v2879
    %v2887 = vpack.c.b16 %v2882, %v2881
    %v2888 = vpack.c.b16 %v2884, %v2883
    %v2894 = vsel %vm372, %v2734, 0
    %v2897 = vsel %vm372, %v2735, 0
    %v2900 = vsel %vm372, %v2736, 0
    %v2903 = vsel %vm372, %v2737, 0
    %v2906 = vsel %vm372, %v2738, 0
    %v2909 = vsel %vm372, %v2739, 0
    %v2912 = vsel %vm372, %v2740, 0
    %v2915 = vsel %vm372, %v2741, 0
    %2917 = vmatprep.subr.bf16.mxu0 0
    %2918 = vmatpush1.bf16.msra.mxu0 0
    %2919 = vmatprep.subr.bf16.mxu0 0
    %2920 = vmatpush1.bf16.msra.mxu0 0
    %2921 = vmatprep.subr.bf16.mxu0 0
    %2922 = vmatpush1.bf16.msra.mxu0 0
    %2923 = vmatprep.subr.bf16.mxu0 0
    %2924 = vmatpush1.bf16.msra.mxu0 0
    %2925 = vmatprep.subr.bf16.mxu0 0
    %2926 = vmatpush1.bf16.msra.mxu0 %v2888
    %2927 = vmatprep.subr.bf16.mxu0 0
    %2928 = vmatpush1.bf16.msra.mxu0 %v2887
    %2929 = vmatprep.subr.bf16.mxu0 0
    %2930 = vmatpush1.bf16.msra.mxu0 %v2886
    %2931 = vmatprep.subr.bf16.mxu0 0
    %2932 = vmatpush1.bf16.msra.mxu0 %v2885
    %2933 = vmatprep.subr.bf16.mxu0 0
    %2934 = vmatpush2.bf16.msra.mxu0 0
    %2935 = vmatprep.subr.bf16.mxu0 0
    %2936 = vmatpush2.bf16.msra.mxu0 0
    %2937 = vmatprep.subr.bf16.mxu0 0
    %2938 = vmatpush2.bf16.msra.mxu0 0
    %2939 = vmatprep.subr.bf16.mxu0 0
    %2940 = vmatpush2.bf16.msra.mxu0 0
    %2941 = vmatprep.subr.bf16.mxu0 0
    %2942 = vmatpush2.bf16.msra.mxu0 0
    %2943 = vmatprep.subr.bf16.mxu0 0
    %2944 = vmatpush2.bf16.msra.mxu0 0
    %2945 = vmatprep.subr.bf16.mxu0 0
    %2946 = vmatpush2.bf16.msra.mxu0 0
    %2947 = vmatprep.subr.bf16.mxu0 0
    %2948 = vmatpush2.bf16.msra.mxu0 0
    %2949 = vmatprep.mubr.bf16.mxu0 0
    %2950 = vmatmul.mubr.bf16.gmra.mxu0 %v2894
    %v2951 = vpop.f32.mrf.mxu0
    %v2952 = vadd.f32 0.0, %v2951
    %v2953 = vpop.f32.mrf.mxu0
    %v2954 = vpop.f32.mrf.mxu0
    %v2955 = vadd.f32 0.0, %v2954
    %v2956 = vpop.f32.mrf.mxu0
    %2957 = vmatprep.mubr.bf16.mxu0 0
    %2958 = vmatmul.mubr.bf16.gmra.mxu0 %v2897
    %v2959 = vpop.f32.mrf.mxu0
    %v2960 = vadd.f32 0.0, %v2959
    %v2961 = vpop.f32.mrf.mxu0
    %v2962 = vpop.f32.mrf.mxu0
    %v2963 = vadd.f32 0.0, %v2962
    %v2964 = vpop.f32.mrf.mxu0
    %2965 = vmatprep.mubr.bf16.mxu0 0
    %2966 = vmatmul.mubr.bf16.gmra.mxu0 %v2900
    %v2967 = vpop.f32.mrf.mxu0
    %v2968 = vadd.f32 0.0, %v2967
    %v2969 = vpop.f32.mrf.mxu0
    %v2970 = vpop.f32.mrf.mxu0
    %v2971 = vadd.f32 0.0, %v2970
    %v2972 = vpop.f32.mrf.mxu0
    %2973 = vmatprep.mubr.bf16.mxu0 0
    %2974 = vmatmul.mubr.bf16.gmra.mxu0 %v2903
    %v2975 = vpop.f32.mrf.mxu0
    %v2976 = vadd.f32 0.0, %v2975
    %v2977 = vpop.f32.mrf.mxu0
    %v2978 = vpop.f32.mrf.mxu0
    %v2979 = vadd.f32 0.0, %v2978
    %v2980 = vpop.f32.mrf.mxu0
    %2981 = vmatprep.mubr.bf16.mxu0 0
    %2982 = vmatmul.mubr.bf16.gmra.mxu0 %v2906
    %v2983 = vpop.f32.mrf.mxu0
    %v2984 = vadd.f32 0.0, %v2983
    %v2985 = vpop.f32.mrf.mxu0
    %v2986 = vpop.f32.mrf.mxu0
    %v2987 = vadd.f32 0.0, %v2986
    %v2988 = vpop.f32.mrf.mxu0
    %2989 = vmatprep.mubr.bf16.mxu0 0
    %2990 = vmatmul.mubr.bf16.gmra.mxu0 %v2909
    %v2991 = vpop.f32.mrf.mxu0
    %v2992 = vadd.f32 0.0, %v2991
    %v2993 = vpop.f32.mrf.mxu0
    %v2994 = vpop.f32.mrf.mxu0
    %v2995 = vadd.f32 0.0, %v2994
    %v2996 = vpop.f32.mrf.mxu0
    %2997 = vmatprep.mubr.bf16.mxu0 0
    %2998 = vmatmul.mubr.bf16.gmra.mxu0 %v2912
    %v2999 = vpop.f32.mrf.mxu0
    %v3000 = vadd.f32 0.0, %v2999
    %v3001 = vpop.f32.mrf.mxu0
    %v3002 = vpop.f32.mrf.mxu0
    %v3003 = vadd.f32 0.0, %v3002
    %v3004 = vpop.f32.mrf.mxu0
    %3005 = vmatprep.mubr.bf16.mxu0 0
    %3006 = vmatmul.mubr.bf16.gmra.mxu0 %v2915
    %v3007 = vpop.f32.mrf.mxu0
    %v3008 = vadd.f32 0.0, %v3007
    %v3009 = vpop.f32.mrf.mxu0
    %v3010 = vpop.f32.mrf.mxu0
    %v3011 = vadd.f32 0.0, %v3010
    %v3012 = vpop.f32.mrf.mxu0
    %3013 = vdwg.mxu0
    %v3014 = vpack.c.bf16 %v2955, %v2952
    %v3015 = vpack.c.bf16 %v2963, %v2960
    %v3016 = vpack.c.bf16 %v2971, %v2968
    %v3017 = vpack.c.bf16 %v2979, %v2976
    %v3018 = vpack.c.bf16 %v2987, %v2984
    %v3019 = vpack.c.bf16 %v2995, %v2992
    %v3020 = vpack.c.bf16 %v3003, %v3000
    %v3021 = vpack.c.bf16 %v3011, %v3008
    %s3022 = scalar_lea.vmem %s3, 7
    %v3023 = vld [vmem:[%s3022] sm:$0x1]
    %v3025 = vlaneseq
    %v3026 = vshrl.u32 %v3025, 7
    %v3027 = vsub.s32 0, %v3026
    %v3028 = vrot.slane %v3023, %v3027
    %3030 = vmatprep.subr.bf16.mxu0 0
    %3031 = vmatpush1.bf16.msra.mxu0 %v3021
    %3032 = vmatprep.subr.bf16.mxu0 0
    %3033 = vmatpush1.bf16.msra.mxu0 %v3020
    %3034 = vmatprep.subr.bf16.mxu0 0
    %3035 = vmatpush1.bf16.msra.mxu0 %v3019
    %3036 = vmatprep.subr.bf16.mxu0 0
    %3037 = vmatpush1.bf16.msra.mxu0 %v3018
    %3038 = vmatprep.subr.bf16.mxu0 0
    %3039 = vmatpush1.bf16.msra.mxu0 %v3017
    %3040 = vmatprep.subr.bf16.mxu0 0
    %3041 = vmatpush1.bf16.msra.mxu0 %v3016
    %3042 = vmatprep.subr.bf16.mxu0 0
    %3043 = vmatpush1.bf16.msra.mxu0 %v3015
    %3044 = vmatprep.subr.bf16.mxu0 0
    %3045 = vmatpush1.bf16.msra.mxu0 %v3014
    %3046 = vmatprep.subr.bf16.mxu0 0
    %3047 = vmatpush2.bf16.msra.mxu0 0
    %3048 = vmatprep.subr.bf16.mxu0 0
    %3049 = vmatpush2.bf16.msra.mxu0 0
    %3050 = vmatprep.subr.bf16.mxu0 0
    %3051 = vmatpush2.bf16.msra.mxu0 0
    %3052 = vmatprep.subr.bf16.mxu0 0
    %3053 = vmatpush2.bf16.msra.mxu0 0
    %3054 = vmatprep.subr.bf16.mxu0 0
    %3055 = vmatpush2.bf16.msra.mxu0 0
    %3056 = vmatprep.subr.bf16.mxu0 0
    %3057 = vmatpush2.bf16.msra.mxu0 0
    %3058 = vmatprep.subr.bf16.mxu0 0
    %3059 = vmatpush2.bf16.msra.mxu0 0
    %3060 = vmatprep.subr.bf16.mxu0 0
    %3061 = vmatpush2.bf16.msra.mxu0 0
    %3062 = vmatprep.mubr.bf16.mxu0 0
    %3063 = vmatmul.mubr.bf16.gmra.mxu0 %v106
    %v3064 = vpop.f32.mrf.mxu0
    %v3065 = vadd.f32 %v3028, %v3064
    %v3066 = vpop.f32.mrf.mxu0
    %v3067 = vpop.f32.mrf.mxu0
    %v3068 = vadd.f32 %v3028, %v3067
    %v3069 = vpop.f32.mrf.mxu0
    %3070 = vmatprep.mubr.bf16.mxu0 0
    %3071 = vmatmul.mubr.bf16.gmra.mxu0 %v107
    %v3072 = vpop.f32.mrf.mxu0
    %v3073 = vadd.f32 %v3028, %v3072
    %v3074 = vpop.f32.mrf.mxu0
    %v3075 = vpop.f32.mrf.mxu0
    %v3076 = vadd.f32 %v3028, %v3075
    %v3077 = vpop.f32.mrf.mxu0
    %3078 = vmatprep.mubr.bf16.mxu0 0
    %3079 = vmatmul.mubr.bf16.gmra.mxu0 %v108
    %v3080 = vpop.f32.mrf.mxu0
    %v3081 = vadd.f32 %v3028, %v3080
    %v3082 = vpop.f32.mrf.mxu0
    %v3083 = vpop.f32.mrf.mxu0
    %v3084 = vadd.f32 %v3028, %v3083
    %v3085 = vpop.f32.mrf.mxu0
    %3086 = vmatprep.mubr.bf16.mxu0 0
    %3087 = vmatmul.mubr.bf16.gmra.mxu0 %v109
    %v3088 = vpop.f32.mrf.mxu0
    %v3089 = vadd.f32 %v3028, %v3088
    %v3090 = vpop.f32.mrf.mxu0
    %v3091 = vpop.f32.mrf.mxu0
    %v3092 = vadd.f32 %v3028, %v3091
    %v3093 = vpop.f32.mrf.mxu0
    %3094 = vmatprep.mubr.bf16.mxu0 0
    %3095 = vmatmul.mubr.bf16.gmra.mxu0 %v110
    %v3096 = vpop.f32.mrf.mxu0
    %v3097 = vadd.f32 %v3028, %v3096
    %v3098 = vpop.f32.mrf.mxu0
    %v3099 = vpop.f32.mrf.mxu0
    %v3100 = vadd.f32 %v3028, %v3099
    %v3101 = vpop.f32.mrf.mxu0
    %3102 = vmatprep.mubr.bf16.mxu0 0
    %3103 = vmatmul.mubr.bf16.gmra.mxu0 %v111
    %v3104 = vpop.f32.mrf.mxu0
    %v3105 = vadd.f32 %v3028, %v3104
    %v3106 = vpop.f32.mrf.mxu0
    %v3107 = vpop.f32.mrf.mxu0
    %v3108 = vadd.f32 %v3028, %v3107
    %v3109 = vpop.f32.mrf.mxu0
    %3110 = vmatprep.mubr.bf16.mxu0 0
    %3111 = vmatmul.mubr.bf16.gmra.mxu0 %v112
    %v3112 = vpop.f32.mrf.mxu0
    %v3113 = vadd.f32 %v3028, %v3112
    %v3114 = vpop.f32.mrf.mxu0
    %v3115 = vpop.f32.mrf.mxu0
    %v3116 = vadd.f32 %v3028, %v3115
    %v3117 = vpop.f32.mrf.mxu0
    %3118 = vmatprep.mubr.bf16.mxu0 0
    %3119 = vmatmul.mubr.bf16.gmra.mxu0 %v113
    %v3120 = vpop.f32.mrf.mxu0
    %v3121 = vadd.f32 %v3028, %v3120
    %v3122 = vpop.f32.mrf.mxu0
    %v3123 = vpop.f32.mrf.mxu0
    %v3124 = vadd.f32 %v3028, %v3123
    %v3125 = vpop.f32.mrf.mxu0
    %3126 = vdwg.mxu0
    %v3127 = vmax.f32 %v3065, 0.0
    %v3128 = vmax.f32 %v3068, 0.0
    %v3129 = vmax.f32 %v3073, 0.0
    %v3130 = vmax.f32 %v3076, 0.0
    %v3131 = vmax.f32 %v3081, 0.0
    %v3132 = vmax.f32 %v3084, 0.0
    %v3133 = vmax.f32 %v3089, 0.0
    %v3134 = vmax.f32 %v3092, 0.0
    %v3135 = vmax.f32 %v3097, 0.0
    %v3136 = vmax.f32 %v3100, 0.0
    %v3137 = vmax.f32 %v3105, 0.0
    %v3138 = vmax.f32 %v3108, 0.0
    %v3139 = vmax.f32 %v3113, 0.0
    %v3140 = vmax.f32 %v3116, 0.0
    %v3141 = vmax.f32 %v3121, 0.0
    %v3142 = vmax.f32 %v3124, 0.0
    %v3143 = vpack.c.bf16 %v3128, %v3127
    %v3144 = vpack.c.bf16 %v3130, %v3129
    %v3145 = vpack.c.bf16 %v3132, %v3131
    %v3146 = vpack.c.bf16 %v3134, %v3133
    %v3147 = vpack.c.bf16 %v3136, %v3135
    %v3148 = vpack.c.bf16 %v3138, %v3137
    %v3149 = vpack.c.bf16 %v3140, %v3139
    %v3150 = vpack.c.bf16 %v3142, %v3141
    %3151 = vmatprep.subr.bf16.mxu0 0
    %3152 = vmatpush1.bf16.msra.mxu0 %v3150
    %3153 = vmatprep.subr.bf16.mxu0 0
    %3154 = vmatpush1.bf16.msra.mxu0 %v3149
    %3155 = vmatprep.subr.bf16.mxu0 0
    %3156 = vmatpush1.bf16.msra.mxu0 %v3148
    %3157 = vmatprep.subr.bf16.mxu0 0
    %3158 = vmatpush1.bf16.msra.mxu0 %v3147
    %3159 = vmatprep.subr.bf16.mxu0 0
    %3160 = vmatpush1.bf16.msra.mxu0 %v3146
    %3161 = vmatprep.subr.bf16.mxu0 0
    %3162 = vmatpush1.bf16.msra.mxu0 %v3145
    %3163 = vmatprep.subr.bf16.mxu0 0
    %3164 = vmatpush1.bf16.msra.mxu0 %v3144
    %3165 = vmatprep.subr.bf16.mxu0 0
    %3166 = vmatpush1.bf16.msra.mxu0 %v3143
    %3167 = vmatprep.subr.bf16.mxu0 0
    %3168 = vmatpush2.bf16.msra.mxu0 0
    %3169 = vmatprep.subr.bf16.mxu0 0
    %3170 = vmatpush2.bf16.msra.mxu0 0
    %3171 = vmatprep.subr.bf16.mxu0 0
    %3172 = vmatpush2.bf16.msra.mxu0 0
    %3173 = vmatprep.subr.bf16.mxu0 0
    %3174 = vmatpush2.bf16.msra.mxu0 0
    %3175 = vmatprep.subr.bf16.mxu0 0
    %3176 = vmatpush2.bf16.msra.mxu0 0
    %3177 = vmatprep.subr.bf16.mxu0 0
    %3178 = vmatpush2.bf16.msra.mxu0 0
    %3179 = vmatprep.subr.bf16.mxu0 0
    %3180 = vmatpush2.bf16.msra.mxu0 0
    %3181 = vmatprep.subr.bf16.mxu0 0
    %3182 = vmatpush2.bf16.msra.mxu0 0
    %3183 = vmatprep.mubr.bf16.mxu0 0
    %3184 = vmatmul.mubr.bf16.gmra.mxu0 %v50
    %v3185 = vpop.f32.mrf.mxu0
    %v3186 = vadd.f32 0.0, %v3185
    %v3187 = vpop.f32.mrf.mxu0
    %v3188 = vpop.f32.mrf.mxu0
    %v3189 = vpop.f32.mrf.mxu0
    %3190 = vdwg.mxu0
    %v3191 = vpack.c.bf16 %v3186, %v3186
    %s3192 = scalar_lea.vmem %s5, 224
    %v3193 = vld [vmem:[%s3192] sm:$0xf]
    %v3194 = vld [vmem:[%s3192 + $0x4] sm:$0xf]
    %v3195 = vld [vmem:[%s3192 + $0x8] sm:$0xf]
    %v3196 = vld [vmem:[%s3192 + $0xc] sm:$0xf]
    %v3197 = vld [vmem:[%s3192 + $0x10] sm:$0xf]
    %v3198 = vld [vmem:[%s3192 + $0x14] sm:$0xf]
    %v3199 = vld [vmem:[%s3192 + $0x18] sm:$0xf]
    %v3200 = vld [vmem:[%s3192 + $0x1c] sm:$0xf]
    %v3209 = vunpack.c.l.b16 %v3193
    %v3210 = vunpack.c.l.b16 %v3194
    %v3211 = vunpack.c.l.b16 %v3195
    %v3212 = vunpack.c.l.b16 %v3196
    %v3213 = vunpack.c.l.b16 %v3197
    %v3214 = vunpack.c.l.b16 %v3198
    %v3215 = vunpack.c.l.b16 %v3199
    %v3216 = vunpack.c.l.b16 %v3200
    %v3217 = vpack.c.b16 %v3210, %v3209
    %v3218 = vpack.c.b16 %v3212, %v3211
    %v3219 = vpack.c.b16 %v3214, %v3213
    %v3220 = vpack.c.b16 %v3216, %v3215
    %v3226 = vsel %vm372, %v3191, 0
    %3228 = vmatprep.subr.bf16.mxu0 0
    %3229 = vmatpush1.bf16.msra.mxu0 0
    %3230 = vmatprep.subr.bf16.mxu0 0
    %3231 = vmatpush1.bf16.msra.mxu0 0
    %3232 = vmatprep.subr.bf16.mxu0 0
    %3233 = vmatpush1.bf16.msra.mxu0 0
    %3234 = vmatprep.subr.bf16.mxu0 0
    %3235 = vmatpush1.bf16.msra.mxu0 0
    %3236 = vmatprep.subr.bf16.mxu0 0
    %3237 = vmatpush1.bf16.msra.mxu0 %v3220
    %3238 = vmatprep.subr.bf16.mxu0 0
    %3239 = vmatpush1.bf16.msra.mxu0 %v3219
    %3240 = vmatprep.subr.bf16.mxu0 0
    %3241 = vmatpush1.bf16.msra.mxu0 %v3218
    %3242 = vmatprep.subr.bf16.mxu0 0
    %3243 = vmatpush1.bf16.msra.mxu0 %v3217
    %3244 = vmatprep.subr.bf16.mxu0 0
    %3245 = vmatpush2.bf16.msra.mxu0 0
    %3246 = vmatprep.subr.bf16.mxu0 0
    %3247 = vmatpush2.bf16.msra.mxu0 0
    %3248 = vmatprep.subr.bf16.mxu0 0
    %3249 = vmatpush2.bf16.msra.mxu0 0
    %3250 = vmatprep.subr.bf16.mxu0 0
    %3251 = vmatpush2.bf16.msra.mxu0 0
    %3252 = vmatprep.subr.bf16.mxu0 0
    %3253 = vmatpush2.bf16.msra.mxu0 0
    %3254 = vmatprep.subr.bf16.mxu0 0
    %3255 = vmatpush2.bf16.msra.mxu0 0
    %3256 = vmatprep.subr.bf16.mxu0 0
    %3257 = vmatpush2.bf16.msra.mxu0 0
    %3258 = vmatprep.subr.bf16.mxu0 0
    %3259 = vmatpush2.bf16.msra.mxu0 0
    %3260 = vmatprep.mubr.bf16.mxu0 0
    %3261 = vmatmul.mubr.bf16.gmra.mxu0 %v3226
    %v3262 = vpop.f32.mrf.mxu0
    %v3263 = vadd.f32 0.0, %v3262
    %v3264 = vpop.f32.mrf.mxu0
    %v3265 = vpop.f32.mrf.mxu0
    %v3266 = vpop.f32.mrf.mxu0
    %3267 = vdwg.mxu0
    %v3268 = vadd.f32 %v2859, %v3263
    %v3269 = vld [vmem:[%s6] sm:$0x1]
    %v3271 = vlaneseq
    %v3272 = vshrl.u32 %v3271, 7
    %v3273 = vsub.s32 0, %v3272
    %v3274 = vrot.slane %v3269, %v3273
    %v3276 = vadd.f32 %v3268, %v3274
    %v3277 = vmax.f32 %v3276, 0.0
    %v3278 = vpack.c.bf16 %v3277, %v3277
    %v3279 = vld [vmem:[%s7] sm:$0xf]
    %v3280 = vld [vmem:[%s7 + $0x4] sm:$0xf]
    %v3281 = vld [vmem:[%s7 + $0x8] sm:$0xf]
    %v3282 = vld [vmem:[%s7 + $0xc] sm:$0xf]
    %v3283 = vld [vmem:[%s7 + $0x10] sm:$0xf]
    %v3284 = vld [vmem:[%s7 + $0x14] sm:$0xf]
    %v3285 = vld [vmem:[%s7 + $0x18] sm:$0xf]
    %v3286 = vld [vmem:[%s7 + $0x1c] sm:$0xf]
    %v3287 = vld [vmem:[%s8] sm:$0x1]
    %v3289 = vlaneseq
    %v3290 = vshrl.u32 %v3289, 7
    %v3291 = vsub.s32 0, %v3290
    %v3292 = vrot.slane %v3287, %v3291
    %v3302 = vunpack.c.l.b16 %v3279
    %v3303 = vunpack.c.l.b16 %v3280
    %v3304 = vunpack.c.l.b16 %v3281
    %v3305 = vunpack.c.l.b16 %v3282
    %v3306 = vunpack.c.l.b16 %v3283
    %v3307 = vunpack.c.l.b16 %v3284
    %v3308 = vunpack.c.l.b16 %v3285
    %v3309 = vunpack.c.l.b16 %v3286
    %v3310 = vpack.c.b16 %v3303, %v3302
    %v3311 = vpack.c.b16 %v3305, %v3304
    %v3312 = vpack.c.b16 %v3307, %v3306
    %v3313 = vpack.c.b16 %v3309, %v3308
    %v3319 = vsel %vm372, %v3278, 0
    %3321 = vmatprep.subr.bf16.mxu0 0
    %3322 = vmatpush1.bf16.msra.mxu0 0
    %3323 = vmatprep.subr.bf16.mxu0 0
    %3324 = vmatpush1.bf16.msra.mxu0 0
    %3325 = vmatprep.subr.bf16.mxu0 0
    %3326 = vmatpush1.bf16.msra.mxu0 0
    %3327 = vmatprep.subr.bf16.mxu0 0
    %3328 = vmatpush1.bf16.msra.mxu0 0
    %3329 = vmatprep.subr.bf16.mxu0 0
    %3330 = vmatpush1.bf16.msra.mxu0 %v3313
    %3331 = vmatprep.subr.bf16.mxu0 0
    %3332 = vmatpush1.bf16.msra.mxu0 %v3312
    %3333 = vmatprep.subr.bf16.mxu0 0
    %3334 = vmatpush1.bf16.msra.mxu0 %v3311
    %3335 = vmatprep.subr.bf16.mxu0 0
    %3336 = vmatpush1.bf16.msra.mxu0 %v3310
    %3337 = vmatprep.subr.bf16.mxu0 0
    %3338 = vmatpush2.bf16.msra.mxu0 0
    %3339 = vmatprep.subr.bf16.mxu0 0
    %3340 = vmatpush2.bf16.msra.mxu0 0
    %3341 = vmatprep.subr.bf16.mxu0 0
    %3342 = vmatpush2.bf16.msra.mxu0 0
    %3343 = vmatprep.subr.bf16.mxu0 0
    %3344 = vmatpush2.bf16.msra.mxu0 0
    %3345 = vmatprep.subr.bf16.mxu0 0
    %3346 = vmatpush2.bf16.msra.mxu0 0
    %3347 = vmatprep.subr.bf16.mxu0 0
    %3348 = vmatpush2.bf16.msra.mxu0 0
    %3349 = vmatprep.subr.bf16.mxu0 0
    %3350 = vmatpush2.bf16.msra.mxu0 0
    %3351 = vmatprep.subr.bf16.mxu0 0
    %3352 = vmatpush2.bf16.msra.mxu0 0
    %3353 = vmatprep.mubr.bf16.mxu0 0
    %3354 = vmatmul.mubr.bf16.gmra.mxu0 %v3319
    %v3355 = vpop.f32.mrf.mxu0
    %v3356 = vadd.f32 %v3292, %v3355
    %v3357 = vpop.f32.mrf.mxu0
    %v3358 = vpop.f32.mrf.mxu0
    %v3359 = vpop.f32.mrf.mxu0
    %3360 = vdwg.mxu0
    %vm3361 = vcmask 18432
    %v3362 = vsel %vm3361, %v3356, -inf
    %3363 = vmax.xlane.f32.xlu0 %v3362
    %v3364 = vpop.xlane.xlu0 %3363
    %v3365 = vsub.f32 %v3356, %v3364
    %v3366 = vmul.f32 %v3365, 1.442695
    %v3367 = vpow.pop %v3366
    %v3368 = vsel %vm3361, %v3367, 0.0
    %3369 = vadd.xlane.f32.xlu0 %v3368
    %v3370 = vpop.xlane.xlu0 %3369
    %v3371 = vlog2.pop %v3370
    %v3372 = vmul.f32 %v3371, 0.6931472
    %v3373 = vsub.f32 %v3365, %v3372
    %3374 = vst.msk [vmem:[#allocation2] sm:$0x7] %vm3361, %v3373
    // Predicated region
    $region38: #{gcn_with_jk_forward.1} parent=1 // pred_check
      _
    $region39: #{gcn_with_jk_forward.1} parent=1 // pred_check_branch
      %3376 = sbr.rel (0) target = $region41
    $region40: #{gcn_with_jk_forward.1} parent=1 // pred_region
      %s3378 = ssub.s32 64, 64
      %3379 = vsyncadd [#allocation3], %s3378
      %s3381 = sshll.u32 [#allocation2], 4
      %s3382 = int_to_ptr.vmem [resolvable:$true] %s3381
      %3384 = dma.vmem_to_hbm [thread:$0]  %s3382, 64, %s9, [#allocation3]
    $region41: #{gcn_with_jk_forward.1} parent=1 // pred_fallthru
      _
    // Predicated region
    $region42: #{gcn_with_jk_forward.1} parent=1 // pred_check
      _
    $region43: #{gcn_with_jk_forward.1} parent=1 // pred_check_branch
      %3386 = sbr.rel (0) target = $region45
    $region44: #{gcn_with_jk_forward.1} parent=1 // pred_region
      %3387 = dma.done [#allocation3], 64
    $region45: #{gcn_with_jk_forward.1} parent=1 // pred_fallthru
      _
    %3388 = vsyncpa [#allocation3], 1

</llo_original>
